<compile_context>
chip_gen: v7x
topology: tpu7x:2x2x1
jax: 0.10.0
libtpu: 0.0.40
codegen_flags: <defaults>
</compile_context>

<pallas_src>
import jax
import jax.numpy as jnp
from jax.experimental import pallas as pl
from jax.experimental.pallas import tpu as pltpu


def _make_ae_kernel(n_enc, n_dec):
    """Build a kernel that fuses the whole encoder+decoder MLP chain for one batch tile."""

    def kernel(*refs):
        # refs = [x,
        #         We_0, be_0, ..., We_{n_enc-1}, be_{n_enc-1},
        #         Wd_0, bd_0, ..., Wd_{n_dec-1}, bd_{n_dec-1},
        #         z_out, x2_out]
        x_ref = refs[0]
        z_ref = refs[1 + 2 * (n_enc + n_dec)]
        x2_ref = refs[2 + 2 * (n_enc + n_dec)]

        def layer(h, w_ref, b_ref):
            w = w_ref[...]                                   # bf16 (in, out)
            b = b_ref[...].astype(jnp.float32)               # (1, out)
            y = jnp.dot(h.astype(w.dtype), w,
                        preferred_element_type=jnp.float32) + b
            # sigmoid via EUP exp + approx reciprocal (keeps divide off the VALU)
            e = jnp.exp(-y)
            return pl.reciprocal(1.0 + e, approx=True)

        idx = 1
        h = x_ref[...].astype(jnp.float32)

        # ---- encoder: Linear -> (Dropout=id) -> sigmoid ----
        for _ in range(n_enc):
            h = layer(h, refs[idx], refs[idx + 1])
            idx += 2

        # store z right away: short live range + writeback overlaps decoder matmuls
        z_ref[...] = h.astype(z_ref.dtype)

        # ---- decoder: Linear -> (Dropout=id) -> sigmoid ----
        for _ in range(n_dec):
            h = layer(h, refs[idx], refs[idx + 1])
            idx += 2

        x2_ref[...] = h.astype(x2_ref.dtype)

    return kernel


def lpt_ae_forward(x, enc_params, dec_params, tb=512):
    """Fused AE forward.

    enc_params/dec_params: lists of (W_(in,out) f32, b_(1,out) f32).
    Returns (z, x2) with the original (unpadded) batch size.
    """
    n_enc, n_dec = len(enc_params), len(dec_params)
    B, data_dim = x.shape
    z_dim = enc_params[-1][0].shape[1]
    out_dim = dec_params[-1][0].shape[1]

    # Batch tile: MXU-height aligned (256 covers v6e/v7x 2x256 MXU and v5e's 128).
    tb = max(256, (tb // 256) * 256)
    n_blocks = pl.cdiv(B, tb)
    Bp = n_blocks * tb
    if Bp != B:
        x = jnp.pad(x, ((0, Bp - B), (0, 0)))

    args = [x]
    in_specs = [pl.BlockSpec((tb, data_dim), lambda i: (i, 0))]
    all_params = list(enc_params) + list(dec_params)
    for w, b in all_params:
        args += [w.astype(jnp.bfloat16), b.astype(jnp.float32)]
        # constant index_map -> weights/biases stay resident in VMEM across steps
        in_specs += [pl.BlockSpec(w.shape, lambda i: (0, 0)),
                     pl.BlockSpec(b.shape, lambda i: (0, 0))]

    # Advisory cost estimate so XLA schedules neighbors sensibly.
    flops = 2 * Bp * sum(w.shape[0] * w.shape[1] for w, _ in all_params)
    transcendentals = Bp * sum(w.shape[1] for w, _ in all_params)
    bytes_accessed = (
        Bp * data_dim * 4 + Bp * (z_dim + out_dim) * 4
        + sum(w.size * 2 + b.size * 4 for w, b in all_params)
    )

    kernel = _make_ae_kernel(n_enc, n_dec)

    z, x2 = pl.pallas_call(
        kernel,
        grid=(n_blocks,),
        in_specs=in_specs,
        out_specs=(
            pl.BlockSpec((tb, z_dim), lambda i: (i, 0)),
            pl.BlockSpec((tb, out_dim), lambda i: (i, 0)),
        ),
        out_shape=(
            jax.ShapeDtypeStruct((Bp, z_dim), jnp.float32),
            jax.ShapeDtypeStruct((Bp, out_dim), jnp.float32),
        ),
        compiler_params=pltpu.CompilerParams(
            dimension_semantics=("parallel",),   # shard batch tiles across v7x's 2 TCs
        ),
        cost_estimate=pl.CostEstimate(
            flops=flops,
            transcendentals=transcendentals,
            bytes_accessed=bytes_accessed,
        ),
    )(*args)

    return z[:B], x2[:B]


def _init_linear(key, in_dim, out_dim):
    """Deterministic init mimicking nn.Linear default (uniform +/- 1/sqrt(in))."""
    kw, kb = jax.random.split(key)
    bound = 1.0 / (in_dim ** 0.5)
    w = jax.random.uniform(kw, (in_dim, out_dim), jnp.float32, -bound, bound)
    b = jax.random.uniform(kb, (1, out_dim), jnp.float32, -bound, bound)
    return w, b


def _reference_forward(x, enc_params, dec_params):
    h = x
    for w, b in enc_params:
        h = jax.nn.sigmoid(h @ w + b)
    z = h
    for w, b in dec_params:
        h = jax.nn.sigmoid(h @ w + b)
    return z, h


if __name__ == "__main__":
    # Module config: data_dim=64, layer_dims=[32, 16]; both add_layer(0) and
    # add_layer(1) have been called, so:
    #   encoder: Linear(64,32)+sig, Linear(32,16)+sig
    #   decoder: Linear(16,32)+sig, Linear(32,64)+sig  (last uses op_activation='sigmoid')
    data_dim = 64
    layer_dims = [32, 16]
    batch = 8

    key = jax.random.PRNGKey(0)
    keys = jax.random.split(key, 2 * len(layer_dims) + 1)

    # encoder params (in order applied)
    enc_params = []
    in_dim = data_dim
    for i, od in enumerate(layer_dims):
        enc_params.append(_init_linear(keys[i], in_dim, od))
        in_dim = od

    # decoder params (in order applied: deepest first, back to data_dim last)
    dec_params = []
    dims_rev = layer_dims[::-1] + [data_dim]   # [16, 32, 64]
    for i in range(len(layer_dims)):
        dec_params.append(
            _init_linear(keys[len(layer_dims) + i], dims_rev[i], dims_rev[i + 1])
        )

    x = jax.random.uniform(keys[-1], (batch, data_dim), jnp.float32)

    z, x2 = lpt_ae_forward(x, enc_params, dec_params)
    z, x2 = jax.block_until_ready((z, x2))

    z_ref, x2_ref = _reference_forward(x, enc_params, dec_params)
    assert z.shape == (batch, layer_dims[-1])
    assert x2.shape == (batch, data_dim)
    # bf16 matmul inputs + approx reciprocal -> loosen tolerance vs f32 reference
    assert jnp.allclose(z, z_ref, atol=2e-2), "z mismatch vs reference"
    assert jnp.allclose(x2, x2_ref, atol=2e-2), "x2 mismatch vs reference"

    print("KERNEL_OK")
</pallas_src>

<mosaic_0001>
module attributes {stable_mosaic.version = 11 : i64} {
  func.func @kernel(%arg0: i32, %arg1: memref<512x64xf32, #tpu.memory_space<vmem>>, %arg2: memref<64x32xbf16, #tpu.memory_space<vmem>>, %arg3: memref<1x32xf32, #tpu.memory_space<vmem>>, %arg4: memref<32x16xbf16, #tpu.memory_space<vmem>>, %arg5: memref<1x16xf32, #tpu.memory_space<vmem>>, %arg6: memref<16x32xbf16, #tpu.memory_space<vmem>>, %arg7: memref<1x32xf32, #tpu.memory_space<vmem>>, %arg8: memref<32x64xbf16, #tpu.memory_space<vmem>>, %arg9: memref<1x64xf32, #tpu.memory_space<vmem>>, %arg10: memref<512x16xf32, #tpu.memory_space<vmem>>, %arg11: memref<512x64xf32, #tpu.memory_space<vmem>>) attributes {dimension_semantics = [#tpu.dimension_semantics<parallel>], iteration_bounds = array<i64: 1>, scalar_prefetch = 0 : i64, scratch_operands = 0 : i64, tpu.core_type = #tpu.core_type<tc>, window_params = [{transform_indices = @transform_0, window_bounds = array<i64: 512, 64>}, {pipeline_mode = #tpu.pipeline_mode<synchronous>, transform_indices = @transform_1, window_bounds = array<i64: 64, 32>}, {pipeline_mode = #tpu.pipeline_mode<synchronous>, transform_indices = @transform_2, window_bounds = array<i64: 1, 32>}, {pipeline_mode = #tpu.pipeline_mode<synchronous>, transform_indices = @transform_3, window_bounds = array<i64: 32, 16>}, {pipeline_mode = #tpu.pipeline_mode<synchronous>, transform_indices = @transform_4, window_bounds = array<i64: 1, 16>}, {pipeline_mode = #tpu.pipeline_mode<synchronous>, transform_indices = @transform_5, window_bounds = array<i64: 16, 32>}, {pipeline_mode = #tpu.pipeline_mode<synchronous>, transform_indices = @transform_6, window_bounds = array<i64: 1, 32>}, {pipeline_mode = #tpu.pipeline_mode<synchronous>, transform_indices = @transform_7, window_bounds = array<i64: 32, 64>}, {pipeline_mode = #tpu.pipeline_mode<synchronous>, transform_indices = @transform_8, window_bounds = array<i64: 1, 64>}, {transform_indices = @transform_9, window_bounds = array<i64: 512, 16>}, {transform_indices = @transform_10, window_bounds = array<i64: 512, 64>}]} {
    %c0 = arith.constant 0 : index
    %c0_0 = arith.constant 0 : index
    %0 = vector.load %arg1[%c0, %c0_0] : memref<512x64xf32, #tpu.memory_space<vmem>>, vector<512x64xf32>
    %c0_1 = arith.constant 0 : index
    %c0_2 = arith.constant 0 : index
    %1 = vector.load %arg2[%c0_1, %c0_2] : memref<64x32xbf16, #tpu.memory_space<vmem>>, vector<64x32xbf16>
    %c0_3 = arith.constant 0 : index
    %c0_4 = arith.constant 0 : index
    %2 = vector.load %arg3[%c0_3, %c0_4] : memref<1x32xf32, #tpu.memory_space<vmem>>, vector<1x32xf32>
    %3 = arith.truncf %0 : vector<512x64xf32> to vector<512x64xbf16>
    %cst = arith.constant dense<0.000000e+00> : vector<512x32xf32>
    %4 = tpu.matmul %3, %1, %cst {dimension_numbers = #tpu.dot_dimension_numbers<[1], [0], [0], [1], [0, 0, 1, 1], [], []>} : vector<512x64xbf16>, vector<64x32xbf16>, vector<512x32xf32> -> vector<512x32xf32>
    %5 = vector.broadcast %2 : vector<1x32xf32> to vector<512x32xf32>
    %6 = arith.addf %4, %5 : vector<512x32xf32>
    %cst_5 = arith.constant 0.000000e+00 : f32
    %7 = vector.broadcast %cst_5 : f32 to vector<512x32xf32>
    %8 = arith.subf %7, %6 : vector<512x32xf32>
    %9 = math.exp %8 : vector<512x32xf32>
    %cst_6 = arith.constant 1.000000e+00 : f32
    %10 = vector.broadcast %cst_6 : f32 to vector<512x32xf32>
    %11 = arith.addf %10, %9 : vector<512x32xf32>
    %12 = tpu.reciprocal %11 {approx = true} : vector<512x32xf32> -> vector<512x32xf32>
    %c0_7 = arith.constant 0 : index
    %c0_8 = arith.constant 0 : index
    %13 = vector.load %arg4[%c0_7, %c0_8] : memref<32x16xbf16, #tpu.memory_space<vmem>>, vector<32x16xbf16>
    %c0_9 = arith.constant 0 : index
    %c0_10 = arith.constant 0 : index
    %14 = vector.load %arg5[%c0_9, %c0_10] : memref<1x16xf32, #tpu.memory_space<vmem>>, vector<1x16xf32>
    %15 = arith.truncf %12 : vector<512x32xf32> to vector<512x32xbf16>
    %cst_11 = arith.constant dense<0.000000e+00> : vector<512x16xf32>
    %16 = tpu.matmul %15, %13, %cst_11 {dimension_numbers = #tpu.dot_dimension_numbers<[1], [0], [0], [1], [0, 0, 1, 1], [], []>} : vector<512x32xbf16>, vector<32x16xbf16>, vector<512x16xf32> -> vector<512x16xf32>
    %17 = vector.broadcast %14 : vector<1x16xf32> to vector<512x16xf32>
    %18 = arith.addf %16, %17 : vector<512x16xf32>
    %cst_12 = arith.constant 0.000000e+00 : f32
    %19 = vector.broadcast %cst_12 : f32 to vector<512x16xf32>
    %20 = arith.subf %19, %18 : vector<512x16xf32>
    %21 = math.exp %20 : vector<512x16xf32>
    %cst_13 = arith.constant 1.000000e+00 : f32
    %22 = vector.broadcast %cst_13 : f32 to vector<512x16xf32>
    %23 = arith.addf %22, %21 : vector<512x16xf32>
    %24 = tpu.reciprocal %23 {approx = true} : vector<512x16xf32> -> vector<512x16xf32>
    %c0_14 = arith.constant 0 : index
    %c0_15 = arith.constant 0 : index
    %25 = vector.load %arg10[%c0_14, %c0_15] : memref<512x16xf32, #tpu.memory_space<vmem>>, vector<512x16xf32>
    tpu.vector_store %arg10[%c0_14, %c0_15], %24 {strides = array<i32>} : memref<512x16xf32, #tpu.memory_space<vmem>>, vector<512x16xf32>,
    %c0_16 = arith.constant 0 : index
    %c0_17 = arith.constant 0 : index
    %26 = vector.load %arg6[%c0_16, %c0_17] : memref<16x32xbf16, #tpu.memory_space<vmem>>, vector<16x32xbf16>
    %c0_18 = arith.constant 0 : index
    %c0_19 = arith.constant 0 : index
    %27 = vector.load %arg7[%c0_18, %c0_19] : memref<1x32xf32, #tpu.memory_space<vmem>>, vector<1x32xf32>
    %28 = arith.truncf %24 : vector<512x16xf32> to vector<512x16xbf16>
    %cst_20 = arith.constant dense<0.000000e+00> : vector<512x32xf32>
    %29 = tpu.matmul %28, %26, %cst_20 {dimension_numbers = #tpu.dot_dimension_numbers<[1], [0], [0], [1], [0, 0, 1, 1], [], []>} : vector<512x16xbf16>, vector<16x32xbf16>, vector<512x32xf32> -> vector<512x32xf32>
    %30 = vector.broadcast %27 : vector<1x32xf32> to vector<512x32xf32>
    %31 = arith.addf %29, %30 : vector<512x32xf32>
    %cst_21 = arith.constant 0.000000e+00 : f32
    %32 = vector.broadcast %cst_21 : f32 to vector<512x32xf32>
    %33 = arith.subf %32, %31 : vector<512x32xf32>
    %34 = math.exp %33 : vector<512x32xf32>
    %cst_22 = arith.constant 1.000000e+00 : f32
    %35 = vector.broadcast %cst_22 : f32 to vector<512x32xf32>
    %36 = arith.addf %35, %34 : vector<512x32xf32>
    %37 = tpu.reciprocal %36 {approx = true} : vector<512x32xf32> -> vector<512x32xf32>
    %c0_23 = arith.constant 0 : index
    %c0_24 = arith.constant 0 : index
    %38 = vector.load %arg8[%c0_23, %c0_24] : memref<32x64xbf16, #tpu.memory_space<vmem>>, vector<32x64xbf16>
    %c0_25 = arith.constant 0 : index
    %c0_26 = arith.constant 0 : index
    %39 = vector.load %arg9[%c0_25, %c0_26] : memref<1x64xf32, #tpu.memory_space<vmem>>, vector<1x64xf32>
    %40 = arith.truncf %37 : vector<512x32xf32> to vector<512x32xbf16>
    %cst_27 = arith.constant dense<0.000000e+00> : vector<512x64xf32>
    %41 = tpu.matmul %40, %38, %cst_27 {dimension_numbers = #tpu.dot_dimension_numbers<[1], [0], [0], [1], [0, 0, 1, 1], [], []>} : vector<512x32xbf16>, vector<32x64xbf16>, vector<512x64xf32> -> vector<512x64xf32>
    %42 = vector.broadcast %39 : vector<1x64xf32> to vector<512x64xf32>
    %43 = arith.addf %41, %42 : vector<512x64xf32>
    %cst_28 = arith.constant 0.000000e+00 : f32
    %44 = vector.broadcast %cst_28 : f32 to vector<512x64xf32>
    %45 = arith.subf %44, %43 : vector<512x64xf32>
    %46 = math.exp %45 : vector<512x64xf32>
    %cst_29 = arith.constant 1.000000e+00 : f32
    %47 = vector.broadcast %cst_29 : f32 to vector<512x64xf32>
    %48 = arith.addf %47, %46 : vector<512x64xf32>
    %49 = tpu.reciprocal %48 {approx = true} : vector<512x64xf32> -> vector<512x64xf32>
    %c0_30 = arith.constant 0 : index
    %c0_31 = arith.constant 0 : index
    %50 = vector.load %arg11[%c0_30, %c0_31] : memref<512x64xf32, #tpu.memory_space<vmem>>, vector<512x64xf32>
    tpu.vector_store %arg11[%c0_30, %c0_31], %49 {strides = array<i32>} : memref<512x64xf32, #tpu.memory_space<vmem>>, vector<512x64xf32>,
    return
  }
  func.func @transform_0(%arg0: i32) -> (i32, i32) {
    %c0_i32 = arith.constant 0 : i32
    %c0_i32_0 = arith.constant 0 : i32
    return %arg0, %c0_i32 : i32, i32
  }
  func.func @transform_1(%arg0: i32) -> (i32, i32) {
    %c0_i32 = arith.constant 0 : i32
    %c0_i32_0 = arith.constant 0 : i32
    %c0_i32_1 = arith.constant 0 : i32
    return %c0_i32, %c0_i32_0 : i32, i32
  }
  func.func @transform_2(%arg0: i32) -> (i32, i32) {
    %c0_i32 = arith.constant 0 : i32
    %c0_i32_0 = arith.constant 0 : i32
    %c0_i32_1 = arith.constant 0 : i32
    return %c0_i32, %c0_i32_0 : i32, i32
  }
  func.func @transform_3(%arg0: i32) -> (i32, i32) {
    %c0_i32 = arith.constant 0 : i32
    %c0_i32_0 = arith.constant 0 : i32
    %c0_i32_1 = arith.constant 0 : i32
    return %c0_i32, %c0_i32_0 : i32, i32
  }
  func.func @transform_4(%arg0: i32) -> (i32, i32) {
    %c0_i32 = arith.constant 0 : i32
    %c0_i32_0 = arith.constant 0 : i32
    %c0_i32_1 = arith.constant 0 : i32
    return %c0_i32, %c0_i32_0 : i32, i32
  }
  func.func @transform_5(%arg0: i32) -> (i32, i32) {
    %c0_i32 = arith.constant 0 : i32
    %c0_i32_0 = arith.constant 0 : i32
    %c0_i32_1 = arith.constant 0 : i32
    return %c0_i32, %c0_i32_0 : i32, i32
  }
  func.func @transform_6(%arg0: i32) -> (i32, i32) {
    %c0_i32 = arith.constant 0 : i32
    %c0_i32_0 = arith.constant 0 : i32
    %c0_i32_1 = arith.constant 0 : i32
    return %c0_i32, %c0_i32_0 : i32, i32
  }
  func.func @transform_7(%arg0: i32) -> (i32, i32) {
    %c0_i32 = arith.constant 0 : i32
    %c0_i32_0 = arith.constant 0 : i32
    %c0_i32_1 = arith.constant 0 : i32
    return %c0_i32, %c0_i32_0 : i32, i32
  }
  func.func @transform_8(%arg0: i32) -> (i32, i32) {
    %c0_i32 = arith.constant 0 : i32
    %c0_i32_0 = arith.constant 0 : i32
    %c0_i32_1 = arith.constant 0 : i32
    return %c0_i32, %c0_i32_0 : i32, i32
  }
  func.func @transform_9(%arg0: i32) -> (i32, i32) {
    %c0_i32 = arith.constant 0 : i32
    %c0_i32_0 = arith.constant 0 : i32
    return %arg0, %c0_i32 : i32, i32
  }
  func.func @transform_10(%arg0: i32) -> (i32, i32) {
    %c0_i32 = arith.constant 0 : i32
    %c0_i32_0 = arith.constant 0 : i32
    return %arg0, %c0_i32 : i32, i32
  }
}

</mosaic_0001>

<llo_original>
// kernel: tpu_custom_call.1
$region0: #{tpu_custom_call.1}
  #allocation0 [shape = 'u32[]', space=smem, size = 0x4, offset = 0x4, fixed_abs, tag = 'smem constant byte address 0x4 - core index']
  #allocation1 [shape = 'u32[144,128]{1,0:T(1,128)}', space=vmem, size = 0x12000, scoped, tag = 'internal scratch']
  %s0 = inlined_call_operand.vmem [shape: f32[512,64], index: 0, kind: input, shape index: {}]
  %s1 = inlined_call_operand.vmem [shape: bf16[64,32], index: 1, kind: input, shape index: {}]
  %s2 = inlined_call_operand.vmem [shape: f32[1,32], index: 2, kind: input, shape index: {}]
  %s3 = inlined_call_operand.vmem [shape: bf16[32,16], index: 3, kind: input, shape index: {}]
  %s4 = inlined_call_operand.vmem [shape: f32[1,16], index: 4, kind: input, shape index: {}]
  %s5 = inlined_call_operand.vmem [shape: bf16[16,32], index: 5, kind: input, shape index: {}]
  %s6 = inlined_call_operand.vmem [shape: f32[1,32], index: 6, kind: input, shape index: {}]
  %s7 = inlined_call_operand.vmem [shape: bf16[32,64], index: 7, kind: input, shape index: {}]
  %s8 = inlined_call_operand.vmem [shape: f32[1,64], index: 8, kind: input, shape index: {}]
  %s9 = inlined_call_operand.vmem [shape: f32[512,16], index: 9, kind: output, shape index: {0}]
  %s10 = inlined_call_operand.vmem [shape: f32[512,64], index: 10, kind: output, shape index: {1}]
  %11 = xla_tuple %s9, %s10
  %s12 = sld [smem:[#allocation0]]
  $region54: #{tpu_custom_call.1} parent=0
    _
  %s14 = ssub.s32 1, %s12
  %s15 = scalar_select 0, %s14, %s12
  // Predicated region
  $region2: #{tpu_custom_call.1} parent=0 // pred_check
    _
  $region3: #{tpu_custom_call.1} parent=0 // pred_check_branch
    %17 = sbr.rel (0) target = $region5
  $region4: #{tpu_custom_call.1} parent=0 // pred_region
    _
  $region5: #{tpu_custom_call.1} parent=0 // pred_fallthru
    _
  // Predicated region
  $region6: #{tpu_custom_call.1} parent=0 // pred_check
    _
  $region7: #{tpu_custom_call.1} parent=0 // pred_check_branch
    %19 = sbr.rel (0) target = $region9
  $region8: #{tpu_custom_call.1} parent=0 // pred_region
    _
  $region9: #{tpu_custom_call.1} parent=0 // pred_fallthru
    _
  // Predicated region
  $region10: #{tpu_custom_call.1} parent=0 // pred_check
    _
  $region11: #{tpu_custom_call.1} parent=0 // pred_check_branch
    %21 = sbr.rel (0) target = $region13
  $region12: #{tpu_custom_call.1} parent=0 // pred_region
    _
  $region13: #{tpu_custom_call.1} parent=0 // pred_fallthru
    _
  // Predicated region
  $region14: #{tpu_custom_call.1} parent=0 // pred_check
    _
  $region15: #{tpu_custom_call.1} parent=0 // pred_check_branch
    %23 = sbr.rel (0) target = $region17
  $region16: #{tpu_custom_call.1} parent=0 // pred_region
    _
  $region17: #{tpu_custom_call.1} parent=0 // pred_fallthru
    _
  // Predicated region
  $region18: #{tpu_custom_call.1} parent=0 // pred_check
    _
  $region19: #{tpu_custom_call.1} parent=0 // pred_check_branch
    %25 = sbr.rel (0) target = $region21
  $region20: #{tpu_custom_call.1} parent=0 // pred_region
    _
  $region21: #{tpu_custom_call.1} parent=0 // pred_fallthru
    _
  // Predicated region
  $region22: #{tpu_custom_call.1} parent=0 // pred_check
    _
  $region23: #{tpu_custom_call.1} parent=0 // pred_check_branch
    %27 = sbr.rel (0) target = $region25
  $region24: #{tpu_custom_call.1} parent=0 // pred_region
    _
  $region25: #{tpu_custom_call.1} parent=0 // pred_fallthru
    _
  // Predicated region
  $region26: #{tpu_custom_call.1} parent=0 // pred_check
    _
  $region27: #{tpu_custom_call.1} parent=0 // pred_check_branch
    %29 = sbr.rel (0) target = $region29
  $region28: #{tpu_custom_call.1} parent=0 // pred_region
    _
  $region29: #{tpu_custom_call.1} parent=0 // pred_fallthru
    _
  // Predicated region
  $region30: #{tpu_custom_call.1} parent=0 // pred_check
    _
  $region31: #{tpu_custom_call.1} parent=0 // pred_check_branch
    %31 = sbr.rel (0) target = $region33
  $region32: #{tpu_custom_call.1} parent=0 // pred_region
    _
  $region33: #{tpu_custom_call.1} parent=0 // pred_fallthru
    _
  // Predicated region
  $region34: #{tpu_custom_call.1} parent=0 // pred_check
    _
  $region35: #{tpu_custom_call.1} parent=0 // pred_check_branch
    %33 = sbr.rel (0) target = $region37
  $region36: #{tpu_custom_call.1} parent=0 // pred_region
    _
  $region37: #{tpu_custom_call.1} parent=0 // pred_fallthru
    _
  %v35 = vld [vmem:[%s0] sm:$0xff]
  %v36 = vld [vmem:[%s0 + $0x8] sm:$0xff]
  %v37 = vld [vmem:[%s0 + $0x10] sm:$0xff]
  %v38 = vld [vmem:[%s0 + $0x18] sm:$0xff]
  %v39 = vld [vmem:[%s0 + $0x20] sm:$0xff]
  %v40 = vld [vmem:[%s0 + $0x28] sm:$0xff]
  %v41 = vld [vmem:[%s0 + $0x30] sm:$0xff]
  %v42 = vld [vmem:[%s0 + $0x38] sm:$0xff]
  %v43 = vld [vmem:[%s0 + $0x40] sm:$0xff]
  %v44 = vld [vmem:[%s0 + $0x48] sm:$0xff]
  %v45 = vld [vmem:[%s0 + $0x50] sm:$0xff]
  %v46 = vld [vmem:[%s0 + $0x58] sm:$0xff]
  %v47 = vld [vmem:[%s0 + $0x60] sm:$0xff]
  %v48 = vld [vmem:[%s0 + $0x68] sm:$0xff]
  %v49 = vld [vmem:[%s0 + $0x70] sm:$0xff]
  %v50 = vld [vmem:[%s0 + $0x78] sm:$0xff]
  %v51 = vld [vmem:[%s0 + $0x80] sm:$0xff]
  %v52 = vld [vmem:[%s0 + $0x88] sm:$0xff]
  %v53 = vld [vmem:[%s0 + $0x90] sm:$0xff]
  %v54 = vld [vmem:[%s0 + $0x98] sm:$0xff]
  %v55 = vld [vmem:[%s0 + $0xa0] sm:$0xff]
  %v56 = vld [vmem:[%s0 + $0xa8] sm:$0xff]
  %v57 = vld [vmem:[%s0 + $0xb0] sm:$0xff]
  %v58 = vld [vmem:[%s0 + $0xb8] sm:$0xff]
  %v59 = vld [vmem:[%s0 + $0xc0] sm:$0xff]
  %v60 = vld [vmem:[%s0 + $0xc8] sm:$0xff]
  %v61 = vld [vmem:[%s0 + $0xd0] sm:$0xff]
  %v62 = vld [vmem:[%s0 + $0xd8] sm:$0xff]
  %v63 = vld [vmem:[%s0 + $0xe0] sm:$0xff]
  %v64 = vld [vmem:[%s0 + $0xe8] sm:$0xff]
  %v65 = vld [vmem:[%s0 + $0xf0] sm:$0xff]
  %v66 = vld [vmem:[%s0 + $0xf8] sm:$0xff]
  %v67 = vld [vmem:[%s0 + $0x100] sm:$0xff]
  %v68 = vld [vmem:[%s0 + $0x108] sm:$0xff]
  %v69 = vld [vmem:[%s0 + $0x110] sm:$0xff]
  %v70 = vld [vmem:[%s0 + $0x118] sm:$0xff]
  %v71 = vld [vmem:[%s0 + $0x120] sm:$0xff]
  %v72 = vld [vmem:[%s0 + $0x128] sm:$0xff]
  %v73 = vld [vmem:[%s0 + $0x130] sm:$0xff]
  %v74 = vld [vmem:[%s0 + $0x138] sm:$0xff]
  %v75 = vld [vmem:[%s0 + $0x140] sm:$0xff]
  %v76 = vld [vmem:[%s0 + $0x148] sm:$0xff]
  %v77 = vld [vmem:[%s0 + $0x150] sm:$0xff]
  %v78 = vld [vmem:[%s0 + $0x158] sm:$0xff]
  %v79 = vld [vmem:[%s0 + $0x160] sm:$0xff]
  %v80 = vld [vmem:[%s0 + $0x168] sm:$0xff]
  %v81 = vld [vmem:[%s0 + $0x170] sm:$0xff]
  %v82 = vld [vmem:[%s0 + $0x178] sm:$0xff]
  %v83 = vld [vmem:[%s0 + $0x180] sm:$0xff]
  %v84 = vld [vmem:[%s0 + $0x188] sm:$0xff]
  %v85 = vld [vmem:[%s0 + $0x190] sm:$0xff]
  %v86 = vld [vmem:[%s0 + $0x198] sm:$0xff]
  %v87 = vld [vmem:[%s0 + $0x1a0] sm:$0xff]
  %v88 = vld [vmem:[%s0 + $0x1a8] sm:$0xff]
  %v89 = vld [vmem:[%s0 + $0x1b0] sm:$0xff]
  %v90 = vld [vmem:[%s0 + $0x1b8] sm:$0xff]
  %v91 = vld [vmem:[%s0 + $0x1c0] sm:$0xff]
  %v92 = vld [vmem:[%s0 + $0x1c8] sm:$0xff]
  %v93 = vld [vmem:[%s0 + $0x1d0] sm:$0xff]
  %v94 = vld [vmem:[%s0 + $0x1d8] sm:$0xff]
  %v95 = vld [vmem:[%s0 + $0x1e0] sm:$0xff]
  %v96 = vld [vmem:[%s0 + $0x1e8] sm:$0xff]
  %v97 = vld [vmem:[%s0 + $0x1f0] sm:$0xff]
  %v98 = vld [vmem:[%s0 + $0x1f8] sm:$0xff]
  %v99 = vld [vmem:[%s1] sm:$0xf]
  %v100 = vld [vmem:[%s1 + $0x4] sm:$0xf]
  %v101 = vld [vmem:[%s1 + $0x8] sm:$0xf]
  %v102 = vld [vmem:[%s1 + $0xc] sm:$0xf]
  %v103 = vld [vmem:[%s1 + $0x10] sm:$0xf]
  %v104 = vld [vmem:[%s1 + $0x14] sm:$0xf]
  %v105 = vld [vmem:[%s1 + $0x18] sm:$0xf]
  %v106 = vld [vmem:[%s1 + $0x1c] sm:$0xf]
  %v107 = vld [vmem:[%s2] sm:$0x1]
  %v108 = vpack.c.bf16 %v36, %v35
  %v109 = vpack.c.bf16 %v38, %v37
  %v110 = vpack.c.bf16 %v40, %v39
  %v111 = vpack.c.bf16 %v42, %v41
  %v112 = vpack.c.bf16 %v44, %v43
  %v113 = vpack.c.bf16 %v46, %v45
  %v114 = vpack.c.bf16 %v48, %v47
  %v115 = vpack.c.bf16 %v50, %v49
  %v116 = vpack.c.bf16 %v52, %v51
  %v117 = vpack.c.bf16 %v54, %v53
  %v118 = vpack.c.bf16 %v56, %v55
  %v119 = vpack.c.bf16 %v58, %v57
  %v120 = vpack.c.bf16 %v60, %v59
  %v121 = vpack.c.bf16 %v62, %v61
  %v122 = vpack.c.bf16 %v64, %v63
  %v123 = vpack.c.bf16 %v66, %v65
  %v124 = vpack.c.bf16 %v68, %v67
  %v125 = vpack.c.bf16 %v70, %v69
  %v126 = vpack.c.bf16 %v72, %v71
  %v127 = vpack.c.bf16 %v74, %v73
  %v128 = vpack.c.bf16 %v76, %v75
  %v129 = vpack.c.bf16 %v78, %v77
  %v130 = vpack.c.bf16 %v80, %v79
  %v131 = vpack.c.bf16 %v82, %v81
  %v132 = vpack.c.bf16 %v84, %v83
  %v133 = vpack.c.bf16 %v86, %v85
  %v134 = vpack.c.bf16 %v88, %v87
  %v135 = vpack.c.bf16 %v90, %v89
  %v136 = vpack.c.bf16 %v92, %v91
  %v137 = vpack.c.bf16 %v94, %v93
  %v138 = vpack.c.bf16 %v96, %v95
  %v139 = vpack.c.bf16 %v98, %v97
  %v141 = vlaneseq
  %v142 = vshrl.u32 %v141, 7
  %v143 = vsub.s32 0, %v142
  %v144 = vrot.slane %v107, %v143
  %v154 = vunpack.c.l.b16 %v99
  %v155 = vunpack.c.l.b16 %v100
  %v156 = vunpack.c.l.b16 %v101
  %v157 = vunpack.c.l.b16 %v102
  %v158 = vunpack.c.l.b16 %v103
  %v159 = vunpack.c.l.b16 %v104
  %v160 = vunpack.c.l.b16 %v105
  %v161 = vunpack.c.l.b16 %v106
  %v162 = vpack.c.b16 %v155, %v154
  %v163 = vpack.c.b16 %v157, %v156
  %v164 = vpack.c.b16 %v159, %v158
  %v165 = vpack.c.b16 %v161, %v160
  %vm170 = vcmask 523264
  %v172 = vsel %vm170, %v108, 0
  %v175 = vsel %vm170, %v109, 0
  %v178 = vsel %vm170, %v110, 0
  %v181 = vsel %vm170, %v111, 0
  %v184 = vsel %vm170, %v112, 0
  %v187 = vsel %vm170, %v113, 0
  %v190 = vsel %vm170, %v114, 0
  %v193 = vsel %vm170, %v115, 0
  %v196 = vsel %vm170, %v116, 0
  %v199 = vsel %vm170, %v117, 0
  %v202 = vsel %vm170, %v118, 0
  %v205 = vsel %vm170, %v119, 0
  %v208 = vsel %vm170, %v120, 0
  %v211 = vsel %vm170, %v121, 0
  %v214 = vsel %vm170, %v122, 0
  %v217 = vsel %vm170, %v123, 0
  %v220 = vsel %vm170, %v124, 0
  %v223 = vsel %vm170, %v125, 0
  %v226 = vsel %vm170, %v126, 0
  %v229 = vsel %vm170, %v127, 0
  %v232 = vsel %vm170, %v128, 0
  %v235 = vsel %vm170, %v129, 0
  %v238 = vsel %vm170, %v130, 0
  %v241 = vsel %vm170, %v131, 0
  %v244 = vsel %vm170, %v132, 0
  %v247 = vsel %vm170, %v133, 0
  %v250 = vsel %vm170, %v134, 0
  %v253 = vsel %vm170, %v135, 0
  %v256 = vsel %vm170, %v136, 0
  %v259 = vsel %vm170, %v137, 0
  %v262 = vsel %vm170, %v138, 0
  %v265 = vsel %vm170, %v139, 0
  %267 = vmatprep.subr.bf16.mxu0 0
  %268 = vmatpush1.bf16.msra.mxu0 %v162
  %269 = vmatprep.subr.bf16.mxu0 0
  %270 = vmatpush1.bf16.msra.mxu0 %v163
  %271 = vmatprep.subr.bf16.mxu0 0
  %272 = vmatpush1.bf16.msra.mxu0 %v164
  %273 = vmatprep.subr.bf16.mxu0 0
  %274 = vmatpush1.bf16.msra.mxu0 %v165
  %275 = vmatprep.subr.bf16.mxu0 0
  %276 = vmatpush1.bf16.msra.mxu0 0
  %277 = vmatprep.subr.bf16.mxu0 0
  %278 = vmatpush1.bf16.msra.mxu0 0
  %279 = vmatprep.subr.bf16.mxu0 0
  %280 = vmatpush1.bf16.msra.mxu0 0
  %281 = vmatprep.subr.bf16.mxu0 0
  %282 = vmatpush1.bf16.msra.mxu0 0
  %283 = vmatprep.subr.bf16.mxu0 0
  %284 = vmatpush1.bf16.msra.mxu0 0
  %285 = vmatprep.subr.bf16.mxu0 0
  %286 = vmatpush1.bf16.msra.mxu0 0
  %287 = vmatprep.subr.bf16.mxu0 0
  %288 = vmatpush1.bf16.msra.mxu0 0
  %289 = vmatprep.subr.bf16.mxu0 0
  %290 = vmatpush1.bf16.msra.mxu0 0
  %291 = vmatprep.subr.bf16.mxu0 0
  %292 = vmatpush1.bf16.msra.mxu0 0
  %293 = vmatprep.subr.bf16.mxu0 0
  %294 = vmatpush1.bf16.msra.mxu0 0
  %295 = vmatprep.subr.bf16.mxu0 0
  %296 = vmatpush1.bf16.msra.mxu0 0
  %297 = vmatprep.subr.bf16.mxu0 0
  %298 = vmatpush1.bf16.msra.mxu0 0
  %299 = vmatprep.mubr.bf16.mxu0 0
  %300 = vmatmul.mubr.bf16.gmra.mrb[0].mxu0 %v172
  %v301 = vpop.f32.mrb[0].mxu0
  %v302 = vadd.f32 %v144, %v301
  %v303 = vpop.f32.mrb[0].mxu0
  %v304 = vpop.f32.mrb[0].mxu0
  %v305 = vadd.f32 %v144, %v304
  %v306 = vpop.f32.mrb[0].mxu0
  %307 = vmatprep.mubr.bf16.mxu0 0
  %308 = vmatmul.mubr.bf16.gmra.mrb[0].mxu0 %v175
  %v309 = vpop.f32.mrb[0].mxu0
  %v310 = vadd.f32 %v144, %v309
  %v311 = vpop.f32.mrb[0].mxu0
  %v312 = vpop.f32.mrb[0].mxu0
  %v313 = vadd.f32 %v144, %v312
  %v314 = vpop.f32.mrb[0].mxu0
  %315 = vmatprep.mubr.bf16.mxu0 0
  %316 = vmatmul.mubr.bf16.gmra.mrb[0].mxu0 %v178
  %v317 = vpop.f32.mrb[0].mxu0
  %v318 = vadd.f32 %v144, %v317
  %v319 = vpop.f32.mrb[0].mxu0
  %v320 = vpop.f32.mrb[0].mxu0
  %v321 = vadd.f32 %v144, %v320
  %v322 = vpop.f32.mrb[0].mxu0
  %323 = vmatprep.mubr.bf16.mxu0 0
  %324 = vmatmul.mubr.bf16.gmra.mrb[0].mxu0 %v181
  %v325 = vpop.f32.mrb[0].mxu0
  %v326 = vadd.f32 %v144, %v325
  %v327 = vpop.f32.mrb[0].mxu0
  %v328 = vpop.f32.mrb[0].mxu0
  %v329 = vadd.f32 %v144, %v328
  %v330 = vpop.f32.mrb[0].mxu0
  %331 = vmatprep.mubr.bf16.mxu0 0
  %332 = vmatmul.mubr.bf16.gmra.mrb[0].mxu0 %v184
  %v333 = vpop.f32.mrb[0].mxu0
  %v334 = vadd.f32 %v144, %v333
  %v335 = vpop.f32.mrb[0].mxu0
  %v336 = vpop.f32.mrb[0].mxu0
  %v337 = vadd.f32 %v144, %v336
  %v338 = vpop.f32.mrb[0].mxu0
  %339 = vmatprep.mubr.bf16.mxu0 0
  %340 = vmatmul.mubr.bf16.gmra.mrb[0].mxu0 %v187
  %v341 = vpop.f32.mrb[0].mxu0
  %v342 = vadd.f32 %v144, %v341
  %v343 = vpop.f32.mrb[0].mxu0
  %v344 = vpop.f32.mrb[0].mxu0
  %v345 = vadd.f32 %v144, %v344
  %v346 = vpop.f32.mrb[0].mxu0
  %347 = vmatprep.mubr.bf16.mxu0 0
  %348 = vmatmul.mubr.bf16.gmra.mrb[0].mxu0 %v190
  %v349 = vpop.f32.mrb[0].mxu0
  %v350 = vadd.f32 %v144, %v349
  %v351 = vpop.f32.mrb[0].mxu0
  %v352 = vpop.f32.mrb[0].mxu0
  %v353 = vadd.f32 %v144, %v352
  %v354 = vpop.f32.mrb[0].mxu0
  %355 = vmatprep.mubr.bf16.mxu0 0
  %356 = vmatmul.mubr.bf16.gmra.mrb[0].mxu0 %v193
  %v357 = vpop.f32.mrb[0].mxu0
  %v358 = vadd.f32 %v144, %v357
  %v359 = vpop.f32.mrb[0].mxu0
  %v360 = vpop.f32.mrb[0].mxu0
  %v361 = vadd.f32 %v144, %v360
  %v362 = vpop.f32.mrb[0].mxu0
  %363 = vmatprep.mubr.bf16.mxu0 0
  %364 = vmatmul.mubr.bf16.gmra.mrb[0].mxu0 %v196
  %v365 = vpop.f32.mrb[0].mxu0
  %v366 = vadd.f32 %v144, %v365
  %v367 = vpop.f32.mrb[0].mxu0
  %v368 = vpop.f32.mrb[0].mxu0
  %v369 = vadd.f32 %v144, %v368
  %v370 = vpop.f32.mrb[0].mxu0
  %371 = vmatprep.mubr.bf16.mxu0 0
  %372 = vmatmul.mubr.bf16.gmra.mrb[0].mxu0 %v199
  %v373 = vpop.f32.mrb[0].mxu0
  %v374 = vadd.f32 %v144, %v373
  %v375 = vpop.f32.mrb[0].mxu0
  %v376 = vpop.f32.mrb[0].mxu0
  %v377 = vadd.f32 %v144, %v376
  %v378 = vpop.f32.mrb[0].mxu0
  %379 = vmatprep.mubr.bf16.mxu0 0
  %380 = vmatmul.mubr.bf16.gmra.mrb[0].mxu0 %v202
  %v381 = vpop.f32.mrb[0].mxu0
  %v382 = vadd.f32 %v144, %v381
  %v383 = vpop.f32.mrb[0].mxu0
  %v384 = vpop.f32.mrb[0].mxu0
  %v385 = vadd.f32 %v144, %v384
  %v386 = vpop.f32.mrb[0].mxu0
  %387 = vmatprep.mubr.bf16.mxu0 0
  %388 = vmatmul.mubr.bf16.gmra.mrb[0].mxu0 %v205
  %v389 = vpop.f32.mrb[0].mxu0
  %v390 = vadd.f32 %v144, %v389
  %v391 = vpop.f32.mrb[0].mxu0
  %v392 = vpop.f32.mrb[0].mxu0
  %v393 = vadd.f32 %v144, %v392
  %v394 = vpop.f32.mrb[0].mxu0
  %395 = vmatprep.mubr.bf16.mxu0 0
  %396 = vmatmul.mubr.bf16.gmra.mrb[0].mxu0 %v208
  %v397 = vpop.f32.mrb[0].mxu0
  %v398 = vadd.f32 %v144, %v397
  %v399 = vpop.f32.mrb[0].mxu0
  %v400 = vpop.f32.mrb[0].mxu0
  %v401 = vadd.f32 %v144, %v400
  %v402 = vpop.f32.mrb[0].mxu0
  %403 = vmatprep.mubr.bf16.mxu0 0
  %404 = vmatmul.mubr.bf16.gmra.mrb[0].mxu0 %v211
  %v405 = vpop.f32.mrb[0].mxu0
  %v406 = vadd.f32 %v144, %v405
  %v407 = vpop.f32.mrb[0].mxu0
  %v408 = vpop.f32.mrb[0].mxu0
  %v409 = vadd.f32 %v144, %v408
  %v410 = vpop.f32.mrb[0].mxu0
  %411 = vmatprep.mubr.bf16.mxu0 0
  %412 = vmatmul.mubr.bf16.gmra.mrb[0].mxu0 %v214
  %v413 = vpop.f32.mrb[0].mxu0
  %v414 = vadd.f32 %v144, %v413
  %v415 = vpop.f32.mrb[0].mxu0
  %v416 = vpop.f32.mrb[0].mxu0
  %v417 = vadd.f32 %v144, %v416
  %v418 = vpop.f32.mrb[0].mxu0
  %419 = vmatprep.mubr.bf16.mxu0 0
  %420 = vmatmul.mubr.bf16.gmra.mrb[0].mxu0 %v217
  %v421 = vpop.f32.mrb[0].mxu0
  %v422 = vadd.f32 %v144, %v421
  %v423 = vpop.f32.mrb[0].mxu0
  %v424 = vpop.f32.mrb[0].mxu0
  %v425 = vadd.f32 %v144, %v424
  %v426 = vpop.f32.mrb[0].mxu0
  %427 = vmatprep.mubr.bf16.mxu0 0
  %428 = vmatmul.mubr.bf16.gmra.mrb[0].mxu0 %v220
  %v429 = vpop.f32.mrb[0].mxu0
  %v430 = vadd.f32 %v144, %v429
  %v431 = vpop.f32.mrb[0].mxu0
  %v432 = vpop.f32.mrb[0].mxu0
  %v433 = vadd.f32 %v144, %v432
  %v434 = vpop.f32.mrb[0].mxu0
  %435 = vmatprep.mubr.bf16.mxu0 0
  %436 = vmatmul.mubr.bf16.gmra.mrb[0].mxu0 %v223
  %v437 = vpop.f32.mrb[0].mxu0
  %v438 = vadd.f32 %v144, %v437
  %v439 = vpop.f32.mrb[0].mxu0
  %v440 = vpop.f32.mrb[0].mxu0
  %v441 = vadd.f32 %v144, %v440
  %v442 = vpop.f32.mrb[0].mxu0
  %443 = vmatprep.mubr.bf16.mxu0 0
  %444 = vmatmul.mubr.bf16.gmra.mrb[0].mxu0 %v226
  %v445 = vpop.f32.mrb[0].mxu0
  %v446 = vadd.f32 %v144, %v445
  %v447 = vpop.f32.mrb[0].mxu0
  %v448 = vpop.f32.mrb[0].mxu0
  %v449 = vadd.f32 %v144, %v448
  %v450 = vpop.f32.mrb[0].mxu0
  %451 = vmatprep.mubr.bf16.mxu0 0
  %452 = vmatmul.mubr.bf16.gmra.mrb[0].mxu0 %v229
  %v453 = vpop.f32.mrb[0].mxu0
  %v454 = vadd.f32 %v144, %v453
  %v455 = vpop.f32.mrb[0].mxu0
  %v456 = vpop.f32.mrb[0].mxu0
  %v457 = vadd.f32 %v144, %v456
  %v458 = vpop.f32.mrb[0].mxu0
  %459 = vmatprep.mubr.bf16.mxu0 0
  %460 = vmatmul.mubr.bf16.gmra.mrb[0].mxu0 %v232
  %v461 = vpop.f32.mrb[0].mxu0
  %v462 = vadd.f32 %v144, %v461
  %v463 = vpop.f32.mrb[0].mxu0
  %v464 = vpop.f32.mrb[0].mxu0
  %v465 = vadd.f32 %v144, %v464
  %v466 = vpop.f32.mrb[0].mxu0
  %467 = vmatprep.mubr.bf16.mxu0 0
  %468 = vmatmul.mubr.bf16.gmra.mrb[0].mxu0 %v235
  %v469 = vpop.f32.mrb[0].mxu0
  %v470 = vadd.f32 %v144, %v469
  %v471 = vpop.f32.mrb[0].mxu0
  %v472 = vpop.f32.mrb[0].mxu0
  %v473 = vadd.f32 %v144, %v472
  %v474 = vpop.f32.mrb[0].mxu0
  %475 = vmatprep.mubr.bf16.mxu0 0
  %476 = vmatmul.mubr.bf16.gmra.mrb[0].mxu0 %v238
  %v477 = vpop.f32.mrb[0].mxu0
  %v478 = vadd.f32 %v144, %v477
  %v479 = vpop.f32.mrb[0].mxu0
  %v480 = vpop.f32.mrb[0].mxu0
  %v481 = vadd.f32 %v144, %v480
  %v482 = vpop.f32.mrb[0].mxu0
  %483 = vmatprep.mubr.bf16.mxu0 0
  %484 = vmatmul.mubr.bf16.gmra.mrb[0].mxu0 %v241
  %v485 = vpop.f32.mrb[0].mxu0
  %v486 = vadd.f32 %v144, %v485
  %v487 = vpop.f32.mrb[0].mxu0
  %v488 = vpop.f32.mrb[0].mxu0
  %v489 = vadd.f32 %v144, %v488
  %v490 = vpop.f32.mrb[0].mxu0
  %491 = vmatprep.mubr.bf16.mxu0 0
  %492 = vmatmul.mubr.bf16.gmra.mrb[0].mxu0 %v244
  %v493 = vpop.f32.mrb[0].mxu0
  %v494 = vadd.f32 %v144, %v493
  %v495 = vpop.f32.mrb[0].mxu0
  %v496 = vpop.f32.mrb[0].mxu0
  %v497 = vadd.f32 %v144, %v496
  %v498 = vpop.f32.mrb[0].mxu0
  %499 = vmatprep.mubr.bf16.mxu0 0
  %500 = vmatmul.mubr.bf16.gmra.mrb[0].mxu0 %v247
  %v501 = vpop.f32.mrb[0].mxu0
  %v502 = vadd.f32 %v144, %v501
  %v503 = vpop.f32.mrb[0].mxu0
  %v504 = vpop.f32.mrb[0].mxu0
  %v505 = vadd.f32 %v144, %v504
  %v506 = vpop.f32.mrb[0].mxu0
  %507 = vmatprep.mubr.bf16.mxu0 0
  %508 = vmatmul.mubr.bf16.gmra.mrb[0].mxu0 %v250
  %v509 = vpop.f32.mrb[0].mxu0
  %v510 = vadd.f32 %v144, %v509
  %v511 = vpop.f32.mrb[0].mxu0
  %v512 = vpop.f32.mrb[0].mxu0
  %v513 = vadd.f32 %v144, %v512
  %v514 = vpop.f32.mrb[0].mxu0
  %515 = vmatprep.mubr.bf16.mxu0 0
  %516 = vmatmul.mubr.bf16.gmra.mrb[0].mxu0 %v253
  %v517 = vpop.f32.mrb[0].mxu0
  %v518 = vadd.f32 %v144, %v517
  %v519 = vpop.f32.mrb[0].mxu0
  %v520 = vpop.f32.mrb[0].mxu0
  %v521 = vadd.f32 %v144, %v520
  %v522 = vpop.f32.mrb[0].mxu0
  %523 = vmatprep.mubr.bf16.mxu0 0
  %524 = vmatmul.mubr.bf16.gmra.mrb[0].mxu0 %v256
  %v525 = vpop.f32.mrb[0].mxu0
  %v526 = vadd.f32 %v144, %v525
  %v527 = vpop.f32.mrb[0].mxu0
  %v528 = vpop.f32.mrb[0].mxu0
  %v529 = vadd.f32 %v144, %v528
  %v530 = vpop.f32.mrb[0].mxu0
  %531 = vmatprep.mubr.bf16.mxu0 0
  %532 = vmatmul.mubr.bf16.gmra.mrb[0].mxu0 %v259
  %v533 = vpop.f32.mrb[0].mxu0
  %v534 = vadd.f32 %v144, %v533
  %v535 = vpop.f32.mrb[0].mxu0
  %v536 = vpop.f32.mrb[0].mxu0
  %v537 = vadd.f32 %v144, %v536
  %v538 = vpop.f32.mrb[0].mxu0
  %539 = vmatprep.mubr.bf16.mxu0 0
  %540 = vmatmul.mubr.bf16.gmra.mrb[0].mxu0 %v262
  %v541 = vpop.f32.mrb[0].mxu0
  %v542 = vadd.f32 %v144, %v541
  %v543 = vpop.f32.mrb[0].mxu0
  %v544 = vpop.f32.mrb[0].mxu0
  %v545 = vadd.f32 %v144, %v544
  %v546 = vpop.f32.mrb[0].mxu0
  %547 = vmatprep.mubr.bf16.mxu0 0
  %548 = vmatmul.mubr.bf16.gmra.mrb[0].mxu0 %v265
  %v549 = vpop.f32.mrb[0].mxu0
  %v550 = vadd.f32 %v144, %v549
  %v551 = vpop.f32.mrb[0].mxu0
  %v552 = vpop.f32.mrb[0].mxu0
  %v553 = vadd.f32 %v144, %v552
  %v554 = vpop.f32.mrb[0].mxu0
  %555 = vdwg.mxu0
  %v556 = vsub.f32 0.0, %v302
  %v557 = vsub.f32 0.0, %v305
  %v558 = vsub.f32 0.0, %v310
  %v559 = vsub.f32 0.0, %v313
  %v560 = vsub.f32 0.0, %v318
  %v561 = vsub.f32 0.0, %v321
  %v562 = vsub.f32 0.0, %v326
  %v563 = vsub.f32 0.0, %v329
  %v564 = vsub.f32 0.0, %v334
  %v565 = vsub.f32 0.0, %v337
  %v566 = vsub.f32 0.0, %v342
  %v567 = vsub.f32 0.0, %v345
  %v568 = vsub.f32 0.0, %v350
  %v569 = vsub.f32 0.0, %v353
  %v570 = vsub.f32 0.0, %v358
  %v571 = vsub.f32 0.0, %v361
  %v572 = vsub.f32 0.0, %v366
  %v573 = vsub.f32 0.0, %v369
  %v574 = vsub.f32 0.0, %v374
  %v575 = vsub.f32 0.0, %v377
  %v576 = vsub.f32 0.0, %v382
  %v577 = vsub.f32 0.0, %v385
  %v578 = vsub.f32 0.0, %v390
  %v579 = vsub.f32 0.0, %v393
  %v580 = vsub.f32 0.0, %v398
  %v581 = vsub.f32 0.0, %v401
  %v582 = vsub.f32 0.0, %v406
  %v583 = vsub.f32 0.0, %v409
  %v584 = vsub.f32 0.0, %v414
  %v585 = vsub.f32 0.0, %v417
  %v586 = vsub.f32 0.0, %v422
  %v587 = vsub.f32 0.0, %v425
  %v588 = vsub.f32 0.0, %v430
  %v589 = vsub.f32 0.0, %v433
  %v590 = vsub.f32 0.0, %v438
  %v591 = vsub.f32 0.0, %v441
  %v592 = vsub.f32 0.0, %v446
  %v593 = vsub.f32 0.0, %v449
  %v594 = vsub.f32 0.0, %v454
  %v595 = vsub.f32 0.0, %v457
  %v596 = vsub.f32 0.0, %v462
  %v597 = vsub.f32 0.0, %v465
  %v598 = vsub.f32 0.0, %v470
  %v599 = vsub.f32 0.0, %v473
  %v600 = vsub.f32 0.0, %v478
  %v601 = vsub.f32 0.0, %v481
  %v602 = vsub.f32 0.0, %v486
  %v603 = vsub.f32 0.0, %v489
  %v604 = vsub.f32 0.0, %v494
  %v605 = vsub.f32 0.0, %v497
  %v606 = vsub.f32 0.0, %v502
  %v607 = vsub.f32 0.0, %v505
  %v608 = vsub.f32 0.0, %v510
  %v609 = vsub.f32 0.0, %v513
  %v610 = vsub.f32 0.0, %v518
  %v611 = vsub.f32 0.0, %v521
  %v612 = vsub.f32 0.0, %v526
  %v613 = vsub.f32 0.0, %v529
  %v614 = vsub.f32 0.0, %v534
  %v615 = vsub.f32 0.0, %v537
  %v616 = vsub.f32 0.0, %v542
  %v617 = vsub.f32 0.0, %v545
  %v618 = vsub.f32 0.0, %v550
  %v619 = vsub.f32 0.0, %v553
  %v620 = vmul.f32 %v556, 1.442695
  %v621 = vpow.pop %v620
  %v622 = vmul.f32 %v557, 1.442695
  %v623 = vpow.pop %v622
  %v624 = vmul.f32 %v558, 1.442695
  %v625 = vpow.pop %v624
  %v626 = vmul.f32 %v559, 1.442695
  %v627 = vpow.pop %v626
  %v628 = vmul.f32 %v560, 1.442695
  %v629 = vpow.pop %v628
  %v630 = vmul.f32 %v561, 1.442695
  %v631 = vpow.pop %v630
  %v632 = vmul.f32 %v562, 1.442695
  %v633 = vpow.pop %v632
  %v634 = vmul.f32 %v563, 1.442695
  %v635 = vpow.pop %v634
  %v636 = vmul.f32 %v564, 1.442695
  %v637 = vpow.pop %v636
  %v638 = vmul.f32 %v565, 1.442695
  %v639 = vpow.pop %v638
  %v640 = vmul.f32 %v566, 1.442695
  %v641 = vpow.pop %v640
  %v642 = vmul.f32 %v567, 1.442695
  %v643 = vpow.pop %v642
  %v644 = vmul.f32 %v568, 1.442695
  %v645 = vpow.pop %v644
  %v646 = vmul.f32 %v569, 1.442695
  %v647 = vpow.pop %v646
  %v648 = vmul.f32 %v570, 1.442695
  %v649 = vpow.pop %v648
  %v650 = vmul.f32 %v571, 1.442695
  %v651 = vpow.pop %v650
  %v652 = vmul.f32 %v572, 1.442695
  %v653 = vpow.pop %v652
  %v654 = vmul.f32 %v573, 1.442695
  %v655 = vpow.pop %v654
  %v656 = vmul.f32 %v574, 1.442695
  %v657 = vpow.pop %v656
  %v658 = vmul.f32 %v575, 1.442695
  %v659 = vpow.pop %v658
  %v660 = vmul.f32 %v576, 1.442695
  %v661 = vpow.pop %v660
  %v662 = vmul.f32 %v577, 1.442695
  %v663 = vpow.pop %v662
  %v664 = vmul.f32 %v578, 1.442695
  %v665 = vpow.pop %v664
  %v666 = vmul.f32 %v579, 1.442695
  %v667 = vpow.pop %v666
  %v668 = vmul.f32 %v580, 1.442695
  %v669 = vpow.pop %v668
  %v670 = vmul.f32 %v581, 1.442695
  %v671 = vpow.pop %v670
  %v672 = vmul.f32 %v582, 1.442695
  %v673 = vpow.pop %v672
  %v674 = vmul.f32 %v583, 1.442695
  %v675 = vpow.pop %v674
  %v676 = vmul.f32 %v584, 1.442695
  %v677 = vpow.pop %v676
  %v678 = vmul.f32 %v585, 1.442695
  %v679 = vpow.pop %v678
  %v680 = vmul.f32 %v586, 1.442695
  %v681 = vpow.pop %v680
  %v682 = vmul.f32 %v587, 1.442695
  %v683 = vpow.pop %v682
  %v684 = vmul.f32 %v588, 1.442695
  %v685 = vpow.pop %v684
  %v686 = vmul.f32 %v589, 1.442695
  %v687 = vpow.pop %v686
  %v688 = vmul.f32 %v590, 1.442695
  %v689 = vpow.pop %v688
  %v690 = vmul.f32 %v591, 1.442695
  %v691 = vpow.pop %v690
  %v692 = vmul.f32 %v592, 1.442695
  %v693 = vpow.pop %v692
  %v694 = vmul.f32 %v593, 1.442695
  %v695 = vpow.pop %v694
  %v696 = vmul.f32 %v594, 1.442695
  %v697 = vpow.pop %v696
  %v698 = vmul.f32 %v595, 1.442695
  %v699 = vpow.pop %v698
  %v700 = vmul.f32 %v596, 1.442695
  %v701 = vpow.pop %v700
  %v702 = vmul.f32 %v597, 1.442695
  %v703 = vpow.pop %v702
  %v704 = vmul.f32 %v598, 1.442695
  %v705 = vpow.pop %v704
  %v706 = vmul.f32 %v599, 1.442695
  %v707 = vpow.pop %v706
  %v708 = vmul.f32 %v600, 1.442695
  %v709 = vpow.pop %v708
  %v710 = vmul.f32 %v601, 1.442695
  %v711 = vpow.pop %v710
  %v712 = vmul.f32 %v602, 1.442695
  %v713 = vpow.pop %v712
  %v714 = vmul.f32 %v603, 1.442695
  %v715 = vpow.pop %v714
  %v716 = vmul.f32 %v604, 1.442695
  %v717 = vpow.pop %v716
  %v718 = vmul.f32 %v605, 1.442695
  %v719 = vpow.pop %v718
  %v720 = vmul.f32 %v606, 1.442695
  %v721 = vpow.pop %v720
  %v722 = vmul.f32 %v607, 1.442695
  %v723 = vpow.pop %v722
  %v724 = vmul.f32 %v608, 1.442695
  %v725 = vpow.pop %v724
  %v726 = vmul.f32 %v609, 1.442695
  %v727 = vpow.pop %v726
  %v728 = vmul.f32 %v610, 1.442695
  %v729 = vpow.pop %v728
  %v730 = vmul.f32 %v611, 1.442695
  %v731 = vpow.pop %v730
  %v732 = vmul.f32 %v612, 1.442695
  %v733 = vpow.pop %v732
  %v734 = vmul.f32 %v613, 1.442695
  %v735 = vpow.pop %v734
  %v736 = vmul.f32 %v614, 1.442695
  %v737 = vpow.pop %v736
  %v738 = vmul.f32 %v615, 1.442695
  %v739 = vpow.pop %v738
  %v740 = vmul.f32 %v616, 1.442695
  %v741 = vpow.pop %v740
  %v742 = vmul.f32 %v617, 1.442695
  %v743 = vpow.pop %v742
  %v744 = vmul.f32 %v618, 1.442695
  %v745 = vpow.pop %v744
  %v746 = vmul.f32 %v619, 1.442695
  %v747 = vpow.pop %v746
  %v748 = vadd.f32 %v621, 1.0
  %v749 = vadd.f32 %v623, 1.0
  %v750 = vadd.f32 %v625, 1.0
  %v751 = vadd.f32 %v627, 1.0
  %v752 = vadd.f32 %v629, 1.0
  %v753 = vadd.f32 %v631, 1.0
  %v754 = vadd.f32 %v633, 1.0
  %v755 = vadd.f32 %v635, 1.0
  %v756 = vadd.f32 %v637, 1.0
  %v757 = vadd.f32 %v639, 1.0
  %v758 = vadd.f32 %v641, 1.0
  %v759 = vadd.f32 %v643, 1.0
  %v760 = vadd.f32 %v645, 1.0
  %v761 = vadd.f32 %v647, 1.0
  %v762 = vadd.f32 %v649, 1.0
  %v763 = vadd.f32 %v651, 1.0
  %v764 = vadd.f32 %v653, 1.0
  %v765 = vadd.f32 %v655, 1.0
  %v766 = vadd.f32 %v657, 1.0
  %v767 = vadd.f32 %v659, 1.0
  %v768 = vadd.f32 %v661, 1.0
  %v769 = vadd.f32 %v663, 1.0
  %v770 = vadd.f32 %v665, 1.0
  %v771 = vadd.f32 %v667, 1.0
  %v772 = vadd.f32 %v669, 1.0
  %v773 = vadd.f32 %v671, 1.0
  %v774 = vadd.f32 %v673, 1.0
  %v775 = vadd.f32 %v675, 1.0
  %v776 = vadd.f32 %v677, 1.0
  %v777 = vadd.f32 %v679, 1.0
  %v778 = vadd.f32 %v681, 1.0
  %v779 = vadd.f32 %v683, 1.0
  %v780 = vadd.f32 %v685, 1.0
  %v781 = vadd.f32 %v687, 1.0
  %v782 = vadd.f32 %v689, 1.0
  %v783 = vadd.f32 %v691, 1.0
  %v784 = vadd.f32 %v693, 1.0
  %v785 = vadd.f32 %v695, 1.0
  %v786 = vadd.f32 %v697, 1.0
  %v787 = vadd.f32 %v699, 1.0
  %v788 = vadd.f32 %v701, 1.0
  %v789 = vadd.f32 %v703, 1.0
  %v790 = vadd.f32 %v705, 1.0
  %v791 = vadd.f32 %v707, 1.0
  %v792 = vadd.f32 %v709, 1.0
  %v793 = vadd.f32 %v711, 1.0
  %v794 = vadd.f32 %v713, 1.0
  %v795 = vadd.f32 %v715, 1.0
  %v796 = vadd.f32 %v717, 1.0
  %v797 = vadd.f32 %v719, 1.0
  %v798 = vadd.f32 %v721, 1.0
  %v799 = vadd.f32 %v723, 1.0
  %v800 = vadd.f32 %v725, 1.0
  %v801 = vadd.f32 %v727, 1.0
  %v802 = vadd.f32 %v729, 1.0
  %v803 = vadd.f32 %v731, 1.0
  %v804 = vadd.f32 %v733, 1.0
  %v805 = vadd.f32 %v735, 1.0
  %v806 = vadd.f32 %v737, 1.0
  %v807 = vadd.f32 %v739, 1.0
  %v808 = vadd.f32 %v741, 1.0
  %v809 = vadd.f32 %v743, 1.0
  %v810 = vadd.f32 %v745, 1.0
  %v811 = vadd.f32 %v747, 1.0
  %v812 = vrcp.pop %v748
  %v813 = vrcp.pop %v749
  %v814 = vrcp.pop %v750
  %v815 = vrcp.pop %v751
  %v816 = vrcp.pop %v752
  %v817 = vrcp.pop %v753
  %v818 = vrcp.pop %v754
  %v819 = vrcp.pop %v755
  %v820 = vrcp.pop %v756
  %v821 = vrcp.pop %v757
  %v822 = vrcp.pop %v758
  %v823 = vrcp.pop %v759
  %v824 = vrcp.pop %v760
  %v825 = vrcp.pop %v761
  %v826 = vrcp.pop %v762
  %v827 = vrcp.pop %v763
  %v828 = vrcp.pop %v764
  %v829 = vrcp.pop %v765
  %v830 = vrcp.pop %v766
  %v831 = vrcp.pop %v767
  %v832 = vrcp.pop %v768
  %v833 = vrcp.pop %v769
  %v834 = vrcp.pop %v770
  %v835 = vrcp.pop %v771
  %v836 = vrcp.pop %v772
  %v837 = vrcp.pop %v773
  %v838 = vrcp.pop %v774
  %v839 = vrcp.pop %v775
  %v840 = vrcp.pop %v776
  %v841 = vrcp.pop %v777
  %v842 = vrcp.pop %v778
  %v843 = vrcp.pop %v779
  %v844 = vrcp.pop %v780
  %v845 = vrcp.pop %v781
  %v846 = vrcp.pop %v782
  %v847 = vrcp.pop %v783
  %v848 = vrcp.pop %v784
  %v849 = vrcp.pop %v785
  %v850 = vrcp.pop %v786
  %v851 = vrcp.pop %v787
  %v852 = vrcp.pop %v788
  %v853 = vrcp.pop %v789
  %v854 = vrcp.pop %v790
  %v855 = vrcp.pop %v791
  %v856 = vrcp.pop %v792
  %v857 = vrcp.pop %v793
  %v858 = vrcp.pop %v794
  %v859 = vrcp.pop %v795
  %v860 = vrcp.pop %v796
  %v861 = vrcp.pop %v797
  %v862 = vrcp.pop %v798
  %v863 = vrcp.pop %v799
  %v864 = vrcp.pop %v800
  %v865 = vrcp.pop %v801
  %v866 = vrcp.pop %v802
  %v867 = vrcp.pop %v803
  %v868 = vrcp.pop %v804
  %v869 = vrcp.pop %v805
  %v870 = vrcp.pop %v806
  %v871 = vrcp.pop %v807
  %v872 = vrcp.pop %v808
  %v873 = vrcp.pop %v809
  %v874 = vrcp.pop %v810
  %v875 = vrcp.pop %v811
  %v876 = vld [vmem:[%s3] sm:$0xf]
  %v877 = vld [vmem:[%s3 + $0x4] sm:$0xf]
  %v878 = vld [vmem:[%s3 + $0x8] sm:$0xf]
  %v879 = vld [vmem:[%s3 + $0xc] sm:$0xf]
  %v880 = vld [vmem:[%s4] sm:$0x1]
  %v881 = vpack.c.bf16 %v813, %v812
  %v882 = vpack.c.bf16 %v815, %v814
  %v883 = vpack.c.bf16 %v817, %v816
  %v884 = vpack.c.bf16 %v819, %v818
  %v885 = vpack.c.bf16 %v821, %v820
  %v886 = vpack.c.bf16 %v823, %v822
  %v887 = vpack.c.bf16 %v825, %v824
  %v888 = vpack.c.bf16 %v827, %v826
  %v889 = vpack.c.bf16 %v829, %v828
  %v890 = vpack.c.bf16 %v831, %v830
  %v891 = vpack.c.bf16 %v833, %v832
  %v892 = vpack.c.bf16 %v835, %v834
  %v893 = vpack.c.bf16 %v837, %v836
  %v894 = vpack.c.bf16 %v839, %v838
  %v895 = vpack.c.bf16 %v841, %v840
  %v896 = vpack.c.bf16 %v843, %v842
  %v897 = vpack.c.bf16 %v845, %v844
  %v898 = vpack.c.bf16 %v847, %v846
  %v899 = vpack.c.bf16 %v849, %v848
  %v900 = vpack.c.bf16 %v851, %v850
  %v901 = vpack.c.bf16 %v853, %v852
  %v902 = vpack.c.bf16 %v855, %v854
  %v903 = vpack.c.bf16 %v857, %v856
  %v904 = vpack.c.bf16 %v859, %v858
  %v905 = vpack.c.bf16 %v861, %v860
  %v906 = vpack.c.bf16 %v863, %v862
  %v907 = vpack.c.bf16 %v865, %v864
  %v908 = vpack.c.bf16 %v867, %v866
  %v909 = vpack.c.bf16 %v869, %v868
  %v910 = vpack.c.bf16 %v871, %v870
  %v911 = vpack.c.bf16 %v873, %v872
  %v912 = vpack.c.bf16 %v875, %v874
  %v914 = vlaneseq
  %v915 = vshrl.u32 %v914, 7
  %v916 = vsub.s32 0, %v915
  %v917 = vrot.slane %v880, %v916
  %v923 = vunpack.c.l.b16 %v876
  %v924 = vunpack.c.l.b16 %v877
  %v925 = vunpack.c.l.b16 %v878
  %v926 = vunpack.c.l.b16 %v879
  %v927 = vpack.c.b16 %v924, %v923
  %v928 = vpack.c.b16 %v926, %v925
  %vm931 = vcmask 261120
  %v933 = vsel %vm931, %v881, 0
  %v936 = vsel %vm931, %v882, 0
  %v939 = vsel %vm931, %v883, 0
  %v942 = vsel %vm931, %v884, 0
  %v945 = vsel %vm931, %v885, 0
  %v948 = vsel %vm931, %v886, 0
  %v951 = vsel %vm931, %v887, 0
  %v954 = vsel %vm931, %v888, 0
  %v957 = vsel %vm931, %v889, 0
  %v960 = vsel %vm931, %v890, 0
  %v963 = vsel %vm931, %v891, 0
  %v966 = vsel %vm931, %v892, 0
  %v969 = vsel %vm931, %v893, 0
  %v972 = vsel %vm931, %v894, 0
  %v975 = vsel %vm931, %v895, 0
  %v978 = vsel %vm931, %v896, 0
  %v981 = vsel %vm931, %v897, 0
  %v984 = vsel %vm931, %v898, 0
  %v987 = vsel %vm931, %v899, 0
  %v990 = vsel %vm931, %v900, 0
  %v993 = vsel %vm931, %v901, 0
  %v996 = vsel %vm931, %v902, 0
  %v999 = vsel %vm931, %v903, 0
  %v1002 = vsel %vm931, %v904, 0
  %v1005 = vsel %vm931, %v905, 0
  %v1008 = vsel %vm931, %v906, 0
  %v1011 = vsel %vm931, %v907, 0
  %v1014 = vsel %vm931, %v908, 0
  %v1017 = vsel %vm931, %v909, 0
  %v1020 = vsel %vm931, %v910, 0
  %v1023 = vsel %vm931, %v911, 0
  %v1026 = vsel %vm931, %v912, 0
  %1028 = vmatprep.subr.bf16.mxu0 0
  %1029 = vmatpush1.bf16.msra.mxu0 %v927
  %1030 = vmatprep.subr.bf16.mxu0 0
  %1031 = vmatpush1.bf16.msra.mxu0 %v928
  %1032 = vmatprep.subr.bf16.mxu0 0
  %1033 = vmatpush1.bf16.msra.mxu0 0
  %1034 = vmatprep.subr.bf16.mxu0 0
  %1035 = vmatpush1.bf16.msra.mxu0 0
  %1036 = vmatprep.subr.bf16.mxu0 0
  %1037 = vmatpush1.bf16.msra.mxu0 0
  %1038 = vmatprep.subr.bf16.mxu0 0
  %1039 = vmatpush1.bf16.msra.mxu0 0
  %1040 = vmatprep.subr.bf16.mxu0 0
  %1041 = vmatpush1.bf16.msra.mxu0 0
  %1042 = vmatprep.subr.bf16.mxu0 0
  %1043 = vmatpush1.bf16.msra.mxu0 0
  %1044 = vmatprep.subr.bf16.mxu0 0
  %1045 = vmatpush1.bf16.msra.mxu0 0
  %1046 = vmatprep.subr.bf16.mxu0 0
  %1047 = vmatpush1.bf16.msra.mxu0 0
  %1048 = vmatprep.subr.bf16.mxu0 0
  %1049 = vmatpush1.bf16.msra.mxu0 0
  %1050 = vmatprep.subr.bf16.mxu0 0
  %1051 = vmatpush1.bf16.msra.mxu0 0
  %1052 = vmatprep.subr.bf16.mxu0 0
  %1053 = vmatpush1.bf16.msra.mxu0 0
  %1054 = vmatprep.subr.bf16.mxu0 0
  %1055 = vmatpush1.bf16.msra.mxu0 0
  %1056 = vmatprep.subr.bf16.mxu0 0
  %1057 = vmatpush1.bf16.msra.mxu0 0
  %1058 = vmatprep.subr.bf16.mxu0 0
  %1059 = vmatpush1.bf16.msra.mxu0 0
  %1060 = vmatprep.mubr.bf16.mxu0 0
  %1061 = vmatmul.mubr.bf16.gmra.mrb[0].mxu0 %v933
  %v1062 = vpop.f32.mrb[0].mxu0
  %v1063 = vadd.f32 %v917, %v1062
  %v1064 = vpop.f32.mrb[0].mxu0
  %v1065 = vpop.f32.mrb[0].mxu0
  %v1066 = vadd.f32 %v917, %v1065
  %v1067 = vpop.f32.mrb[0].mxu0
  %1068 = vmatprep.mubr.bf16.mxu0 0
  %1069 = vmatmul.mubr.bf16.gmra.mrb[0].mxu0 %v936
  %v1070 = vpop.f32.mrb[0].mxu0
  %v1071 = vadd.f32 %v917, %v1070
  %v1072 = vpop.f32.mrb[0].mxu0
  %v1073 = vpop.f32.mrb[0].mxu0
  %v1074 = vadd.f32 %v917, %v1073
  %v1075 = vpop.f32.mrb[0].mxu0
  %1076 = vmatprep.mubr.bf16.mxu0 0
  %1077 = vmatmul.mubr.bf16.gmra.mrb[0].mxu0 %v939
  %v1078 = vpop.f32.mrb[0].mxu0
  %v1079 = vadd.f32 %v917, %v1078
  %v1080 = vpop.f32.mrb[0].mxu0
  %v1081 = vpop.f32.mrb[0].mxu0
  %v1082 = vadd.f32 %v917, %v1081
  %v1083 = vpop.f32.mrb[0].mxu0
  %1084 = vmatprep.mubr.bf16.mxu0 0
  %1085 = vmatmul.mubr.bf16.gmra.mrb[0].mxu0 %v942
  %v1086 = vpop.f32.mrb[0].mxu0
  %v1087 = vadd.f32 %v917, %v1086
  %v1088 = vpop.f32.mrb[0].mxu0
  %v1089 = vpop.f32.mrb[0].mxu0
  %v1090 = vadd.f32 %v917, %v1089
  %v1091 = vpop.f32.mrb[0].mxu0
  %1092 = vmatprep.mubr.bf16.mxu0 0
  %1093 = vmatmul.mubr.bf16.gmra.mrb[0].mxu0 %v945
  %v1094 = vpop.f32.mrb[0].mxu0
  %v1095 = vadd.f32 %v917, %v1094
  %v1096 = vpop.f32.mrb[0].mxu0
  %v1097 = vpop.f32.mrb[0].mxu0
  %v1098 = vadd.f32 %v917, %v1097
  %v1099 = vpop.f32.mrb[0].mxu0
  %1100 = vmatprep.mubr.bf16.mxu0 0
  %1101 = vmatmul.mubr.bf16.gmra.mrb[0].mxu0 %v948
  %v1102 = vpop.f32.mrb[0].mxu0
  %v1103 = vadd.f32 %v917, %v1102
  %v1104 = vpop.f32.mrb[0].mxu0
  %v1105 = vpop.f32.mrb[0].mxu0
  %v1106 = vadd.f32 %v917, %v1105
  %v1107 = vpop.f32.mrb[0].mxu0
  %1108 = vmatprep.mubr.bf16.mxu0 0
  %1109 = vmatmul.mubr.bf16.gmra.mrb[0].mxu0 %v951
  %v1110 = vpop.f32.mrb[0].mxu0
  %v1111 = vadd.f32 %v917, %v1110
  %v1112 = vpop.f32.mrb[0].mxu0
  %v1113 = vpop.f32.mrb[0].mxu0
  %v1114 = vadd.f32 %v917, %v1113
  %v1115 = vpop.f32.mrb[0].mxu0
  %1116 = vmatprep.mubr.bf16.mxu0 0
  %1117 = vmatmul.mubr.bf16.gmra.mrb[0].mxu0 %v954
  %v1118 = vpop.f32.mrb[0].mxu0
  %v1119 = vadd.f32 %v917, %v1118
  %v1120 = vpop.f32.mrb[0].mxu0
  %v1121 = vpop.f32.mrb[0].mxu0
  %v1122 = vadd.f32 %v917, %v1121
  %v1123 = vpop.f32.mrb[0].mxu0
  %1124 = vmatprep.mubr.bf16.mxu0 0
  %1125 = vmatmul.mubr.bf16.gmra.mrb[0].mxu0 %v957
  %v1126 = vpop.f32.mrb[0].mxu0
  %v1127 = vadd.f32 %v917, %v1126
  %v1128 = vpop.f32.mrb[0].mxu0
  %v1129 = vpop.f32.mrb[0].mxu0
  %v1130 = vadd.f32 %v917, %v1129
  %v1131 = vpop.f32.mrb[0].mxu0
  %1132 = vmatprep.mubr.bf16.mxu0 0
  %1133 = vmatmul.mubr.bf16.gmra.mrb[0].mxu0 %v960
  %v1134 = vpop.f32.mrb[0].mxu0
  %v1135 = vadd.f32 %v917, %v1134
  %v1136 = vpop.f32.mrb[0].mxu0
  %v1137 = vpop.f32.mrb[0].mxu0
  %v1138 = vadd.f32 %v917, %v1137
  %v1139 = vpop.f32.mrb[0].mxu0
  %1140 = vmatprep.mubr.bf16.mxu0 0
  %1141 = vmatmul.mubr.bf16.gmra.mrb[0].mxu0 %v963
  %v1142 = vpop.f32.mrb[0].mxu0
  %v1143 = vadd.f32 %v917, %v1142
  %v1144 = vpop.f32.mrb[0].mxu0
  %v1145 = vpop.f32.mrb[0].mxu0
  %v1146 = vadd.f32 %v917, %v1145
  %v1147 = vpop.f32.mrb[0].mxu0
  %1148 = vmatprep.mubr.bf16.mxu0 0
  %1149 = vmatmul.mubr.bf16.gmra.mrb[0].mxu0 %v966
  %v1150 = vpop.f32.mrb[0].mxu0
  %v1151 = vadd.f32 %v917, %v1150
  %v1152 = vpop.f32.mrb[0].mxu0
  %v1153 = vpop.f32.mrb[0].mxu0
  %v1154 = vadd.f32 %v917, %v1153
  %v1155 = vpop.f32.mrb[0].mxu0
  %1156 = vmatprep.mubr.bf16.mxu0 0
  %1157 = vmatmul.mubr.bf16.gmra.mrb[0].mxu0 %v969
  %v1158 = vpop.f32.mrb[0].mxu0
  %v1159 = vadd.f32 %v917, %v1158
  %v1160 = vpop.f32.mrb[0].mxu0
  %v1161 = vpop.f32.mrb[0].mxu0
  %v1162 = vadd.f32 %v917, %v1161
  %v1163 = vpop.f32.mrb[0].mxu0
  %1164 = vmatprep.mubr.bf16.mxu0 0
  %1165 = vmatmul.mubr.bf16.gmra.mrb[0].mxu0 %v972
  %v1166 = vpop.f32.mrb[0].mxu0
  %v1167 = vadd.f32 %v917, %v1166
  %v1168 = vpop.f32.mrb[0].mxu0
  %v1169 = vpop.f32.mrb[0].mxu0
  %v1170 = vadd.f32 %v917, %v1169
  %v1171 = vpop.f32.mrb[0].mxu0
  %1172 = vmatprep.mubr.bf16.mxu0 0
  %1173 = vmatmul.mubr.bf16.gmra.mrb[0].mxu0 %v975
  %v1174 = vpop.f32.mrb[0].mxu0
  %v1175 = vadd.f32 %v917, %v1174
  %v1176 = vpop.f32.mrb[0].mxu0
  %v1177 = vpop.f32.mrb[0].mxu0
  %v1178 = vadd.f32 %v917, %v1177
  %v1179 = vpop.f32.mrb[0].mxu0
  %1180 = vmatprep.mubr.bf16.mxu0 0
  %1181 = vmatmul.mubr.bf16.gmra.mrb[0].mxu0 %v978
  %v1182 = vpop.f32.mrb[0].mxu0
  %v1183 = vadd.f32 %v917, %v1182
  %v1184 = vpop.f32.mrb[0].mxu0
  %v1185 = vpop.f32.mrb[0].mxu0
  %v1186 = vadd.f32 %v917, %v1185
  %v1187 = vpop.f32.mrb[0].mxu0
  %1188 = vmatprep.mubr.bf16.mxu0 0
  %1189 = vmatmul.mubr.bf16.gmra.mrb[0].mxu0 %v981
  %v1190 = vpop.f32.mrb[0].mxu0
  %v1191 = vadd.f32 %v917, %v1190
  %v1192 = vpop.f32.mrb[0].mxu0
  %v1193 = vpop.f32.mrb[0].mxu0
  %v1194 = vadd.f32 %v917, %v1193
  %v1195 = vpop.f32.mrb[0].mxu0
  %1196 = vmatprep.mubr.bf16.mxu0 0
  %1197 = vmatmul.mubr.bf16.gmra.mrb[0].mxu0 %v984
  %v1198 = vpop.f32.mrb[0].mxu0
  %v1199 = vadd.f32 %v917, %v1198
  %v1200 = vpop.f32.mrb[0].mxu0
  %v1201 = vpop.f32.mrb[0].mxu0
  %v1202 = vadd.f32 %v917, %v1201
  %v1203 = vpop.f32.mrb[0].mxu0
  %1204 = vmatprep.mubr.bf16.mxu0 0
  %1205 = vmatmul.mubr.bf16.gmra.mrb[0].mxu0 %v987
  %v1206 = vpop.f32.mrb[0].mxu0
  %v1207 = vadd.f32 %v917, %v1206
  %v1208 = vpop.f32.mrb[0].mxu0
  %v1209 = vpop.f32.mrb[0].mxu0
  %v1210 = vadd.f32 %v917, %v1209
  %v1211 = vpop.f32.mrb[0].mxu0
  %1212 = vmatprep.mubr.bf16.mxu0 0
  %1213 = vmatmul.mubr.bf16.gmra.mrb[0].mxu0 %v990
  %v1214 = vpop.f32.mrb[0].mxu0
  %v1215 = vadd.f32 %v917, %v1214
  %v1216 = vpop.f32.mrb[0].mxu0
  %v1217 = vpop.f32.mrb[0].mxu0
  %v1218 = vadd.f32 %v917, %v1217
  %v1219 = vpop.f32.mrb[0].mxu0
  %1220 = vmatprep.mubr.bf16.mxu0 0
  %1221 = vmatmul.mubr.bf16.gmra.mrb[0].mxu0 %v993
  %v1222 = vpop.f32.mrb[0].mxu0
  %v1223 = vadd.f32 %v917, %v1222
  %v1224 = vpop.f32.mrb[0].mxu0
  %v1225 = vpop.f32.mrb[0].mxu0
  %v1226 = vadd.f32 %v917, %v1225
  %v1227 = vpop.f32.mrb[0].mxu0
  %1228 = vmatprep.mubr.bf16.mxu0 0
  %1229 = vmatmul.mubr.bf16.gmra.mrb[0].mxu0 %v996
  %v1230 = vpop.f32.mrb[0].mxu0
  %v1231 = vadd.f32 %v917, %v1230
  %v1232 = vpop.f32.mrb[0].mxu0
  %v1233 = vpop.f32.mrb[0].mxu0
  %v1234 = vadd.f32 %v917, %v1233
  %v1235 = vpop.f32.mrb[0].mxu0
  %1236 = vmatprep.mubr.bf16.mxu0 0
  %1237 = vmatmul.mubr.bf16.gmra.mrb[0].mxu0 %v999
  %v1238 = vpop.f32.mrb[0].mxu0
  %v1239 = vadd.f32 %v917, %v1238
  %v1240 = vpop.f32.mrb[0].mxu0
  %v1241 = vpop.f32.mrb[0].mxu0
  %v1242 = vadd.f32 %v917, %v1241
  %v1243 = vpop.f32.mrb[0].mxu0
  %1244 = vmatprep.mubr.bf16.mxu0 0
  %1245 = vmatmul.mubr.bf16.gmra.mrb[0].mxu0 %v1002
  %v1246 = vpop.f32.mrb[0].mxu0
  %v1247 = vadd.f32 %v917, %v1246
  %v1248 = vpop.f32.mrb[0].mxu0
  %v1249 = vpop.f32.mrb[0].mxu0
  %v1250 = vadd.f32 %v917, %v1249
  %v1251 = vpop.f32.mrb[0].mxu0
  %1252 = vmatprep.mubr.bf16.mxu0 0
  %1253 = vmatmul.mubr.bf16.gmra.mrb[0].mxu0 %v1005
  %v1254 = vpop.f32.mrb[0].mxu0
  %v1255 = vadd.f32 %v917, %v1254
  %v1256 = vpop.f32.mrb[0].mxu0
  %v1257 = vpop.f32.mrb[0].mxu0
  %v1258 = vadd.f32 %v917, %v1257
  %v1259 = vpop.f32.mrb[0].mxu0
  %1260 = vmatprep.mubr.bf16.mxu0 0
  %1261 = vmatmul.mubr.bf16.gmra.mrb[0].mxu0 %v1008
  %v1262 = vpop.f32.mrb[0].mxu0
  %v1263 = vadd.f32 %v917, %v1262
  %v1264 = vpop.f32.mrb[0].mxu0
  %v1265 = vpop.f32.mrb[0].mxu0
  %v1266 = vadd.f32 %v917, %v1265
  %v1267 = vpop.f32.mrb[0].mxu0
  %1268 = vmatprep.mubr.bf16.mxu0 0
  %1269 = vmatmul.mubr.bf16.gmra.mrb[0].mxu0 %v1011
  %v1270 = vpop.f32.mrb[0].mxu0
  %v1271 = vadd.f32 %v917, %v1270
  %v1272 = vpop.f32.mrb[0].mxu0
  %v1273 = vpop.f32.mrb[0].mxu0
  %v1274 = vadd.f32 %v917, %v1273
  %v1275 = vpop.f32.mrb[0].mxu0
  %1276 = vmatprep.mubr.bf16.mxu0 0
  %1277 = vmatmul.mubr.bf16.gmra.mrb[0].mxu0 %v1014
  %v1278 = vpop.f32.mrb[0].mxu0
  %v1279 = vadd.f32 %v917, %v1278
  %v1280 = vpop.f32.mrb[0].mxu0
  %v1281 = vpop.f32.mrb[0].mxu0
  %v1282 = vadd.f32 %v917, %v1281
  %v1283 = vpop.f32.mrb[0].mxu0
  %1284 = vmatprep.mubr.bf16.mxu0 0
  %1285 = vmatmul.mubr.bf16.gmra.mrb[0].mxu0 %v1017
  %v1286 = vpop.f32.mrb[0].mxu0
  %v1287 = vadd.f32 %v917, %v1286
  %v1288 = vpop.f32.mrb[0].mxu0
  %v1289 = vpop.f32.mrb[0].mxu0
  %v1290 = vadd.f32 %v917, %v1289
  %v1291 = vpop.f32.mrb[0].mxu0
  %1292 = vmatprep.mubr.bf16.mxu0 0
  %1293 = vmatmul.mubr.bf16.gmra.mrb[0].mxu0 %v1020
  %v1294 = vpop.f32.mrb[0].mxu0
  %v1295 = vadd.f32 %v917, %v1294
  %v1296 = vpop.f32.mrb[0].mxu0
  %v1297 = vpop.f32.mrb[0].mxu0
  %v1298 = vadd.f32 %v917, %v1297
  %v1299 = vpop.f32.mrb[0].mxu0
  %1300 = vmatprep.mubr.bf16.mxu0 0
  %1301 = vmatmul.mubr.bf16.gmra.mrb[0].mxu0 %v1023
  %v1302 = vpop.f32.mrb[0].mxu0
  %v1303 = vadd.f32 %v917, %v1302
  %v1304 = vpop.f32.mrb[0].mxu0
  %v1305 = vpop.f32.mrb[0].mxu0
  %v1306 = vadd.f32 %v917, %v1305
  %v1307 = vpop.f32.mrb[0].mxu0
  %1308 = vmatprep.mubr.bf16.mxu0 0
  %1309 = vmatmul.mubr.bf16.gmra.mrb[0].mxu0 %v1026
  %v1310 = vpop.f32.mrb[0].mxu0
  %v1311 = vadd.f32 %v917, %v1310
  %v1312 = vpop.f32.mrb[0].mxu0
  %v1313 = vpop.f32.mrb[0].mxu0
  %v1314 = vadd.f32 %v917, %v1313
  %v1315 = vpop.f32.mrb[0].mxu0
  %1316 = vdwg.mxu0
  %v1317 = vsub.f32 0.0, %v1063
  %v1318 = vsub.f32 0.0, %v1066
  %v1319 = vsub.f32 0.0, %v1071
  %v1320 = vsub.f32 0.0, %v1074
  %v1321 = vsub.f32 0.0, %v1079
  %v1322 = vsub.f32 0.0, %v1082
  %v1323 = vsub.f32 0.0, %v1087
  %v1324 = vsub.f32 0.0, %v1090
  %v1325 = vsub.f32 0.0, %v1095
  %v1326 = vsub.f32 0.0, %v1098
  %v1327 = vsub.f32 0.0, %v1103
  %v1328 = vsub.f32 0.0, %v1106
  %v1329 = vsub.f32 0.0, %v1111
  %v1330 = vsub.f32 0.0, %v1114
  %v1331 = vsub.f32 0.0, %v1119
  %v1332 = vsub.f32 0.0, %v1122
  %v1333 = vsub.f32 0.0, %v1127
  %v1334 = vsub.f32 0.0, %v1130
  %v1335 = vsub.f32 0.0, %v1135
  %v1336 = vsub.f32 0.0, %v1138
  %v1337 = vsub.f32 0.0, %v1143
  %v1338 = vsub.f32 0.0, %v1146
  %v1339 = vsub.f32 0.0, %v1151
  %v1340 = vsub.f32 0.0, %v1154
  %v1341 = vsub.f32 0.0, %v1159
  %v1342 = vsub.f32 0.0, %v1162
  %v1343 = vsub.f32 0.0, %v1167
  %v1344 = vsub.f32 0.0, %v1170
  %v1345 = vsub.f32 0.0, %v1175
  %v1346 = vsub.f32 0.0, %v1178
  %v1347 = vsub.f32 0.0, %v1183
  %v1348 = vsub.f32 0.0, %v1186
  %v1349 = vsub.f32 0.0, %v1191
  %v1350 = vsub.f32 0.0, %v1194
  %v1351 = vsub.f32 0.0, %v1199
  %v1352 = vsub.f32 0.0, %v1202
  %v1353 = vsub.f32 0.0, %v1207
  %v1354 = vsub.f32 0.0, %v1210
  %v1355 = vsub.f32 0.0, %v1215
  %v1356 = vsub.f32 0.0, %v1218
  %v1357 = vsub.f32 0.0, %v1223
  %v1358 = vsub.f32 0.0, %v1226
  %v1359 = vsub.f32 0.0, %v1231
  %v1360 = vsub.f32 0.0, %v1234
  %v1361 = vsub.f32 0.0, %v1239
  %v1362 = vsub.f32 0.0, %v1242
  %v1363 = vsub.f32 0.0, %v1247
  %v1364 = vsub.f32 0.0, %v1250
  %v1365 = vsub.f32 0.0, %v1255
  %v1366 = vsub.f32 0.0, %v1258
  %v1367 = vsub.f32 0.0, %v1263
  %v1368 = vsub.f32 0.0, %v1266
  %v1369 = vsub.f32 0.0, %v1271
  %v1370 = vsub.f32 0.0, %v1274
  %v1371 = vsub.f32 0.0, %v1279
  %v1372 = vsub.f32 0.0, %v1282
  %v1373 = vsub.f32 0.0, %v1287
  %v1374 = vsub.f32 0.0, %v1290
  %v1375 = vsub.f32 0.0, %v1295
  %v1376 = vsub.f32 0.0, %v1298
  %v1377 = vsub.f32 0.0, %v1303
  %v1378 = vsub.f32 0.0, %v1306
  %v1379 = vsub.f32 0.0, %v1311
  %v1380 = vsub.f32 0.0, %v1314
  %v1381 = vmul.f32 %v1317, 1.442695
  %v1382 = vpow.pop %v1381
  %v1383 = vmul.f32 %v1318, 1.442695
  %v1384 = vpow.pop %v1383
  %v1385 = vmul.f32 %v1319, 1.442695
  %v1386 = vpow.pop %v1385
  %v1387 = vmul.f32 %v1320, 1.442695
  %v1388 = vpow.pop %v1387
  %v1389 = vmul.f32 %v1321, 1.442695
  %v1390 = vpow.pop %v1389
  %v1391 = vmul.f32 %v1322, 1.442695
  %v1392 = vpow.pop %v1391
  %v1393 = vmul.f32 %v1323, 1.442695
  %v1394 = vpow.pop %v1393
  %v1395 = vmul.f32 %v1324, 1.442695
  %v1396 = vpow.pop %v1395
  %v1397 = vmul.f32 %v1325, 1.442695
  %v1398 = vpow.pop %v1397
  %v1399 = vmul.f32 %v1326, 1.442695
  %v1400 = vpow.pop %v1399
  %v1401 = vmul.f32 %v1327, 1.442695
  %v1402 = vpow.pop %v1401
  %v1403 = vmul.f32 %v1328, 1.442695
  %v1404 = vpow.pop %v1403
  %v1405 = vmul.f32 %v1329, 1.442695
  %v1406 = vpow.pop %v1405
  %v1407 = vmul.f32 %v1330, 1.442695
  %v1408 = vpow.pop %v1407
  %v1409 = vmul.f32 %v1331, 1.442695
  %v1410 = vpow.pop %v1409
  %v1411 = vmul.f32 %v1332, 1.442695
  %v1412 = vpow.pop %v1411
  %v1413 = vmul.f32 %v1333, 1.442695
  %v1414 = vpow.pop %v1413
  %v1415 = vmul.f32 %v1334, 1.442695
  %v1416 = vpow.pop %v1415
  %v1417 = vmul.f32 %v1335, 1.442695
  %v1418 = vpow.pop %v1417
  %v1419 = vmul.f32 %v1336, 1.442695
  %v1420 = vpow.pop %v1419
  %v1421 = vmul.f32 %v1337, 1.442695
  %v1422 = vpow.pop %v1421
  %v1423 = vmul.f32 %v1338, 1.442695
  %v1424 = vpow.pop %v1423
  %v1425 = vmul.f32 %v1339, 1.442695
  %v1426 = vpow.pop %v1425
  %v1427 = vmul.f32 %v1340, 1.442695
  %v1428 = vpow.pop %v1427
  %v1429 = vmul.f32 %v1341, 1.442695
  %v1430 = vpow.pop %v1429
  %v1431 = vmul.f32 %v1342, 1.442695
  %v1432 = vpow.pop %v1431
  %v1433 = vmul.f32 %v1343, 1.442695
  %v1434 = vpow.pop %v1433
  %v1435 = vmul.f32 %v1344, 1.442695
  %v1436 = vpow.pop %v1435
  %v1437 = vmul.f32 %v1345, 1.442695
  %v1438 = vpow.pop %v1437
  %v1439 = vmul.f32 %v1346, 1.442695
  %v1440 = vpow.pop %v1439
  %v1441 = vmul.f32 %v1347, 1.442695
  %v1442 = vpow.pop %v1441
  %v1443 = vmul.f32 %v1348, 1.442695
  %v1444 = vpow.pop %v1443
  %v1445 = vmul.f32 %v1349, 1.442695
  %v1446 = vpow.pop %v1445
  %v1447 = vmul.f32 %v1350, 1.442695
  %v1448 = vpow.pop %v1447
  %v1449 = vmul.f32 %v1351, 1.442695
  %v1450 = vpow.pop %v1449
  %v1451 = vmul.f32 %v1352, 1.442695
  %v1452 = vpow.pop %v1451
  %v1453 = vmul.f32 %v1353, 1.442695
  %v1454 = vpow.pop %v1453
  %v1455 = vmul.f32 %v1354, 1.442695
  %v1456 = vpow.pop %v1455
  %v1457 = vmul.f32 %v1355, 1.442695
  %v1458 = vpow.pop %v1457
  %v1459 = vmul.f32 %v1356, 1.442695
  %v1460 = vpow.pop %v1459
  %v1461 = vmul.f32 %v1357, 1.442695
  %v1462 = vpow.pop %v1461
  %v1463 = vmul.f32 %v1358, 1.442695
  %v1464 = vpow.pop %v1463
  %v1465 = vmul.f32 %v1359, 1.442695
  %v1466 = vpow.pop %v1465
  %v1467 = vmul.f32 %v1360, 1.442695
  %v1468 = vpow.pop %v1467
  %v1469 = vmul.f32 %v1361, 1.442695
  %v1470 = vpow.pop %v1469
  %v1471 = vmul.f32 %v1362, 1.442695
  %v1472 = vpow.pop %v1471
  %v1473 = vmul.f32 %v1363, 1.442695
  %v1474 = vpow.pop %v1473
  %v1475 = vmul.f32 %v1364, 1.442695
  %v1476 = vpow.pop %v1475
  %v1477 = vmul.f32 %v1365, 1.442695
  %v1478 = vpow.pop %v1477
  %v1479 = vmul.f32 %v1366, 1.442695
  %v1480 = vpow.pop %v1479
  %v1481 = vmul.f32 %v1367, 1.442695
  %v1482 = vpow.pop %v1481
  %v1483 = vmul.f32 %v1368, 1.442695
  %v1484 = vpow.pop %v1483
  %v1485 = vmul.f32 %v1369, 1.442695
  %v1486 = vpow.pop %v1485
  %v1487 = vmul.f32 %v1370, 1.442695
  %v1488 = vpow.pop %v1487
  %v1489 = vmul.f32 %v1371, 1.442695
  %v1490 = vpow.pop %v1489
  %v1491 = vmul.f32 %v1372, 1.442695
  %v1492 = vpow.pop %v1491
  %v1493 = vmul.f32 %v1373, 1.442695
  %v1494 = vpow.pop %v1493
  %v1495 = vmul.f32 %v1374, 1.442695
  %v1496 = vpow.pop %v1495
  %v1497 = vmul.f32 %v1375, 1.442695
  %v1498 = vpow.pop %v1497
  %v1499 = vmul.f32 %v1376, 1.442695
  %v1500 = vpow.pop %v1499
  %v1501 = vmul.f32 %v1377, 1.442695
  %v1502 = vpow.pop %v1501
  %v1503 = vmul.f32 %v1378, 1.442695
  %v1504 = vpow.pop %v1503
  %v1505 = vmul.f32 %v1379, 1.442695
  %v1506 = vpow.pop %v1505
  %v1507 = vmul.f32 %v1380, 1.442695
  %v1508 = vpow.pop %v1507
  %v1509 = vadd.f32 %v1382, 1.0
  %v1510 = vadd.f32 %v1384, 1.0
  %v1511 = vadd.f32 %v1386, 1.0
  %v1512 = vadd.f32 %v1388, 1.0
  %v1513 = vadd.f32 %v1390, 1.0
  %v1514 = vadd.f32 %v1392, 1.0
  %v1515 = vadd.f32 %v1394, 1.0
  %v1516 = vadd.f32 %v1396, 1.0
  %v1517 = vadd.f32 %v1398, 1.0
  %v1518 = vadd.f32 %v1400, 1.0
  %v1519 = vadd.f32 %v1402, 1.0
  %v1520 = vadd.f32 %v1404, 1.0
  %v1521 = vadd.f32 %v1406, 1.0
  %v1522 = vadd.f32 %v1408, 1.0
  %v1523 = vadd.f32 %v1410, 1.0
  %v1524 = vadd.f32 %v1412, 1.0
  %v1525 = vadd.f32 %v1414, 1.0
  %v1526 = vadd.f32 %v1416, 1.0
  %v1527 = vadd.f32 %v1418, 1.0
  %v1528 = vadd.f32 %v1420, 1.0
  %v1529 = vadd.f32 %v1422, 1.0
  %v1530 = vadd.f32 %v1424, 1.0
  %v1531 = vadd.f32 %v1426, 1.0
  %v1532 = vadd.f32 %v1428, 1.0
  %v1533 = vadd.f32 %v1430, 1.0
  %v1534 = vadd.f32 %v1432, 1.0
  %v1535 = vadd.f32 %v1434, 1.0
  %v1536 = vadd.f32 %v1436, 1.0
  %v1537 = vadd.f32 %v1438, 1.0
  %v1538 = vadd.f32 %v1440, 1.0
  %v1539 = vadd.f32 %v1442, 1.0
  %v1540 = vadd.f32 %v1444, 1.0
  %v1541 = vadd.f32 %v1446, 1.0
  %v1542 = vadd.f32 %v1448, 1.0
  %v1543 = vadd.f32 %v1450, 1.0
  %v1544 = vadd.f32 %v1452, 1.0
  %v1545 = vadd.f32 %v1454, 1.0
  %v1546 = vadd.f32 %v1456, 1.0
  %v1547 = vadd.f32 %v1458, 1.0
  %v1548 = vadd.f32 %v1460, 1.0
  %v1549 = vadd.f32 %v1462, 1.0
  %v1550 = vadd.f32 %v1464, 1.0
  %v1551 = vadd.f32 %v1466, 1.0
  %v1552 = vadd.f32 %v1468, 1.0
  %v1553 = vadd.f32 %v1470, 1.0
  %v1554 = vadd.f32 %v1472, 1.0
  %v1555 = vadd.f32 %v1474, 1.0
  %v1556 = vadd.f32 %v1476, 1.0
  %v1557 = vadd.f32 %v1478, 1.0
  %v1558 = vadd.f32 %v1480, 1.0
  %v1559 = vadd.f32 %v1482, 1.0
  %v1560 = vadd.f32 %v1484, 1.0
  %v1561 = vadd.f32 %v1486, 1.0
  %v1562 = vadd.f32 %v1488, 1.0
  %v1563 = vadd.f32 %v1490, 1.0
  %v1564 = vadd.f32 %v1492, 1.0
  %v1565 = vadd.f32 %v1494, 1.0
  %v1566 = vadd.f32 %v1496, 1.0
  %v1567 = vadd.f32 %v1498, 1.0
  %v1568 = vadd.f32 %v1500, 1.0
  %v1569 = vadd.f32 %v1502, 1.0
  %v1570 = vadd.f32 %v1504, 1.0
  %v1571 = vadd.f32 %v1506, 1.0
  %v1572 = vadd.f32 %v1508, 1.0
  %v1573 = vrcp.pop %v1509
  %v1574 = vrcp.pop %v1510
  %v1575 = vrcp.pop %v1511
  %v1576 = vrcp.pop %v1512
  %v1577 = vrcp.pop %v1513
  %v1578 = vrcp.pop %v1514
  %v1579 = vrcp.pop %v1515
  %v1580 = vrcp.pop %v1516
  %v1581 = vrcp.pop %v1517
  %v1582 = vrcp.pop %v1518
  %v1583 = vrcp.pop %v1519
  %v1584 = vrcp.pop %v1520
  %v1585 = vrcp.pop %v1521
  %v1586 = vrcp.pop %v1522
  %v1587 = vrcp.pop %v1523
  %v1588 = vrcp.pop %v1524
  %v1589 = vrcp.pop %v1525
  %v1590 = vrcp.pop %v1526
  %v1591 = vrcp.pop %v1527
  %v1592 = vrcp.pop %v1528
  %v1593 = vrcp.pop %v1529
  %v1594 = vrcp.pop %v1530
  %v1595 = vrcp.pop %v1531
  %v1596 = vrcp.pop %v1532
  %v1597 = vrcp.pop %v1533
  %v1598 = vrcp.pop %v1534
  %v1599 = vrcp.pop %v1535
  %v1600 = vrcp.pop %v1536
  %v1601 = vrcp.pop %v1537
  %v1602 = vrcp.pop %v1538
  %v1603 = vrcp.pop %v1539
  %v1604 = vrcp.pop %v1540
  %v1605 = vrcp.pop %v1541
  %v1606 = vrcp.pop %v1542
  %v1607 = vrcp.pop %v1543
  %v1608 = vrcp.pop %v1544
  %v1609 = vrcp.pop %v1545
  %v1610 = vrcp.pop %v1546
  %v1611 = vrcp.pop %v1547
  %v1612 = vrcp.pop %v1548
  %v1613 = vrcp.pop %v1549
  %v1614 = vrcp.pop %v1550
  %v1615 = vrcp.pop %v1551
  %v1616 = vrcp.pop %v1552
  %v1617 = vrcp.pop %v1553
  %v1618 = vrcp.pop %v1554
  %v1619 = vrcp.pop %v1555
  %v1620 = vrcp.pop %v1556
  %v1621 = vrcp.pop %v1557
  %v1622 = vrcp.pop %v1558
  %v1623 = vrcp.pop %v1559
  %v1624 = vrcp.pop %v1560
  %v1625 = vrcp.pop %v1561
  %v1626 = vrcp.pop %v1562
  %v1627 = vrcp.pop %v1563
  %v1628 = vrcp.pop %v1564
  %v1629 = vrcp.pop %v1565
  %v1630 = vrcp.pop %v1566
  %v1631 = vrcp.pop %v1567
  %v1632 = vrcp.pop %v1568
  %v1633 = vrcp.pop %v1569
  %v1634 = vrcp.pop %v1570
  %v1635 = vrcp.pop %v1571
  %v1636 = vrcp.pop %v1572
  %vm1637 = vcmask 130048
  %1638 = vst.msk [vmem:[%s9] sm:$0xff] %vm1637, %v1573
  %1639 = vst.msk [vmem:[%s9 + $0x8] sm:$0xff] %vm1637, %v1574
  %1640 = vst.msk [vmem:[%s9 + $0x10] sm:$0xff] %vm1637, %v1575
  %1641 = vst.msk [vmem:[%s9 + $0x18] sm:$0xff] %vm1637, %v1576
  %1642 = vst.msk [vmem:[%s9 + $0x20] sm:$0xff] %vm1637, %v1577
  %1643 = vst.msk [vmem:[%s9 + $0x28] sm:$0xff] %vm1637, %v1578
  %1644 = vst.msk [vmem:[%s9 + $0x30] sm:$0xff] %vm1637, %v1579
  %1645 = vst.msk [vmem:[%s9 + $0x38] sm:$0xff] %vm1637, %v1580
  %1646 = vst.msk [vmem:[%s9 + $0x40] sm:$0xff] %vm1637, %v1581
  %1647 = vst.msk [vmem:[%s9 + $0x48] sm:$0xff] %vm1637, %v1582
  %1648 = vst.msk [vmem:[%s9 + $0x50] sm:$0xff] %vm1637, %v1583
  %1649 = vst.msk [vmem:[%s9 + $0x58] sm:$0xff] %vm1637, %v1584
  %1650 = vst.msk [vmem:[%s9 + $0x60] sm:$0xff] %vm1637, %v1585
  %1651 = vst.msk [vmem:[%s9 + $0x68] sm:$0xff] %vm1637, %v1586
  %1652 = vst.msk [vmem:[%s9 + $0x70] sm:$0xff] %vm1637, %v1587
  %1653 = vst.msk [vmem:[%s9 + $0x78] sm:$0xff] %vm1637, %v1588
  %1654 = vst.msk [vmem:[%s9 + $0x80] sm:$0xff] %vm1637, %v1589
  %1655 = vst.msk [vmem:[%s9 + $0x88] sm:$0xff] %vm1637, %v1590
  %1656 = vst.msk [vmem:[%s9 + $0x90] sm:$0xff] %vm1637, %v1591
  %1657 = vst.msk [vmem:[%s9 + $0x98] sm:$0xff] %vm1637, %v1592
  %1658 = vst.msk [vmem:[%s9 + $0xa0] sm:$0xff] %vm1637, %v1593
  %1659 = vst.msk [vmem:[%s9 + $0xa8] sm:$0xff] %vm1637, %v1594
  %1660 = vst.msk [vmem:[%s9 + $0xb0] sm:$0xff] %vm1637, %v1595
  %1661 = vst.msk [vmem:[%s9 + $0xb8] sm:$0xff] %vm1637, %v1596
  %1662 = vst.msk [vmem:[%s9 + $0xc0] sm:$0xff] %vm1637, %v1597
  %1663 = vst.msk [vmem:[%s9 + $0xc8] sm:$0xff] %vm1637, %v1598
  %1664 = vst.msk [vmem:[%s9 + $0xd0] sm:$0xff] %vm1637, %v1599
  %1665 = vst.msk [vmem:[%s9 + $0xd8] sm:$0xff] %vm1637, %v1600
  %1666 = vst.msk [vmem:[%s9 + $0xe0] sm:$0xff] %vm1637, %v1601
  %1667 = vst.msk [vmem:[%s9 + $0xe8] sm:$0xff] %vm1637, %v1602
  %1668 = vst.msk [vmem:[%s9 + $0xf0] sm:$0xff] %vm1637, %v1603
  %1669 = vst.msk [vmem:[%s9 + $0xf8] sm:$0xff] %vm1637, %v1604
  %1670 = vst.msk [vmem:[%s9 + $0x100] sm:$0xff] %vm1637, %v1605
  %1671 = vst.msk [vmem:[%s9 + $0x108] sm:$0xff] %vm1637, %v1606
  %1672 = vst.msk [vmem:[%s9 + $0x110] sm:$0xff] %vm1637, %v1607
  %1673 = vst.msk [vmem:[%s9 + $0x118] sm:$0xff] %vm1637, %v1608
  %1674 = vst.msk [vmem:[%s9 + $0x120] sm:$0xff] %vm1637, %v1609
  %1675 = vst.msk [vmem:[%s9 + $0x128] sm:$0xff] %vm1637, %v1610
  %1676 = vst.msk [vmem:[%s9 + $0x130] sm:$0xff] %vm1637, %v1611
  %1677 = vst.msk [vmem:[%s9 + $0x138] sm:$0xff] %vm1637, %v1612
  %1678 = vst.msk [vmem:[%s9 + $0x140] sm:$0xff] %vm1637, %v1613
  %1679 = vst.msk [vmem:[%s9 + $0x148] sm:$0xff] %vm1637, %v1614
  %1680 = vst.msk [vmem:[%s9 + $0x150] sm:$0xff] %vm1637, %v1615
  %1681 = vst.msk [vmem:[%s9 + $0x158] sm:$0xff] %vm1637, %v1616
  %1682 = vst.msk [vmem:[%s9 + $0x160] sm:$0xff] %vm1637, %v1617
  %1683 = vst.msk [vmem:[%s9 + $0x168] sm:$0xff] %vm1637, %v1618
  %1684 = vst.msk [vmem:[%s9 + $0x170] sm:$0xff] %vm1637, %v1619
  %1685 = vst.msk [vmem:[%s9 + $0x178] sm:$0xff] %vm1637, %v1620
  %1686 = vst.msk [vmem:[%s9 + $0x180] sm:$0xff] %vm1637, %v1621
  %1687 = vst.msk [vmem:[%s9 + $0x188] sm:$0xff] %vm1637, %v1622
  %1688 = vst.msk [vmem:[%s9 + $0x190] sm:$0xff] %vm1637, %v1623
  %1689 = vst.msk [vmem:[%s9 + $0x198] sm:$0xff] %vm1637, %v1624
  %1690 = vst.msk [vmem:[%s9 + $0x1a0] sm:$0xff] %vm1637, %v1625
  %1691 = vst.msk [vmem:[%s9 + $0x1a8] sm:$0xff] %vm1637, %v1626
  %1692 = vst.msk [vmem:[%s9 + $0x1b0] sm:$0xff] %vm1637, %v1627
  %1693 = vst.msk [vmem:[%s9 + $0x1b8] sm:$0xff] %vm1637, %v1628
  %1694 = vst.msk [vmem:[%s9 + $0x1c0] sm:$0xff] %vm1637, %v1629
  %1695 = vst.msk [vmem:[%s9 + $0x1c8] sm:$0xff] %vm1637, %v1630
  %1696 = vst.msk [vmem:[%s9 + $0x1d0] sm:$0xff] %vm1637, %v1631
  %1697 = vst.msk [vmem:[%s9 + $0x1d8] sm:$0xff] %vm1637, %v1632
  %1698 = vst.msk [vmem:[%s9 + $0x1e0] sm:$0xff] %vm1637, %v1633
  %1699 = vst.msk [vmem:[%s9 + $0x1e8] sm:$0xff] %vm1637, %v1634
  %1700 = vst.msk [vmem:[%s9 + $0x1f0] sm:$0xff] %vm1637, %v1635
  %1701 = vst.msk [vmem:[%s9 + $0x1f8] sm:$0xff] %vm1637, %v1636
  %v1702 = vld [vmem:[%s5] sm:$0xf]
  %v1703 = vld [vmem:[%s5 + $0x4] sm:$0xf]
  %v1704 = vld [vmem:[%s6] sm:$0x1]
  %v1705 = vpack.c.bf16 %v1574, %v1573
  %v1706 = vpack.c.bf16 %v1576, %v1575
  %v1707 = vpack.c.bf16 %v1578, %v1577
  %v1708 = vpack.c.bf16 %v1580, %v1579
  %v1709 = vpack.c.bf16 %v1582, %v1581
  %v1710 = vpack.c.bf16 %v1584, %v1583
  %v1711 = vpack.c.bf16 %v1586, %v1585
  %v1712 = vpack.c.bf16 %v1588, %v1587
  %v1713 = vpack.c.bf16 %v1590, %v1589
  %v1714 = vpack.c.bf16 %v1592, %v1591
  %v1715 = vpack.c.bf16 %v1594, %v1593
  %v1716 = vpack.c.bf16 %v1596, %v1595
  %v1717 = vpack.c.bf16 %v1598, %v1597
  %v1718 = vpack.c.bf16 %v1600, %v1599
  %v1719 = vpack.c.bf16 %v1602, %v1601
  %v1720 = vpack.c.bf16 %v1604, %v1603
  %v1721 = vpack.c.bf16 %v1606, %v1605
  %v1722 = vpack.c.bf16 %v1608, %v1607
  %v1723 = vpack.c.bf16 %v1610, %v1609
  %v1724 = vpack.c.bf16 %v1612, %v1611
  %v1725 = vpack.c.bf16 %v1614, %v1613
  %v1726 = vpack.c.bf16 %v1616, %v1615
  %v1727 = vpack.c.bf16 %v1618, %v1617
  %v1728 = vpack.c.bf16 %v1620, %v1619
  %v1729 = vpack.c.bf16 %v1622, %v1621
  %v1730 = vpack.c.bf16 %v1624, %v1623
  %v1731 = vpack.c.bf16 %v1626, %v1625
  %v1732 = vpack.c.bf16 %v1628, %v1627
  %v1733 = vpack.c.bf16 %v1630, %v1629
  %v1734 = vpack.c.bf16 %v1632, %v1631
  %v1735 = vpack.c.bf16 %v1634, %v1633
  %v1736 = vpack.c.bf16 %v1636, %v1635
  %v1738 = vlaneseq
  %v1739 = vshrl.u32 %v1738, 7
  %v1740 = vsub.s32 0, %v1739
  %v1741 = vrot.slane %v1704, %v1740
  %v1745 = vunpack.c.l.b16 %v1702
  %v1746 = vunpack.c.l.b16 %v1703
  %v1747 = vpack.c.b16 %v1746, %v1745
  %v1750 = vsel %vm1637, %v1705, 0
  %v1753 = vsel %vm1637, %v1706, 0
  %v1756 = vsel %vm1637, %v1707, 0
  %v1759 = vsel %vm1637, %v1708, 0
  %v1762 = vsel %vm1637, %v1709, 0
  %v1765 = vsel %vm1637, %v1710, 0
  %v1768 = vsel %vm1637, %v1711, 0
  %v1771 = vsel %vm1637, %v1712, 0
  %v1774 = vsel %vm1637, %v1713, 0
  %v1777 = vsel %vm1637, %v1714, 0
  %v1780 = vsel %vm1637, %v1715, 0
  %v1783 = vsel %vm1637, %v1716, 0
  %v1786 = vsel %vm1637, %v1717, 0
  %v1789 = vsel %vm1637, %v1718, 0
  %v1792 = vsel %vm1637, %v1719, 0
  %v1795 = vsel %vm1637, %v1720, 0
  %v1798 = vsel %vm1637, %v1721, 0
  %v1801 = vsel %vm1637, %v1722, 0
  %v1804 = vsel %vm1637, %v1723, 0
  %v1807 = vsel %vm1637, %v1724, 0
  %v1810 = vsel %vm1637, %v1725, 0
  %v1813 = vsel %vm1637, %v1726, 0
  %v1816 = vsel %vm1637, %v1727, 0
  %v1819 = vsel %vm1637, %v1728, 0
  %v1822 = vsel %vm1637, %v1729, 0
  %v1825 = vsel %vm1637, %v1730, 0
  %v1828 = vsel %vm1637, %v1731, 0
  %v1831 = vsel %vm1637, %v1732, 0
  %v1834 = vsel %vm1637, %v1733, 0
  %v1837 = vsel %vm1637, %v1734, 0
  %v1840 = vsel %vm1637, %v1735, 0
  %v1843 = vsel %vm1637, %v1736, 0
  %1845 = vmatprep.subr.bf16.mxu0 0
  %1846 = vmatpush1.bf16.msra.mxu0 %v1747
  %1847 = vmatprep.subr.bf16.mxu0 0
  %1848 = vmatpush1.bf16.msra.mxu0 0
  %1849 = vmatprep.subr.bf16.mxu0 0
  %1850 = vmatpush1.bf16.msra.mxu0 0
  %1851 = vmatprep.subr.bf16.mxu0 0
  %1852 = vmatpush1.bf16.msra.mxu0 0
  %1853 = vmatprep.subr.bf16.mxu0 0
  %1854 = vmatpush1.bf16.msra.mxu0 0
  %1855 = vmatprep.subr.bf16.mxu0 0
  %1856 = vmatpush1.bf16.msra.mxu0 0
  %1857 = vmatprep.subr.bf16.mxu0 0
  %1858 = vmatpush1.bf16.msra.mxu0 0
  %1859 = vmatprep.subr.bf16.mxu0 0
  %1860 = vmatpush1.bf16.msra.mxu0 0
  %1861 = vmatprep.subr.bf16.mxu0 0
  %1862 = vmatpush1.bf16.msra.mxu0 0
  %1863 = vmatprep.subr.bf16.mxu0 0
  %1864 = vmatpush1.bf16.msra.mxu0 0
  %1865 = vmatprep.subr.bf16.mxu0 0
  %1866 = vmatpush1.bf16.msra.mxu0 0
  %1867 = vmatprep.subr.bf16.mxu0 0
  %1868 = vmatpush1.bf16.msra.mxu0 0
  %1869 = vmatprep.subr.bf16.mxu0 0
  %1870 = vmatpush1.bf16.msra.mxu0 0
  %1871 = vmatprep.subr.bf16.mxu0 0
  %1872 = vmatpush1.bf16.msra.mxu0 0
  %1873 = vmatprep.subr.bf16.mxu0 0
  %1874 = vmatpush1.bf16.msra.mxu0 0
  %1875 = vmatprep.subr.bf16.mxu0 0
  %1876 = vmatpush1.bf16.msra.mxu0 0
  %1877 = vmatprep.mubr.bf16.mxu0 0
  %1878 = vmatmul.mubr.bf16.gmra.mrb[0].mxu0 %v1750
  %v1879 = vpop.f32.mrb[0].mxu0
  %v1880 = vadd.f32 %v1741, %v1879
  %v1881 = vpop.f32.mrb[0].mxu0
  %v1882 = vpop.f32.mrb[0].mxu0
  %v1883 = vadd.f32 %v1741, %v1882
  %v1884 = vpop.f32.mrb[0].mxu0
  %1885 = vmatprep.mubr.bf16.mxu0 0
  %1886 = vmatmul.mubr.bf16.gmra.mrb[0].mxu0 %v1753
  %v1887 = vpop.f32.mrb[0].mxu0
  %v1888 = vadd.f32 %v1741, %v1887
  %v1889 = vpop.f32.mrb[0].mxu0
  %v1890 = vpop.f32.mrb[0].mxu0
  %v1891 = vadd.f32 %v1741, %v1890
  %v1892 = vpop.f32.mrb[0].mxu0
  %1893 = vmatprep.mubr.bf16.mxu0 0
  %1894 = vmatmul.mubr.bf16.gmra.mrb[0].mxu0 %v1756
  %v1895 = vpop.f32.mrb[0].mxu0
  %v1896 = vadd.f32 %v1741, %v1895
  %v1897 = vpop.f32.mrb[0].mxu0
  %v1898 = vpop.f32.mrb[0].mxu0
  %v1899 = vadd.f32 %v1741, %v1898
  %v1900 = vpop.f32.mrb[0].mxu0
  %1901 = vmatprep.mubr.bf16.mxu0 0
  %1902 = vmatmul.mubr.bf16.gmra.mrb[0].mxu0 %v1759
  %v1903 = vpop.f32.mrb[0].mxu0
  %v1904 = vadd.f32 %v1741, %v1903
  %v1905 = vpop.f32.mrb[0].mxu0
  %v1906 = vpop.f32.mrb[0].mxu0
  %v1907 = vadd.f32 %v1741, %v1906
  %v1908 = vpop.f32.mrb[0].mxu0
  %1909 = vmatprep.mubr.bf16.mxu0 0
  %1910 = vmatmul.mubr.bf16.gmra.mrb[0].mxu0 %v1762
  %v1911 = vpop.f32.mrb[0].mxu0
  %v1912 = vadd.f32 %v1741, %v1911
  %v1913 = vpop.f32.mrb[0].mxu0
  %v1914 = vpop.f32.mrb[0].mxu0
  %v1915 = vadd.f32 %v1741, %v1914
  %v1916 = vpop.f32.mrb[0].mxu0
  %1917 = vmatprep.mubr.bf16.mxu0 0
  %1918 = vmatmul.mubr.bf16.gmra.mrb[0].mxu0 %v1765
  %v1919 = vpop.f32.mrb[0].mxu0
  %v1920 = vadd.f32 %v1741, %v1919
  %v1921 = vpop.f32.mrb[0].mxu0
  %v1922 = vpop.f32.mrb[0].mxu0
  %v1923 = vadd.f32 %v1741, %v1922
  %v1924 = vpop.f32.mrb[0].mxu0
  %1925 = vmatprep.mubr.bf16.mxu0 0
  %1926 = vmatmul.mubr.bf16.gmra.mrb[0].mxu0 %v1768
  %v1927 = vpop.f32.mrb[0].mxu0
  %v1928 = vadd.f32 %v1741, %v1927
  %v1929 = vpop.f32.mrb[0].mxu0
  %v1930 = vpop.f32.mrb[0].mxu0
  %v1931 = vadd.f32 %v1741, %v1930
  %v1932 = vpop.f32.mrb[0].mxu0
  %1933 = vmatprep.mubr.bf16.mxu0 0
  %1934 = vmatmul.mubr.bf16.gmra.mrb[0].mxu0 %v1771
  %v1935 = vpop.f32.mrb[0].mxu0
  %v1936 = vadd.f32 %v1741, %v1935
  %v1937 = vpop.f32.mrb[0].mxu0
  %v1938 = vpop.f32.mrb[0].mxu0
  %v1939 = vadd.f32 %v1741, %v1938
  %v1940 = vpop.f32.mrb[0].mxu0
  %1941 = vmatprep.mubr.bf16.mxu0 0
  %1942 = vmatmul.mubr.bf16.gmra.mrb[0].mxu0 %v1774
  %v1943 = vpop.f32.mrb[0].mxu0
  %v1944 = vadd.f32 %v1741, %v1943
  %v1945 = vpop.f32.mrb[0].mxu0
  %v1946 = vpop.f32.mrb[0].mxu0
  %v1947 = vadd.f32 %v1741, %v1946
  %v1948 = vpop.f32.mrb[0].mxu0
  %1949 = vmatprep.mubr.bf16.mxu0 0
  %1950 = vmatmul.mubr.bf16.gmra.mrb[0].mxu0 %v1777
  %v1951 = vpop.f32.mrb[0].mxu0
  %v1952 = vadd.f32 %v1741, %v1951
  %v1953 = vpop.f32.mrb[0].mxu0
  %v1954 = vpop.f32.mrb[0].mxu0
  %v1955 = vadd.f32 %v1741, %v1954
  %v1956 = vpop.f32.mrb[0].mxu0
  %1957 = vmatprep.mubr.bf16.mxu0 0
  %1958 = vmatmul.mubr.bf16.gmra.mrb[0].mxu0 %v1780
  %v1959 = vpop.f32.mrb[0].mxu0
  %v1960 = vadd.f32 %v1741, %v1959
  %v1961 = vpop.f32.mrb[0].mxu0
  %v1962 = vpop.f32.mrb[0].mxu0
  %v1963 = vadd.f32 %v1741, %v1962
  %v1964 = vpop.f32.mrb[0].mxu0
  %1965 = vmatprep.mubr.bf16.mxu0 0
  %1966 = vmatmul.mubr.bf16.gmra.mrb[0].mxu0 %v1783
  %v1967 = vpop.f32.mrb[0].mxu0
  %v1968 = vadd.f32 %v1741, %v1967
  %v1969 = vpop.f32.mrb[0].mxu0
  %v1970 = vpop.f32.mrb[0].mxu0
  %v1971 = vadd.f32 %v1741, %v1970
  %v1972 = vpop.f32.mrb[0].mxu0
  %1973 = vmatprep.mubr.bf16.mxu0 0
  %1974 = vmatmul.mubr.bf16.gmra.mrb[0].mxu0 %v1786
  %v1975 = vpop.f32.mrb[0].mxu0
  %v1976 = vadd.f32 %v1741, %v1975
  %v1977 = vpop.f32.mrb[0].mxu0
  %v1978 = vpop.f32.mrb[0].mxu0
  %v1979 = vadd.f32 %v1741, %v1978
  %v1980 = vpop.f32.mrb[0].mxu0
  %1981 = vmatprep.mubr.bf16.mxu0 0
  %1982 = vmatmul.mubr.bf16.gmra.mrb[0].mxu0 %v1789
  %v1983 = vpop.f32.mrb[0].mxu0
  %v1984 = vadd.f32 %v1741, %v1983
  %v1985 = vpop.f32.mrb[0].mxu0
  %v1986 = vpop.f32.mrb[0].mxu0
  %v1987 = vadd.f32 %v1741, %v1986
  %v1988 = vpop.f32.mrb[0].mxu0
  %1989 = vmatprep.mubr.bf16.mxu0 0
  %1990 = vmatmul.mubr.bf16.gmra.mrb[0].mxu0 %v1792
  %v1991 = vpop.f32.mrb[0].mxu0
  %v1992 = vadd.f32 %v1741, %v1991
  %v1993 = vpop.f32.mrb[0].mxu0
  %v1994 = vpop.f32.mrb[0].mxu0
  %v1995 = vadd.f32 %v1741, %v1994
  %v1996 = vpop.f32.mrb[0].mxu0
  %1997 = vmatprep.mubr.bf16.mxu0 0
  %1998 = vmatmul.mubr.bf16.gmra.mrb[0].mxu0 %v1795
  %v1999 = vpop.f32.mrb[0].mxu0
  %v2000 = vadd.f32 %v1741, %v1999
  %v2001 = vpop.f32.mrb[0].mxu0
  %v2002 = vpop.f32.mrb[0].mxu0
  %v2003 = vadd.f32 %v1741, %v2002
  %v2004 = vpop.f32.mrb[0].mxu0
  %2005 = vmatprep.mubr.bf16.mxu0 0
  %2006 = vmatmul.mubr.bf16.gmra.mrb[0].mxu0 %v1798
  %v2007 = vpop.f32.mrb[0].mxu0
  %v2008 = vadd.f32 %v1741, %v2007
  %v2009 = vpop.f32.mrb[0].mxu0
  %v2010 = vpop.f32.mrb[0].mxu0
  %v2011 = vadd.f32 %v1741, %v2010
  %v2012 = vpop.f32.mrb[0].mxu0
  %2013 = vmatprep.mubr.bf16.mxu0 0
  %2014 = vmatmul.mubr.bf16.gmra.mrb[0].mxu0 %v1801
  %v2015 = vpop.f32.mrb[0].mxu0
  %v2016 = vadd.f32 %v1741, %v2015
  %v2017 = vpop.f32.mrb[0].mxu0
  %v2018 = vpop.f32.mrb[0].mxu0
  %v2019 = vadd.f32 %v1741, %v2018
  %v2020 = vpop.f32.mrb[0].mxu0
  %2021 = vmatprep.mubr.bf16.mxu0 0
  %2022 = vmatmul.mubr.bf16.gmra.mrb[0].mxu0 %v1804
  %v2023 = vpop.f32.mrb[0].mxu0
  %v2024 = vadd.f32 %v1741, %v2023
  %v2025 = vpop.f32.mrb[0].mxu0
  %v2026 = vpop.f32.mrb[0].mxu0
  %v2027 = vadd.f32 %v1741, %v2026
  %v2028 = vpop.f32.mrb[0].mxu0
  %2029 = vmatprep.mubr.bf16.mxu0 0
  %2030 = vmatmul.mubr.bf16.gmra.mrb[0].mxu0 %v1807
  %v2031 = vpop.f32.mrb[0].mxu0
  %v2032 = vadd.f32 %v1741, %v2031
  %v2033 = vpop.f32.mrb[0].mxu0
  %v2034 = vpop.f32.mrb[0].mxu0
  %v2035 = vadd.f32 %v1741, %v2034
  %v2036 = vpop.f32.mrb[0].mxu0
  %2037 = vmatprep.mubr.bf16.mxu0 0
  %2038 = vmatmul.mubr.bf16.gmra.mrb[0].mxu0 %v1810
  %v2039 = vpop.f32.mrb[0].mxu0
  %v2040 = vadd.f32 %v1741, %v2039
  %v2041 = vpop.f32.mrb[0].mxu0
  %v2042 = vpop.f32.mrb[0].mxu0
  %v2043 = vadd.f32 %v1741, %v2042
  %v2044 = vpop.f32.mrb[0].mxu0
  %2045 = vmatprep.mubr.bf16.mxu0 0
  %2046 = vmatmul.mubr.bf16.gmra.mrb[0].mxu0 %v1813
  %v2047 = vpop.f32.mrb[0].mxu0
  %v2048 = vadd.f32 %v1741, %v2047
  %v2049 = vpop.f32.mrb[0].mxu0
  %v2050 = vpop.f32.mrb[0].mxu0
  %v2051 = vadd.f32 %v1741, %v2050
  %v2052 = vpop.f32.mrb[0].mxu0
  %2053 = vmatprep.mubr.bf16.mxu0 0
  %2054 = vmatmul.mubr.bf16.gmra.mrb[0].mxu0 %v1816
  %v2055 = vpop.f32.mrb[0].mxu0
  %v2056 = vadd.f32 %v1741, %v2055
  %v2057 = vpop.f32.mrb[0].mxu0
  %v2058 = vpop.f32.mrb[0].mxu0
  %v2059 = vadd.f32 %v1741, %v2058
  %v2060 = vpop.f32.mrb[0].mxu0
  %2061 = vmatprep.mubr.bf16.mxu0 0
  %2062 = vmatmul.mubr.bf16.gmra.mrb[0].mxu0 %v1819
  %v2063 = vpop.f32.mrb[0].mxu0
  %v2064 = vadd.f32 %v1741, %v2063
  %v2065 = vpop.f32.mrb[0].mxu0
  %v2066 = vpop.f32.mrb[0].mxu0
  %v2067 = vadd.f32 %v1741, %v2066
  %v2068 = vpop.f32.mrb[0].mxu0
  %2069 = vmatprep.mubr.bf16.mxu0 0
  %2070 = vmatmul.mubr.bf16.gmra.mrb[0].mxu0 %v1822
  %v2071 = vpop.f32.mrb[0].mxu0
  %v2072 = vadd.f32 %v1741, %v2071
  %v2073 = vpop.f32.mrb[0].mxu0
  %v2074 = vpop.f32.mrb[0].mxu0
  %v2075 = vadd.f32 %v1741, %v2074
  %v2076 = vpop.f32.mrb[0].mxu0
  %2077 = vmatprep.mubr.bf16.mxu0 0
  %2078 = vmatmul.mubr.bf16.gmra.mrb[0].mxu0 %v1825
  %v2079 = vpop.f32.mrb[0].mxu0
  %v2080 = vadd.f32 %v1741, %v2079
  %v2081 = vpop.f32.mrb[0].mxu0
  %v2082 = vpop.f32.mrb[0].mxu0
  %v2083 = vadd.f32 %v1741, %v2082
  %v2084 = vpop.f32.mrb[0].mxu0
  %2085 = vmatprep.mubr.bf16.mxu0 0
  %2086 = vmatmul.mubr.bf16.gmra.mrb[0].mxu0 %v1828
  %v2087 = vpop.f32.mrb[0].mxu0
  %v2088 = vadd.f32 %v1741, %v2087
  %v2089 = vpop.f32.mrb[0].mxu0
  %v2090 = vpop.f32.mrb[0].mxu0
  %v2091 = vadd.f32 %v1741, %v2090
  %v2092 = vpop.f32.mrb[0].mxu0
  %2093 = vmatprep.mubr.bf16.mxu0 0
  %2094 = vmatmul.mubr.bf16.gmra.mrb[0].mxu0 %v1831
  %v2095 = vpop.f32.mrb[0].mxu0
  %v2096 = vadd.f32 %v1741, %v2095
  %v2097 = vpop.f32.mrb[0].mxu0
  %v2098 = vpop.f32.mrb[0].mxu0
  %v2099 = vadd.f32 %v1741, %v2098
  %v2100 = vpop.f32.mrb[0].mxu0
  %2101 = vmatprep.mubr.bf16.mxu0 0
  %2102 = vmatmul.mubr.bf16.gmra.mrb[0].mxu0 %v1834
  %v2103 = vpop.f32.mrb[0].mxu0
  %v2104 = vadd.f32 %v1741, %v2103
  %v2105 = vpop.f32.mrb[0].mxu0
  %v2106 = vpop.f32.mrb[0].mxu0
  %v2107 = vadd.f32 %v1741, %v2106
  %v2108 = vpop.f32.mrb[0].mxu0
  %2109 = vmatprep.mubr.bf16.mxu0 0
  %2110 = vmatmul.mubr.bf16.gmra.mrb[0].mxu0 %v1837
  %v2111 = vpop.f32.mrb[0].mxu0
  %v2112 = vadd.f32 %v1741, %v2111
  %v2113 = vpop.f32.mrb[0].mxu0
  %v2114 = vpop.f32.mrb[0].mxu0
  %v2115 = vadd.f32 %v1741, %v2114
  %v2116 = vpop.f32.mrb[0].mxu0
  %2117 = vmatprep.mubr.bf16.mxu0 0
  %2118 = vmatmul.mubr.bf16.gmra.mrb[0].mxu0 %v1840
  %v2119 = vpop.f32.mrb[0].mxu0
  %v2120 = vadd.f32 %v1741, %v2119
  %v2121 = vpop.f32.mrb[0].mxu0
  %v2122 = vpop.f32.mrb[0].mxu0
  %v2123 = vadd.f32 %v1741, %v2122
  %v2124 = vpop.f32.mrb[0].mxu0
  %2125 = vmatprep.mubr.bf16.mxu0 0
  %2126 = vmatmul.mubr.bf16.gmra.mrb[0].mxu0 %v1843
  %v2127 = vpop.f32.mrb[0].mxu0
  %v2128 = vadd.f32 %v1741, %v2127
  %v2129 = vpop.f32.mrb[0].mxu0
  %v2130 = vpop.f32.mrb[0].mxu0
  %v2131 = vadd.f32 %v1741, %v2130
  %v2132 = vpop.f32.mrb[0].mxu0
  %2133 = vdwg.mxu0
  %v2134 = vsub.f32 0.0, %v1880
  %v2135 = vsub.f32 0.0, %v1883
  %v2136 = vsub.f32 0.0, %v1888
  %v2137 = vsub.f32 0.0, %v1891
  %v2138 = vsub.f32 0.0, %v1896
  %v2139 = vsub.f32 0.0, %v1899
  %v2140 = vsub.f32 0.0, %v1904
  %v2141 = vsub.f32 0.0, %v1907
  %v2142 = vsub.f32 0.0, %v1912
  %v2143 = vsub.f32 0.0, %v1915
  %v2144 = vsub.f32 0.0, %v1920
  %v2145 = vsub.f32 0.0, %v1923
  %v2146 = vsub.f32 0.0, %v1928
  %v2147 = vsub.f32 0.0, %v1931
  %v2148 = vsub.f32 0.0, %v1936
  %v2149 = vsub.f32 0.0, %v1939
  %v2150 = vsub.f32 0.0, %v1944
  %v2151 = vsub.f32 0.0, %v1947
  %v2152 = vsub.f32 0.0, %v1952
  %v2153 = vsub.f32 0.0, %v1955
  %v2154 = vsub.f32 0.0, %v1960
  %v2155 = vsub.f32 0.0, %v1963
  %v2156 = vsub.f32 0.0, %v1968
  %v2157 = vsub.f32 0.0, %v1971
  %v2158 = vsub.f32 0.0, %v1976
  %v2159 = vsub.f32 0.0, %v1979
  %v2160 = vsub.f32 0.0, %v1984
  %v2161 = vsub.f32 0.0, %v1987
  %v2162 = vsub.f32 0.0, %v1992
  %v2163 = vsub.f32 0.0, %v1995
  %v2164 = vsub.f32 0.0, %v2000
  %v2165 = vsub.f32 0.0, %v2003
  %v2166 = vsub.f32 0.0, %v2008
  %v2167 = vsub.f32 0.0, %v2011
  %v2168 = vsub.f32 0.0, %v2016
  %v2169 = vsub.f32 0.0, %v2019
  %v2170 = vsub.f32 0.0, %v2024
  %v2171 = vsub.f32 0.0, %v2027
  %v2172 = vsub.f32 0.0, %v2032
  %v2173 = vsub.f32 0.0, %v2035
  %v2174 = vsub.f32 0.0, %v2040
  %v2175 = vsub.f32 0.0, %v2043
  %v2176 = vsub.f32 0.0, %v2048
  %v2177 = vsub.f32 0.0, %v2051
  %v2178 = vsub.f32 0.0, %v2056
  %v2179 = vsub.f32 0.0, %v2059
  %v2180 = vsub.f32 0.0, %v2064
  %v2181 = vsub.f32 0.0, %v2067
  %v2182 = vsub.f32 0.0, %v2072
  %v2183 = vsub.f32 0.0, %v2075
  %v2184 = vsub.f32 0.0, %v2080
  %v2185 = vsub.f32 0.0, %v2083
  %v2186 = vsub.f32 0.0, %v2088
  %v2187 = vsub.f32 0.0, %v2091
  %v2188 = vsub.f32 0.0, %v2096
  %v2189 = vsub.f32 0.0, %v2099
  %v2190 = vsub.f32 0.0, %v2104
  %v2191 = vsub.f32 0.0, %v2107
  %v2192 = vsub.f32 0.0, %v2112
  %v2193 = vsub.f32 0.0, %v2115
  %v2194 = vsub.f32 0.0, %v2120
  %v2195 = vsub.f32 0.0, %v2123
  %v2196 = vsub.f32 0.0, %v2128
  %v2197 = vsub.f32 0.0, %v2131
  %v2198 = vmul.f32 %v2134, 1.442695
  %v2199 = vpow.pop %v2198
  %v2200 = vmul.f32 %v2135, 1.442695
  %v2201 = vpow.pop %v2200
  %v2202 = vmul.f32 %v2136, 1.442695
  %v2203 = vpow.pop %v2202
  %v2204 = vmul.f32 %v2137, 1.442695
  %v2205 = vpow.pop %v2204
  %v2206 = vmul.f32 %v2138, 1.442695
  %v2207 = vpow.pop %v2206
  %v2208 = vmul.f32 %v2139, 1.442695
  %v2209 = vpow.pop %v2208
  %v2210 = vmul.f32 %v2140, 1.442695
  %v2211 = vpow.pop %v2210
  %v2212 = vmul.f32 %v2141, 1.442695
  %v2213 = vpow.pop %v2212
  %v2214 = vmul.f32 %v2142, 1.442695
  %v2215 = vpow.pop %v2214
  %v2216 = vmul.f32 %v2143, 1.442695
  %v2217 = vpow.pop %v2216
  %v2218 = vmul.f32 %v2144, 1.442695
  %v2219 = vpow.pop %v2218
  %v2220 = vmul.f32 %v2145, 1.442695
  %v2221 = vpow.pop %v2220
  %v2222 = vmul.f32 %v2146, 1.442695
  %v2223 = vpow.pop %v2222
  %v2224 = vmul.f32 %v2147, 1.442695
  %v2225 = vpow.pop %v2224
  %v2226 = vmul.f32 %v2148, 1.442695
  %v2227 = vpow.pop %v2226
  %v2228 = vmul.f32 %v2149, 1.442695
  %v2229 = vpow.pop %v2228
  %v2230 = vmul.f32 %v2150, 1.442695
  %v2231 = vpow.pop %v2230
  %v2232 = vmul.f32 %v2151, 1.442695
  %v2233 = vpow.pop %v2232
  %v2234 = vmul.f32 %v2152, 1.442695
  %v2235 = vpow.pop %v2234
  %v2236 = vmul.f32 %v2153, 1.442695
  %v2237 = vpow.pop %v2236
  %v2238 = vmul.f32 %v2154, 1.442695
  %v2239 = vpow.pop %v2238
  %v2240 = vmul.f32 %v2155, 1.442695
  %v2241 = vpow.pop %v2240
  %v2242 = vmul.f32 %v2156, 1.442695
  %v2243 = vpow.pop %v2242
  %v2244 = vmul.f32 %v2157, 1.442695
  %v2245 = vpow.pop %v2244
  %v2246 = vmul.f32 %v2158, 1.442695
  %v2247 = vpow.pop %v2246
  %v2248 = vmul.f32 %v2159, 1.442695
  %v2249 = vpow.pop %v2248
  %v2250 = vmul.f32 %v2160, 1.442695
  %v2251 = vpow.pop %v2250
  %v2252 = vmul.f32 %v2161, 1.442695
  %v2253 = vpow.pop %v2252
  %v2254 = vmul.f32 %v2162, 1.442695
  %v2255 = vpow.pop %v2254
  %v2256 = vmul.f32 %v2163, 1.442695
  %v2257 = vpow.pop %v2256
  %v2258 = vmul.f32 %v2164, 1.442695
  %v2259 = vpow.pop %v2258
  %v2260 = vmul.f32 %v2165, 1.442695
  %v2261 = vpow.pop %v2260
  %v2262 = vmul.f32 %v2166, 1.442695
  %v2263 = vpow.pop %v2262
  %v2264 = vmul.f32 %v2167, 1.442695
  %v2265 = vpow.pop %v2264
  %v2266 = vmul.f32 %v2168, 1.442695
  %v2267 = vpow.pop %v2266
  %v2268 = vmul.f32 %v2169, 1.442695
  %v2269 = vpow.pop %v2268
  %v2270 = vmul.f32 %v2170, 1.442695
  %v2271 = vpow.pop %v2270
  %v2272 = vmul.f32 %v2171, 1.442695
  %v2273 = vpow.pop %v2272
  %v2274 = vmul.f32 %v2172, 1.442695
  %v2275 = vpow.pop %v2274
  %v2276 = vmul.f32 %v2173, 1.442695
  %v2277 = vpow.pop %v2276
  %v2278 = vmul.f32 %v2174, 1.442695
  %v2279 = vpow.pop %v2278
  %v2280 = vmul.f32 %v2175, 1.442695
  %v2281 = vpow.pop %v2280
  %v2282 = vmul.f32 %v2176, 1.442695
  %v2283 = vpow.pop %v2282
  %v2284 = vmul.f32 %v2177, 1.442695
  %v2285 = vpow.pop %v2284
  %v2286 = vmul.f32 %v2178, 1.442695
  %v2287 = vpow.pop %v2286
  %v2288 = vmul.f32 %v2179, 1.442695
  %v2289 = vpow.pop %v2288
  %v2290 = vmul.f32 %v2180, 1.442695
  %v2291 = vpow.pop %v2290
  %v2292 = vmul.f32 %v2181, 1.442695
  %v2293 = vpow.pop %v2292
  %v2294 = vmul.f32 %v2182, 1.442695
  %v2295 = vpow.pop %v2294
  %v2296 = vmul.f32 %v2183, 1.442695
  %v2297 = vpow.pop %v2296
  %v2298 = vmul.f32 %v2184, 1.442695
  %v2299 = vpow.pop %v2298
  %v2300 = vmul.f32 %v2185, 1.442695
  %v2301 = vpow.pop %v2300
  %v2302 = vmul.f32 %v2186, 1.442695
  %v2303 = vpow.pop %v2302
  %v2304 = vmul.f32 %v2187, 1.442695
  %v2305 = vpow.pop %v2304
  %v2306 = vmul.f32 %v2188, 1.442695
  %v2307 = vpow.pop %v2306
  %v2308 = vmul.f32 %v2189, 1.442695
  %v2309 = vpow.pop %v2308
  %v2310 = vmul.f32 %v2190, 1.442695
  %v2311 = vpow.pop %v2310
  %v2312 = vmul.f32 %v2191, 1.442695
  %v2313 = vpow.pop %v2312
  %v2314 = vmul.f32 %v2192, 1.442695
  %v2315 = vpow.pop %v2314
  %v2316 = vmul.f32 %v2193, 1.442695
  %v2317 = vpow.pop %v2316
  %v2318 = vmul.f32 %v2194, 1.442695
  %v2319 = vpow.pop %v2318
  %v2320 = vmul.f32 %v2195, 1.442695
  %v2321 = vpow.pop %v2320
  %v2322 = vmul.f32 %v2196, 1.442695
  %v2323 = vpow.pop %v2322
  %v2324 = vmul.f32 %v2197, 1.442695
  %v2325 = vpow.pop %v2324
  %v2326 = vadd.f32 %v2199, 1.0
  %v2327 = vadd.f32 %v2201, 1.0
  %v2328 = vadd.f32 %v2203, 1.0
  %v2329 = vadd.f32 %v2205, 1.0
  %v2330 = vadd.f32 %v2207, 1.0
  %v2331 = vadd.f32 %v2209, 1.0
  %v2332 = vadd.f32 %v2211, 1.0
  %v2333 = vadd.f32 %v2213, 1.0
  %v2334 = vadd.f32 %v2215, 1.0
  %v2335 = vadd.f32 %v2217, 1.0
  %v2336 = vadd.f32 %v2219, 1.0
  %v2337 = vadd.f32 %v2221, 1.0
  %v2338 = vadd.f32 %v2223, 1.0
  %v2339 = vadd.f32 %v2225, 1.0
  %v2340 = vadd.f32 %v2227, 1.0
  %v2341 = vadd.f32 %v2229, 1.0
  %v2342 = vadd.f32 %v2231, 1.0
  %v2343 = vadd.f32 %v2233, 1.0
  %v2344 = vadd.f32 %v2235, 1.0
  %v2345 = vadd.f32 %v2237, 1.0
  %v2346 = vadd.f32 %v2239, 1.0
  %v2347 = vadd.f32 %v2241, 1.0
  %v2348 = vadd.f32 %v2243, 1.0
  %v2349 = vadd.f32 %v2245, 1.0
  %v2350 = vadd.f32 %v2247, 1.0
  %v2351 = vadd.f32 %v2249, 1.0
  %v2352 = vadd.f32 %v2251, 1.0
  %v2353 = vadd.f32 %v2253, 1.0
  %v2354 = vadd.f32 %v2255, 1.0
  %v2355 = vadd.f32 %v2257, 1.0
  %v2356 = vadd.f32 %v2259, 1.0
  %v2357 = vadd.f32 %v2261, 1.0
  %v2358 = vadd.f32 %v2263, 1.0
  %v2359 = vadd.f32 %v2265, 1.0
  %v2360 = vadd.f32 %v2267, 1.0
  %v2361 = vadd.f32 %v2269, 1.0
  %v2362 = vadd.f32 %v2271, 1.0
  %v2363 = vadd.f32 %v2273, 1.0
  %v2364 = vadd.f32 %v2275, 1.0
  %v2365 = vadd.f32 %v2277, 1.0
  %v2366 = vadd.f32 %v2279, 1.0
  %v2367 = vadd.f32 %v2281, 1.0
  %v2368 = vadd.f32 %v2283, 1.0
  %v2369 = vadd.f32 %v2285, 1.0
  %v2370 = vadd.f32 %v2287, 1.0
  %v2371 = vadd.f32 %v2289, 1.0
  %v2372 = vadd.f32 %v2291, 1.0
  %v2373 = vadd.f32 %v2293, 1.0
  %v2374 = vadd.f32 %v2295, 1.0
  %v2375 = vadd.f32 %v2297, 1.0
  %v2376 = vadd.f32 %v2299, 1.0
  %v2377 = vadd.f32 %v2301, 1.0
  %v2378 = vadd.f32 %v2303, 1.0
  %v2379 = vadd.f32 %v2305, 1.0
  %v2380 = vadd.f32 %v2307, 1.0
  %v2381 = vadd.f32 %v2309, 1.0
  %v2382 = vadd.f32 %v2311, 1.0
  %v2383 = vadd.f32 %v2313, 1.0
  %v2384 = vadd.f32 %v2315, 1.0
  %v2385 = vadd.f32 %v2317, 1.0
  %v2386 = vadd.f32 %v2319, 1.0
  %v2387 = vadd.f32 %v2321, 1.0
  %v2388 = vadd.f32 %v2323, 1.0
  %v2389 = vadd.f32 %v2325, 1.0
  %v2390 = vrcp.pop %v2326
  %v2391 = vrcp.pop %v2327
  %v2392 = vrcp.pop %v2328
  %v2393 = vrcp.pop %v2329
  %v2394 = vrcp.pop %v2330
  %v2395 = vrcp.pop %v2331
  %v2396 = vrcp.pop %v2332
  %v2397 = vrcp.pop %v2333
  %v2398 = vrcp.pop %v2334
  %v2399 = vrcp.pop %v2335
  %v2400 = vrcp.pop %v2336
  %v2401 = vrcp.pop %v2337
  %v2402 = vrcp.pop %v2338
  %v2403 = vrcp.pop %v2339
  %v2404 = vrcp.pop %v2340
  %v2405 = vrcp.pop %v2341
  %v2406 = vrcp.pop %v2342
  %v2407 = vrcp.pop %v2343
  %v2408 = vrcp.pop %v2344
  %v2409 = vrcp.pop %v2345
  %v2410 = vrcp.pop %v2346
  %v2411 = vrcp.pop %v2347
  %v2412 = vrcp.pop %v2348
  %v2413 = vrcp.pop %v2349
  %v2414 = vrcp.pop %v2350
  %v2415 = vrcp.pop %v2351
  %v2416 = vrcp.pop %v2352
  %v2417 = vrcp.pop %v2353
  %v2418 = vrcp.pop %v2354
  %v2419 = vrcp.pop %v2355
  %v2420 = vrcp.pop %v2356
  %v2421 = vrcp.pop %v2357
  %v2422 = vrcp.pop %v2358
  %v2423 = vrcp.pop %v2359
  %v2424 = vrcp.pop %v2360
  %v2425 = vrcp.pop %v2361
  %v2426 = vrcp.pop %v2362
  %v2427 = vrcp.pop %v2363
  %v2428 = vrcp.pop %v2364
  %v2429 = vrcp.pop %v2365
  %v2430 = vrcp.pop %v2366
  %v2431 = vrcp.pop %v2367
  %v2432 = vrcp.pop %v2368
  %v2433 = vrcp.pop %v2369
  %v2434 = vrcp.pop %v2370
  %v2435 = vrcp.pop %v2371
  %v2436 = vrcp.pop %v2372
  %v2437 = vrcp.pop %v2373
  %v2438 = vrcp.pop %v2374
  %v2439 = vrcp.pop %v2375
  %v2440 = vrcp.pop %v2376
  %v2441 = vrcp.pop %v2377
  %v2442 = vrcp.pop %v2378
  %v2443 = vrcp.pop %v2379
  %v2444 = vrcp.pop %v2380
  %v2445 = vrcp.pop %v2381
  %v2446 = vrcp.pop %v2382
  %v2447 = vrcp.pop %v2383
  %v2448 = vrcp.pop %v2384
  %v2449 = vrcp.pop %v2385
  %v2450 = vrcp.pop %v2386
  %v2451 = vrcp.pop %v2387
  %v2452 = vrcp.pop %v2388
  %v2453 = vrcp.pop %v2389
  %v2454 = vld [vmem:[%s7] sm:$0xf]
  %v2455 = vld [vmem:[%s7 + $0x4] sm:$0xf]
  %v2456 = vld [vmem:[%s7 + $0x8] sm:$0xf]
  %v2457 = vld [vmem:[%s7 + $0xc] sm:$0xf]
  %v2458 = vld [vmem:[%s8] sm:$0x1]
  %v2459 = vpack.c.bf16 %v2391, %v2390
  %v2460 = vpack.c.bf16 %v2393, %v2392
  %v2461 = vpack.c.bf16 %v2395, %v2394
  %v2462 = vpack.c.bf16 %v2397, %v2396
  %v2463 = vpack.c.bf16 %v2399, %v2398
  %v2464 = vpack.c.bf16 %v2401, %v2400
  %v2465 = vpack.c.bf16 %v2403, %v2402
  %v2466 = vpack.c.bf16 %v2405, %v2404
  %v2467 = vpack.c.bf16 %v2407, %v2406
  %v2468 = vpack.c.bf16 %v2409, %v2408
  %v2469 = vpack.c.bf16 %v2411, %v2410
  %v2470 = vpack.c.bf16 %v2413, %v2412
  %v2471 = vpack.c.bf16 %v2415, %v2414
  %v2472 = vpack.c.bf16 %v2417, %v2416
  %v2473 = vpack.c.bf16 %v2419, %v2418
  %v2474 = vpack.c.bf16 %v2421, %v2420
  %v2475 = vpack.c.bf16 %v2423, %v2422
  %v2476 = vpack.c.bf16 %v2425, %v2424
  %v2477 = vpack.c.bf16 %v2427, %v2426
  %v2478 = vpack.c.bf16 %v2429, %v2428
  %v2479 = vpack.c.bf16 %v2431, %v2430
  %v2480 = vpack.c.bf16 %v2433, %v2432
  %v2481 = vpack.c.bf16 %v2435, %v2434
  %v2482 = vpack.c.bf16 %v2437, %v2436
  %v2483 = vpack.c.bf16 %v2439, %v2438
  %v2484 = vpack.c.bf16 %v2441, %v2440
  %v2485 = vpack.c.bf16 %v2443, %v2442
  %v2486 = vpack.c.bf16 %v2445, %v2444
  %v2487 = vpack.c.bf16 %v2447, %v2446
  %v2488 = vpack.c.bf16 %v2449, %v2448
  %v2489 = vpack.c.bf16 %v2451, %v2450
  %v2490 = vpack.c.bf16 %v2453, %v2452
  %v2492 = vlaneseq
  %v2493 = vshrl.u32 %v2492, 7
  %v2494 = vsub.s32 0, %v2493
  %v2495 = vrot.slane %v2458, %v2494
  %v2501 = vunpack.c.l.b16 %v2454
  %v2502 = vunpack.c.l.b16 %v2455
  %v2503 = vunpack.c.l.b16 %v2456
  %v2504 = vunpack.c.l.b16 %v2457
  %v2505 = vpack.c.b16 %v2502, %v2501
  %v2506 = vpack.c.b16 %v2504, %v2503
  %v2510 = vsel %vm931, %v2459, 0
  %v2513 = vsel %vm931, %v2460, 0
  %v2516 = vsel %vm931, %v2461, 0
  %v2519 = vsel %vm931, %v2462, 0
  %v2522 = vsel %vm931, %v2463, 0
  %v2525 = vsel %vm931, %v2464, 0
  %v2528 = vsel %vm931, %v2465, 0
  %v2531 = vsel %vm931, %v2466, 0
  %v2534 = vsel %vm931, %v2467, 0
  %v2537 = vsel %vm931, %v2468, 0
  %v2540 = vsel %vm931, %v2469, 0
  %v2543 = vsel %vm931, %v2470, 0
  %v2546 = vsel %vm931, %v2471, 0
  %v2549 = vsel %vm931, %v2472, 0
  %v2552 = vsel %vm931, %v2473, 0
  %v2555 = vsel %vm931, %v2474, 0
  %v2558 = vsel %vm931, %v2475, 0
  %v2561 = vsel %vm931, %v2476, 0
  %v2564 = vsel %vm931, %v2477, 0
  %v2567 = vsel %vm931, %v2478, 0
  %v2570 = vsel %vm931, %v2479, 0
  %v2573 = vsel %vm931, %v2480, 0
  %v2576 = vsel %vm931, %v2481, 0
  %v2579 = vsel %vm931, %v2482, 0
  %v2582 = vsel %vm931, %v2483, 0
  %v2585 = vsel %vm931, %v2484, 0
  %v2588 = vsel %vm931, %v2485, 0
  %v2591 = vsel %vm931, %v2486, 0
  %v2594 = vsel %vm931, %v2487, 0
  %v2597 = vsel %vm931, %v2488, 0
  %v2600 = vsel %vm931, %v2489, 0
  %v2603 = vsel %vm931, %v2490, 0
  %2605 = vmatprep.subr.bf16.mxu0 0
  %2606 = vmatpush1.bf16.msra.mxu0 %v2505
  %2607 = vmatprep.subr.bf16.mxu0 0
  %2608 = vmatpush1.bf16.msra.mxu0 %v2506
  %2609 = vmatprep.subr.bf16.mxu0 0
  %2610 = vmatpush1.bf16.msra.mxu0 0
  %2611 = vmatprep.subr.bf16.mxu0 0
  %2612 = vmatpush1.bf16.msra.mxu0 0
  %2613 = vmatprep.subr.bf16.mxu0 0
  %2614 = vmatpush1.bf16.msra.mxu0 0
  %2615 = vmatprep.subr.bf16.mxu0 0
  %2616 = vmatpush1.bf16.msra.mxu0 0
  %2617 = vmatprep.subr.bf16.mxu0 0
  %2618 = vmatpush1.bf16.msra.mxu0 0
  %2619 = vmatprep.subr.bf16.mxu0 0
  %2620 = vmatpush1.bf16.msra.mxu0 0
  %2621 = vmatprep.subr.bf16.mxu0 0
  %2622 = vmatpush1.bf16.msra.mxu0 0
  %2623 = vmatprep.subr.bf16.mxu0 0
  %2624 = vmatpush1.bf16.msra.mxu0 0
  %2625 = vmatprep.subr.bf16.mxu0 0
  %2626 = vmatpush1.bf16.msra.mxu0 0
  %2627 = vmatprep.subr.bf16.mxu0 0
  %2628 = vmatpush1.bf16.msra.mxu0 0
  %2629 = vmatprep.subr.bf16.mxu0 0
  %2630 = vmatpush1.bf16.msra.mxu0 0
  %2631 = vmatprep.subr.bf16.mxu0 0
  %2632 = vmatpush1.bf16.msra.mxu0 0
  %2633 = vmatprep.subr.bf16.mxu0 0
  %2634 = vmatpush1.bf16.msra.mxu0 0
  %2635 = vmatprep.subr.bf16.mxu0 0
  %2636 = vmatpush1.bf16.msra.mxu0 0
  %2637 = vmatprep.mubr.bf16.mxu0 0
  %2638 = vmatmul.mubr.bf16.gmra.mrb[0].mxu0 %v2510
  %v2639 = vpop.f32.mrb[0].mxu0
  %v2640 = vadd.f32 %v2495, %v2639
  %v2641 = vpop.f32.mrb[0].mxu0
  %v2642 = vpop.f32.mrb[0].mxu0
  %v2643 = vadd.f32 %v2495, %v2642
  %v2644 = vpop.f32.mrb[0].mxu0
  %2645 = vmatprep.mubr.bf16.mxu0 0
  %2646 = vmatmul.mubr.bf16.gmra.mrb[0].mxu0 %v2513
  %v2647 = vpop.f32.mrb[0].mxu0
  %v2648 = vadd.f32 %v2495, %v2647
  %v2649 = vpop.f32.mrb[0].mxu0
  %v2650 = vpop.f32.mrb[0].mxu0
  %v2651 = vadd.f32 %v2495, %v2650
  %v2652 = vpop.f32.mrb[0].mxu0
  %2653 = vmatprep.mubr.bf16.mxu0 0
  %2654 = vmatmul.mubr.bf16.gmra.mrb[0].mxu0 %v2516
  %v2655 = vpop.f32.mrb[0].mxu0
  %v2656 = vadd.f32 %v2495, %v2655
  %v2657 = vpop.f32.mrb[0].mxu0
  %v2658 = vpop.f32.mrb[0].mxu0
  %v2659 = vadd.f32 %v2495, %v2658
  %v2660 = vpop.f32.mrb[0].mxu0
  %2661 = vmatprep.mubr.bf16.mxu0 0
  %2662 = vmatmul.mubr.bf16.gmra.mrb[0].mxu0 %v2519
  %v2663 = vpop.f32.mrb[0].mxu0
  %v2664 = vadd.f32 %v2495, %v2663
  %v2665 = vpop.f32.mrb[0].mxu0
  %v2666 = vpop.f32.mrb[0].mxu0
  %v2667 = vadd.f32 %v2495, %v2666
  %v2668 = vpop.f32.mrb[0].mxu0
  %2669 = vmatprep.mubr.bf16.mxu0 0
  %2670 = vmatmul.mubr.bf16.gmra.mrb[0].mxu0 %v2522
  %v2671 = vpop.f32.mrb[0].mxu0
  %v2672 = vadd.f32 %v2495, %v2671
  %v2673 = vpop.f32.mrb[0].mxu0
  %v2674 = vpop.f32.mrb[0].mxu0
  %v2675 = vadd.f32 %v2495, %v2674
  %v2676 = vpop.f32.mrb[0].mxu0
  %2677 = vmatprep.mubr.bf16.mxu0 0
  %2678 = vmatmul.mubr.bf16.gmra.mrb[0].mxu0 %v2525
  %v2679 = vpop.f32.mrb[0].mxu0
  %v2680 = vadd.f32 %v2495, %v2679
  %v2681 = vpop.f32.mrb[0].mxu0
  %v2682 = vpop.f32.mrb[0].mxu0
  %v2683 = vadd.f32 %v2495, %v2682
  %v2684 = vpop.f32.mrb[0].mxu0
  %2685 = vmatprep.mubr.bf16.mxu0 0
  %2686 = vmatmul.mubr.bf16.gmra.mrb[0].mxu0 %v2528
  %v2687 = vpop.f32.mrb[0].mxu0
  %v2688 = vadd.f32 %v2495, %v2687
  %v2689 = vpop.f32.mrb[0].mxu0
  %v2690 = vpop.f32.mrb[0].mxu0
  %v2691 = vadd.f32 %v2495, %v2690
  %v2692 = vpop.f32.mrb[0].mxu0
  %2693 = vmatprep.mubr.bf16.mxu0 0
  %2694 = vmatmul.mubr.bf16.gmra.mrb[0].mxu0 %v2531
  %v2695 = vpop.f32.mrb[0].mxu0
  %v2696 = vadd.f32 %v2495, %v2695
  %v2697 = vpop.f32.mrb[0].mxu0
  %v2698 = vpop.f32.mrb[0].mxu0
  %v2699 = vadd.f32 %v2495, %v2698
  %v2700 = vpop.f32.mrb[0].mxu0
  %2701 = vmatprep.mubr.bf16.mxu0 0
  %2702 = vmatmul.mubr.bf16.gmra.mrb[0].mxu0 %v2534
  %v2703 = vpop.f32.mrb[0].mxu0
  %v2704 = vadd.f32 %v2495, %v2703
  %v2705 = vpop.f32.mrb[0].mxu0
  %v2706 = vpop.f32.mrb[0].mxu0
  %v2707 = vadd.f32 %v2495, %v2706
  %v2708 = vpop.f32.mrb[0].mxu0
  %2709 = vmatprep.mubr.bf16.mxu0 0
  %2710 = vmatmul.mubr.bf16.gmra.mrb[0].mxu0 %v2537
  %v2711 = vpop.f32.mrb[0].mxu0
  %v2712 = vadd.f32 %v2495, %v2711
  %v2713 = vpop.f32.mrb[0].mxu0
  %v2714 = vpop.f32.mrb[0].mxu0
  %v2715 = vadd.f32 %v2495, %v2714
  %v2716 = vpop.f32.mrb[0].mxu0
  %2717 = vmatprep.mubr.bf16.mxu0 0
  %2718 = vmatmul.mubr.bf16.gmra.mrb[0].mxu0 %v2540
  %v2719 = vpop.f32.mrb[0].mxu0
  %v2720 = vadd.f32 %v2495, %v2719
  %v2721 = vpop.f32.mrb[0].mxu0
  %v2722 = vpop.f32.mrb[0].mxu0
  %v2723 = vadd.f32 %v2495, %v2722
  %v2724 = vpop.f32.mrb[0].mxu0
  %2725 = vmatprep.mubr.bf16.mxu0 0
  %2726 = vmatmul.mubr.bf16.gmra.mrb[0].mxu0 %v2543
  %v2727 = vpop.f32.mrb[0].mxu0
  %v2728 = vadd.f32 %v2495, %v2727
  %v2729 = vpop.f32.mrb[0].mxu0
  %v2730 = vpop.f32.mrb[0].mxu0
  %v2731 = vadd.f32 %v2495, %v2730
  %v2732 = vpop.f32.mrb[0].mxu0
  %2733 = vmatprep.mubr.bf16.mxu0 0
  %2734 = vmatmul.mubr.bf16.gmra.mrb[0].mxu0 %v2546
  %v2735 = vpop.f32.mrb[0].mxu0
  %v2736 = vadd.f32 %v2495, %v2735
  %v2737 = vpop.f32.mrb[0].mxu0
  %v2738 = vpop.f32.mrb[0].mxu0
  %v2739 = vadd.f32 %v2495, %v2738
  %v2740 = vpop.f32.mrb[0].mxu0
  %2741 = vmatprep.mubr.bf16.mxu0 0
  %2742 = vmatmul.mubr.bf16.gmra.mrb[0].mxu0 %v2549
  %v2743 = vpop.f32.mrb[0].mxu0
  %v2744 = vadd.f32 %v2495, %v2743
  %v2745 = vpop.f32.mrb[0].mxu0
  %v2746 = vpop.f32.mrb[0].mxu0
  %v2747 = vadd.f32 %v2495, %v2746
  %v2748 = vpop.f32.mrb[0].mxu0
  %2749 = vmatprep.mubr.bf16.mxu0 0
  %2750 = vmatmul.mubr.bf16.gmra.mrb[0].mxu0 %v2552
  %v2751 = vpop.f32.mrb[0].mxu0
  %v2752 = vadd.f32 %v2495, %v2751
  %v2753 = vpop.f32.mrb[0].mxu0
  %v2754 = vpop.f32.mrb[0].mxu0
  %v2755 = vadd.f32 %v2495, %v2754
  %v2756 = vpop.f32.mrb[0].mxu0
  %2757 = vmatprep.mubr.bf16.mxu0 0
  %2758 = vmatmul.mubr.bf16.gmra.mrb[0].mxu0 %v2555
  %v2759 = vpop.f32.mrb[0].mxu0
  %v2760 = vadd.f32 %v2495, %v2759
  %v2761 = vpop.f32.mrb[0].mxu0
  %v2762 = vpop.f32.mrb[0].mxu0
  %v2763 = vadd.f32 %v2495, %v2762
  %v2764 = vpop.f32.mrb[0].mxu0
  %2765 = vmatprep.mubr.bf16.mxu0 0
  %2766 = vmatmul.mubr.bf16.gmra.mrb[0].mxu0 %v2558
  %v2767 = vpop.f32.mrb[0].mxu0
  %v2768 = vadd.f32 %v2495, %v2767
  %v2769 = vpop.f32.mrb[0].mxu0
  %v2770 = vpop.f32.mrb[0].mxu0
  %v2771 = vadd.f32 %v2495, %v2770
  %v2772 = vpop.f32.mrb[0].mxu0
  %2773 = vmatprep.mubr.bf16.mxu0 0
  %2774 = vmatmul.mubr.bf16.gmra.mrb[0].mxu0 %v2561
  %v2775 = vpop.f32.mrb[0].mxu0
  %v2776 = vadd.f32 %v2495, %v2775
  %v2777 = vpop.f32.mrb[0].mxu0
  %v2778 = vpop.f32.mrb[0].mxu0
  %v2779 = vadd.f32 %v2495, %v2778
  %v2780 = vpop.f32.mrb[0].mxu0
  %2781 = vmatprep.mubr.bf16.mxu0 0
  %2782 = vmatmul.mubr.bf16.gmra.mrb[0].mxu0 %v2564
  %v2783 = vpop.f32.mrb[0].mxu0
  %v2784 = vadd.f32 %v2495, %v2783
  %v2785 = vpop.f32.mrb[0].mxu0
  %v2786 = vpop.f32.mrb[0].mxu0
  %v2787 = vadd.f32 %v2495, %v2786
  %v2788 = vpop.f32.mrb[0].mxu0
  %2789 = vmatprep.mubr.bf16.mxu0 0
  %2790 = vmatmul.mubr.bf16.gmra.mrb[0].mxu0 %v2567
  %v2791 = vpop.f32.mrb[0].mxu0
  %v2792 = vadd.f32 %v2495, %v2791
  %v2793 = vpop.f32.mrb[0].mxu0
  %v2794 = vpop.f32.mrb[0].mxu0
  %v2795 = vadd.f32 %v2495, %v2794
  %v2796 = vpop.f32.mrb[0].mxu0
  %2797 = vmatprep.mubr.bf16.mxu0 0
  %2798 = vmatmul.mubr.bf16.gmra.mrb[0].mxu0 %v2570
  %v2799 = vpop.f32.mrb[0].mxu0
  %v2800 = vadd.f32 %v2495, %v2799
  %v2801 = vpop.f32.mrb[0].mxu0
  %v2802 = vpop.f32.mrb[0].mxu0
  %v2803 = vadd.f32 %v2495, %v2802
  %v2804 = vpop.f32.mrb[0].mxu0
  %2805 = vmatprep.mubr.bf16.mxu0 0
  %2806 = vmatmul.mubr.bf16.gmra.mrb[0].mxu0 %v2573
  %v2807 = vpop.f32.mrb[0].mxu0
  %v2808 = vadd.f32 %v2495, %v2807
  %v2809 = vpop.f32.mrb[0].mxu0
  %v2810 = vpop.f32.mrb[0].mxu0
  %v2811 = vadd.f32 %v2495, %v2810
  %v2812 = vpop.f32.mrb[0].mxu0
  %2813 = vmatprep.mubr.bf16.mxu0 0
  %2814 = vmatmul.mubr.bf16.gmra.mrb[0].mxu0 %v2576
  %v2815 = vpop.f32.mrb[0].mxu0
  %v2816 = vadd.f32 %v2495, %v2815
  %v2817 = vpop.f32.mrb[0].mxu0
  %v2818 = vpop.f32.mrb[0].mxu0
  %v2819 = vadd.f32 %v2495, %v2818
  %v2820 = vpop.f32.mrb[0].mxu0
  %2821 = vmatprep.mubr.bf16.mxu0 0
  %2822 = vmatmul.mubr.bf16.gmra.mrb[0].mxu0 %v2579
  %v2823 = vpop.f32.mrb[0].mxu0
  %v2824 = vadd.f32 %v2495, %v2823
  %v2825 = vpop.f32.mrb[0].mxu0
  %v2826 = vpop.f32.mrb[0].mxu0
  %v2827 = vadd.f32 %v2495, %v2826
  %v2828 = vpop.f32.mrb[0].mxu0
  %2829 = vmatprep.mubr.bf16.mxu0 0
  %2830 = vmatmul.mubr.bf16.gmra.mrb[0].mxu0 %v2582
  %v2831 = vpop.f32.mrb[0].mxu0
  %v2832 = vadd.f32 %v2495, %v2831
  %v2833 = vpop.f32.mrb[0].mxu0
  %v2834 = vpop.f32.mrb[0].mxu0
  %v2835 = vadd.f32 %v2495, %v2834
  %v2836 = vpop.f32.mrb[0].mxu0
  %2837 = vmatprep.mubr.bf16.mxu0 0
  %2838 = vmatmul.mubr.bf16.gmra.mrb[0].mxu0 %v2585
  %v2839 = vpop.f32.mrb[0].mxu0
  %v2840 = vadd.f32 %v2495, %v2839
  %v2841 = vpop.f32.mrb[0].mxu0
  %v2842 = vpop.f32.mrb[0].mxu0
  %v2843 = vadd.f32 %v2495, %v2842
  %v2844 = vpop.f32.mrb[0].mxu0
  %2845 = vmatprep.mubr.bf16.mxu0 0
  %2846 = vmatmul.mubr.bf16.gmra.mrb[0].mxu0 %v2588
  %v2847 = vpop.f32.mrb[0].mxu0
  %v2848 = vadd.f32 %v2495, %v2847
  %v2849 = vpop.f32.mrb[0].mxu0
  %v2850 = vpop.f32.mrb[0].mxu0
  %v2851 = vadd.f32 %v2495, %v2850
  %v2852 = vpop.f32.mrb[0].mxu0
  %2853 = vmatprep.mubr.bf16.mxu0 0
  %2854 = vmatmul.mubr.bf16.gmra.mrb[0].mxu0 %v2591
  %v2855 = vpop.f32.mrb[0].mxu0
  %v2856 = vadd.f32 %v2495, %v2855
  %v2857 = vpop.f32.mrb[0].mxu0
  %v2858 = vpop.f32.mrb[0].mxu0
  %v2859 = vadd.f32 %v2495, %v2858
  %v2860 = vpop.f32.mrb[0].mxu0
  %2861 = vmatprep.mubr.bf16.mxu0 0
  %2862 = vmatmul.mubr.bf16.gmra.mrb[0].mxu0 %v2594
  %v2863 = vpop.f32.mrb[0].mxu0
  %v2864 = vadd.f32 %v2495, %v2863
  %v2865 = vpop.f32.mrb[0].mxu0
  %v2866 = vpop.f32.mrb[0].mxu0
  %v2867 = vadd.f32 %v2495, %v2866
  %v2868 = vpop.f32.mrb[0].mxu0
  %2869 = vmatprep.mubr.bf16.mxu0 0
  %2870 = vmatmul.mubr.bf16.gmra.mrb[0].mxu0 %v2597
  %v2871 = vpop.f32.mrb[0].mxu0
  %v2872 = vadd.f32 %v2495, %v2871
  %v2873 = vpop.f32.mrb[0].mxu0
  %v2874 = vpop.f32.mrb[0].mxu0
  %v2875 = vadd.f32 %v2495, %v2874
  %v2876 = vpop.f32.mrb[0].mxu0
  %2877 = vmatprep.mubr.bf16.mxu0 0
  %2878 = vmatmul.mubr.bf16.gmra.mrb[0].mxu0 %v2600
  %v2879 = vpop.f32.mrb[0].mxu0
  %v2880 = vadd.f32 %v2495, %v2879
  %v2881 = vpop.f32.mrb[0].mxu0
  %v2882 = vpop.f32.mrb[0].mxu0
  %v2883 = vadd.f32 %v2495, %v2882
  %v2884 = vpop.f32.mrb[0].mxu0
  %2885 = vmatprep.mubr.bf16.mxu0 0
  %2886 = vmatmul.mubr.bf16.gmra.mrb[0].mxu0 %v2603
  %v2887 = vpop.f32.mrb[0].mxu0
  %v2888 = vadd.f32 %v2495, %v2887
  %v2889 = vpop.f32.mrb[0].mxu0
  %v2890 = vpop.f32.mrb[0].mxu0
  %v2891 = vadd.f32 %v2495, %v2890
  %v2892 = vpop.f32.mrb[0].mxu0
  %2893 = vdwg.mxu0
  %v2894 = vsub.f32 0.0, %v2640
  %v2895 = vsub.f32 0.0, %v2643
  %v2896 = vsub.f32 0.0, %v2648
  %v2897 = vsub.f32 0.0, %v2651
  %v2898 = vsub.f32 0.0, %v2656
  %v2899 = vsub.f32 0.0, %v2659
  %v2900 = vsub.f32 0.0, %v2664
  %v2901 = vsub.f32 0.0, %v2667
  %v2902 = vsub.f32 0.0, %v2672
  %v2903 = vsub.f32 0.0, %v2675
  %v2904 = vsub.f32 0.0, %v2680
  %v2905 = vsub.f32 0.0, %v2683
  %v2906 = vsub.f32 0.0, %v2688
  %v2907 = vsub.f32 0.0, %v2691
  %v2908 = vsub.f32 0.0, %v2696
  %v2909 = vsub.f32 0.0, %v2699
  %v2910 = vsub.f32 0.0, %v2704
  %v2911 = vsub.f32 0.0, %v2707
  %v2912 = vsub.f32 0.0, %v2712
  %v2913 = vsub.f32 0.0, %v2715
  %v2914 = vsub.f32 0.0, %v2720
  %v2915 = vsub.f32 0.0, %v2723
  %v2916 = vsub.f32 0.0, %v2728
  %v2917 = vsub.f32 0.0, %v2731
  %v2918 = vsub.f32 0.0, %v2736
  %v2919 = vsub.f32 0.0, %v2739
  %v2920 = vsub.f32 0.0, %v2744
  %v2921 = vsub.f32 0.0, %v2747
  %v2922 = vsub.f32 0.0, %v2752
  %v2923 = vsub.f32 0.0, %v2755
  %v2924 = vsub.f32 0.0, %v2760
  %v2925 = vsub.f32 0.0, %v2763
  %v2926 = vsub.f32 0.0, %v2768
  %v2927 = vsub.f32 0.0, %v2771
  %v2928 = vsub.f32 0.0, %v2776
  %v2929 = vsub.f32 0.0, %v2779
  %v2930 = vsub.f32 0.0, %v2784
  %v2931 = vsub.f32 0.0, %v2787
  %v2932 = vsub.f32 0.0, %v2792
  %v2933 = vsub.f32 0.0, %v2795
  %v2934 = vsub.f32 0.0, %v2800
  %v2935 = vsub.f32 0.0, %v2803
  %v2936 = vsub.f32 0.0, %v2808
  %v2937 = vsub.f32 0.0, %v2811
  %v2938 = vsub.f32 0.0, %v2816
  %v2939 = vsub.f32 0.0, %v2819
  %v2940 = vsub.f32 0.0, %v2824
  %v2941 = vsub.f32 0.0, %v2827
  %v2942 = vsub.f32 0.0, %v2832
  %v2943 = vsub.f32 0.0, %v2835
  %v2944 = vsub.f32 0.0, %v2840
  %v2945 = vsub.f32 0.0, %v2843
  %v2946 = vsub.f32 0.0, %v2848
  %v2947 = vsub.f32 0.0, %v2851
  %v2948 = vsub.f32 0.0, %v2856
  %v2949 = vsub.f32 0.0, %v2859
  %v2950 = vsub.f32 0.0, %v2864
  %v2951 = vsub.f32 0.0, %v2867
  %v2952 = vsub.f32 0.0, %v2872
  %v2953 = vsub.f32 0.0, %v2875
  %v2954 = vsub.f32 0.0, %v2880
  %v2955 = vsub.f32 0.0, %v2883
  %v2956 = vsub.f32 0.0, %v2888
  %v2957 = vsub.f32 0.0, %v2891
  %v2958 = vmul.f32 %v2894, 1.442695
  %v2959 = vpow.pop %v2958
  %v2960 = vmul.f32 %v2895, 1.442695
  %v2961 = vpow.pop %v2960
  %v2962 = vmul.f32 %v2896, 1.442695
  %v2963 = vpow.pop %v2962
  %v2964 = vmul.f32 %v2897, 1.442695
  %v2965 = vpow.pop %v2964
  %v2966 = vmul.f32 %v2898, 1.442695
  %v2967 = vpow.pop %v2966
  %v2968 = vmul.f32 %v2899, 1.442695
  %v2969 = vpow.pop %v2968
  %v2970 = vmul.f32 %v2900, 1.442695
  %v2971 = vpow.pop %v2970
  %v2972 = vmul.f32 %v2901, 1.442695
  %v2973 = vpow.pop %v2972
  %v2974 = vmul.f32 %v2902, 1.442695
  %v2975 = vpow.pop %v2974
  %v2976 = vmul.f32 %v2903, 1.442695
  %v2977 = vpow.pop %v2976
  %v2978 = vmul.f32 %v2904, 1.442695
  %v2979 = vpow.pop %v2978
  %v2980 = vmul.f32 %v2905, 1.442695
  %v2981 = vpow.pop %v2980
  %v2982 = vmul.f32 %v2906, 1.442695
  %v2983 = vpow.pop %v2982
  %v2984 = vmul.f32 %v2907, 1.442695
  %v2985 = vpow.pop %v2984
  %v2986 = vmul.f32 %v2908, 1.442695
  %v2987 = vpow.pop %v2986
  %v2988 = vmul.f32 %v2909, 1.442695
  %v2989 = vpow.pop %v2988
  %v2990 = vmul.f32 %v2910, 1.442695
  %v2991 = vpow.pop %v2990
  %v2992 = vmul.f32 %v2911, 1.442695
  %v2993 = vpow.pop %v2992
  %v2994 = vmul.f32 %v2912, 1.442695
  %v2995 = vpow.pop %v2994
  %v2996 = vmul.f32 %v2913, 1.442695
  %v2997 = vpow.pop %v2996
  %v2998 = vmul.f32 %v2914, 1.442695
  %v2999 = vpow.pop %v2998
  %v3000 = vmul.f32 %v2915, 1.442695
  %v3001 = vpow.pop %v3000
  %v3002 = vmul.f32 %v2916, 1.442695
  %v3003 = vpow.pop %v3002
  %v3004 = vmul.f32 %v2917, 1.442695
  %v3005 = vpow.pop %v3004
  %v3006 = vmul.f32 %v2918, 1.442695
  %v3007 = vpow.pop %v3006
  %v3008 = vmul.f32 %v2919, 1.442695
  %v3009 = vpow.pop %v3008
  %v3010 = vmul.f32 %v2920, 1.442695
  %v3011 = vpow.pop %v3010
  %v3012 = vmul.f32 %v2921, 1.442695
  %v3013 = vpow.pop %v3012
  %v3014 = vmul.f32 %v2922, 1.442695
  %v3015 = vpow.pop %v3014
  %v3016 = vmul.f32 %v2923, 1.442695
  %v3017 = vpow.pop %v3016
  %v3018 = vmul.f32 %v2924, 1.442695
  %v3019 = vpow.pop %v3018
  %v3020 = vmul.f32 %v2925, 1.442695
  %v3021 = vpow.pop %v3020
  %v3022 = vmul.f32 %v2926, 1.442695
  %v3023 = vpow.pop %v3022
  %v3024 = vmul.f32 %v2927, 1.442695
  %v3025 = vpow.pop %v3024
  %v3026 = vmul.f32 %v2928, 1.442695
  %v3027 = vpow.pop %v3026
  %v3028 = vmul.f32 %v2929, 1.442695
  %v3029 = vpow.pop %v3028
  %v3030 = vmul.f32 %v2930, 1.442695
  %v3031 = vpow.pop %v3030
  %v3032 = vmul.f32 %v2931, 1.442695
  %v3033 = vpow.pop %v3032
  %v3034 = vmul.f32 %v2932, 1.442695
  %v3035 = vpow.pop %v3034
  %v3036 = vmul.f32 %v2933, 1.442695
  %v3037 = vpow.pop %v3036
  %v3038 = vmul.f32 %v2934, 1.442695
  %v3039 = vpow.pop %v3038
  %v3040 = vmul.f32 %v2935, 1.442695
  %v3041 = vpow.pop %v3040
  %v3042 = vmul.f32 %v2936, 1.442695
  %v3043 = vpow.pop %v3042
  %v3044 = vmul.f32 %v2937, 1.442695
  %v3045 = vpow.pop %v3044
  %v3046 = vmul.f32 %v2938, 1.442695
  %v3047 = vpow.pop %v3046
  %v3048 = vmul.f32 %v2939, 1.442695
  %v3049 = vpow.pop %v3048
  %v3050 = vmul.f32 %v2940, 1.442695
  %v3051 = vpow.pop %v3050
  %v3052 = vmul.f32 %v2941, 1.442695
  %v3053 = vpow.pop %v3052
  %v3054 = vmul.f32 %v2942, 1.442695
  %v3055 = vpow.pop %v3054
  %v3056 = vmul.f32 %v2943, 1.442695
  %v3057 = vpow.pop %v3056
  %v3058 = vmul.f32 %v2944, 1.442695
  %v3059 = vpow.pop %v3058
  %v3060 = vmul.f32 %v2945, 1.442695
  %v3061 = vpow.pop %v3060
  %v3062 = vmul.f32 %v2946, 1.442695
  %v3063 = vpow.pop %v3062
  %v3064 = vmul.f32 %v2947, 1.442695
  %v3065 = vpow.pop %v3064
  %v3066 = vmul.f32 %v2948, 1.442695
  %v3067 = vpow.pop %v3066
  %v3068 = vmul.f32 %v2949, 1.442695
  %v3069 = vpow.pop %v3068
  %v3070 = vmul.f32 %v2950, 1.442695
  %v3071 = vpow.pop %v3070
  %v3072 = vmul.f32 %v2951, 1.442695
  %v3073 = vpow.pop %v3072
  %v3074 = vmul.f32 %v2952, 1.442695
  %v3075 = vpow.pop %v3074
  %v3076 = vmul.f32 %v2953, 1.442695
  %v3077 = vpow.pop %v3076
  %v3078 = vmul.f32 %v2954, 1.442695
  %v3079 = vpow.pop %v3078
  %v3080 = vmul.f32 %v2955, 1.442695
  %v3081 = vpow.pop %v3080
  %v3082 = vmul.f32 %v2956, 1.442695
  %v3083 = vpow.pop %v3082
  %v3084 = vmul.f32 %v2957, 1.442695
  %v3085 = vpow.pop %v3084
  %v3086 = vadd.f32 %v2959, 1.0
  %v3087 = vadd.f32 %v2961, 1.0
  %v3088 = vadd.f32 %v2963, 1.0
  %v3089 = vadd.f32 %v2965, 1.0
  %v3090 = vadd.f32 %v2967, 1.0
  %v3091 = vadd.f32 %v2969, 1.0
  %v3092 = vadd.f32 %v2971, 1.0
  %v3093 = vadd.f32 %v2973, 1.0
  %v3094 = vadd.f32 %v2975, 1.0
  %v3095 = vadd.f32 %v2977, 1.0
  %v3096 = vadd.f32 %v2979, 1.0
  %v3097 = vadd.f32 %v2981, 1.0
  %v3098 = vadd.f32 %v2983, 1.0
  %v3099 = vadd.f32 %v2985, 1.0
  %v3100 = vadd.f32 %v2987, 1.0
  %v3101 = vadd.f32 %v2989, 1.0
  %v3102 = vadd.f32 %v2991, 1.0
  %v3103 = vadd.f32 %v2993, 1.0
  %v3104 = vadd.f32 %v2995, 1.0
  %v3105 = vadd.f32 %v2997, 1.0
  %v3106 = vadd.f32 %v2999, 1.0
  %v3107 = vadd.f32 %v3001, 1.0
  %v3108 = vadd.f32 %v3003, 1.0
  %v3109 = vadd.f32 %v3005, 1.0
  %v3110 = vadd.f32 %v3007, 1.0
  %v3111 = vadd.f32 %v3009, 1.0
  %v3112 = vadd.f32 %v3011, 1.0
  %v3113 = vadd.f32 %v3013, 1.0
  %v3114 = vadd.f32 %v3015, 1.0
  %v3115 = vadd.f32 %v3017, 1.0
  %v3116 = vadd.f32 %v3019, 1.0
  %v3117 = vadd.f32 %v3021, 1.0
  %v3118 = vadd.f32 %v3023, 1.0
  %v3119 = vadd.f32 %v3025, 1.0
  %v3120 = vadd.f32 %v3027, 1.0
  %v3121 = vadd.f32 %v3029, 1.0
  %v3122 = vadd.f32 %v3031, 1.0
  %v3123 = vadd.f32 %v3033, 1.0
  %v3124 = vadd.f32 %v3035, 1.0
  %v3125 = vadd.f32 %v3037, 1.0
  %v3126 = vadd.f32 %v3039, 1.0
  %v3127 = vadd.f32 %v3041, 1.0
  %v3128 = vadd.f32 %v3043, 1.0
  %v3129 = vadd.f32 %v3045, 1.0
  %v3130 = vadd.f32 %v3047, 1.0
  %v3131 = vadd.f32 %v3049, 1.0
  %v3132 = vadd.f32 %v3051, 1.0
  %v3133 = vadd.f32 %v3053, 1.0
  %v3134 = vadd.f32 %v3055, 1.0
  %v3135 = vadd.f32 %v3057, 1.0
  %v3136 = vadd.f32 %v3059, 1.0
  %v3137 = vadd.f32 %v3061, 1.0
  %v3138 = vadd.f32 %v3063, 1.0
  %v3139 = vadd.f32 %v3065, 1.0
  %v3140 = vadd.f32 %v3067, 1.0
  %v3141 = vadd.f32 %v3069, 1.0
  %v3142 = vadd.f32 %v3071, 1.0
  %v3143 = vadd.f32 %v3073, 1.0
  %v3144 = vadd.f32 %v3075, 1.0
  %v3145 = vadd.f32 %v3077, 1.0
  %v3146 = vadd.f32 %v3079, 1.0
  %v3147 = vadd.f32 %v3081, 1.0
  %v3148 = vadd.f32 %v3083, 1.0
  %v3149 = vadd.f32 %v3085, 1.0
  %v3150 = vrcp.pop %v3086
  %v3151 = vrcp.pop %v3087
  %v3152 = vrcp.pop %v3088
  %v3153 = vrcp.pop %v3089
  %v3154 = vrcp.pop %v3090
  %v3155 = vrcp.pop %v3091
  %v3156 = vrcp.pop %v3092
  %v3157 = vrcp.pop %v3093
  %v3158 = vrcp.pop %v3094
  %v3159 = vrcp.pop %v3095
  %v3160 = vrcp.pop %v3096
  %v3161 = vrcp.pop %v3097
  %v3162 = vrcp.pop %v3098
  %v3163 = vrcp.pop %v3099
  %v3164 = vrcp.pop %v3100
  %v3165 = vrcp.pop %v3101
  %v3166 = vrcp.pop %v3102
  %v3167 = vrcp.pop %v3103
  %v3168 = vrcp.pop %v3104
  %v3169 = vrcp.pop %v3105
  %v3170 = vrcp.pop %v3106
  %v3171 = vrcp.pop %v3107
  %v3172 = vrcp.pop %v3108
  %v3173 = vrcp.pop %v3109
  %v3174 = vrcp.pop %v3110
  %v3175 = vrcp.pop %v3111
  %v3176 = vrcp.pop %v3112
  %v3177 = vrcp.pop %v3113
  %v3178 = vrcp.pop %v3114
  %v3179 = vrcp.pop %v3115
  %v3180 = vrcp.pop %v3116
  %v3181 = vrcp.pop %v3117
  %v3182 = vrcp.pop %v3118
  %v3183 = vrcp.pop %v3119
  %v3184 = vrcp.pop %v3120
  %v3185 = vrcp.pop %v3121
  %v3186 = vrcp.pop %v3122
  %v3187 = vrcp.pop %v3123
  %v3188 = vrcp.pop %v3124
  %v3189 = vrcp.pop %v3125
  %v3190 = vrcp.pop %v3126
  %v3191 = vrcp.pop %v3127
  %v3192 = vrcp.pop %v3128
  %v3193 = vrcp.pop %v3129
  %v3194 = vrcp.pop %v3130
  %v3195 = vrcp.pop %v3131
  %v3196 = vrcp.pop %v3132
  %v3197 = vrcp.pop %v3133
  %v3198 = vrcp.pop %v3134
  %v3199 = vrcp.pop %v3135
  %v3200 = vrcp.pop %v3136
  %v3201 = vrcp.pop %v3137
  %v3202 = vrcp.pop %v3138
  %v3203 = vrcp.pop %v3139
  %v3204 = vrcp.pop %v3140
  %v3205 = vrcp.pop %v3141
  %v3206 = vrcp.pop %v3142
  %v3207 = vrcp.pop %v3143
  %v3208 = vrcp.pop %v3144
  %v3209 = vrcp.pop %v3145
  %v3210 = vrcp.pop %v3146
  %v3211 = vrcp.pop %v3147
  %v3212 = vrcp.pop %v3148
  %v3213 = vrcp.pop %v3149
  %3214 = vst.msk [vmem:[%s10] sm:$0xff] %vm170, %v3150
  %3215 = vst.msk [vmem:[%s10 + $0x8] sm:$0xff] %vm170, %v3151
  %3216 = vst.msk [vmem:[%s10 + $0x10] sm:$0xff] %vm170, %v3152
  %3217 = vst.msk [vmem:[%s10 + $0x18] sm:$0xff] %vm170, %v3153
  %3218 = vst.msk [vmem:[%s10 + $0x20] sm:$0xff] %vm170, %v3154
  %3219 = vst.msk [vmem:[%s10 + $0x28] sm:$0xff] %vm170, %v3155
  %3220 = vst.msk [vmem:[%s10 + $0x30] sm:$0xff] %vm170, %v3156
  %3221 = vst.msk [vmem:[%s10 + $0x38] sm:$0xff] %vm170, %v3157
  %3222 = vst.msk [vmem:[%s10 + $0x40] sm:$0xff] %vm170, %v3158
  %3223 = vst.msk [vmem:[%s10 + $0x48] sm:$0xff] %vm170, %v3159
  %3224 = vst.msk [vmem:[%s10 + $0x50] sm:$0xff] %vm170, %v3160
  %3225 = vst.msk [vmem:[%s10 + $0x58] sm:$0xff] %vm170, %v3161
  %3226 = vst.msk [vmem:[%s10 + $0x60] sm:$0xff] %vm170, %v3162
  %3227 = vst.msk [vmem:[%s10 + $0x68] sm:$0xff] %vm170, %v3163
  %3228 = vst.msk [vmem:[%s10 + $0x70] sm:$0xff] %vm170, %v3164
  %3229 = vst.msk [vmem:[%s10 + $0x78] sm:$0xff] %vm170, %v3165
  %3230 = vst.msk [vmem:[%s10 + $0x80] sm:$0xff] %vm170, %v3166
  %3231 = vst.msk [vmem:[%s10 + $0x88] sm:$0xff] %vm170, %v3167
  %3232 = vst.msk [vmem:[%s10 + $0x90] sm:$0xff] %vm170, %v3168
  %3233 = vst.msk [vmem:[%s10 + $0x98] sm:$0xff] %vm170, %v3169
  %3234 = vst.msk [vmem:[%s10 + $0xa0] sm:$0xff] %vm170, %v3170
  %3235 = vst.msk [vmem:[%s10 + $0xa8] sm:$0xff] %vm170, %v3171
  %3236 = vst.msk [vmem:[%s10 + $0xb0] sm:$0xff] %vm170, %v3172
  %3237 = vst.msk [vmem:[%s10 + $0xb8] sm:$0xff] %vm170, %v3173
  %3238 = vst.msk [vmem:[%s10 + $0xc0] sm:$0xff] %vm170, %v3174
  %3239 = vst.msk [vmem:[%s10 + $0xc8] sm:$0xff] %vm170, %v3175
  %3240 = vst.msk [vmem:[%s10 + $0xd0] sm:$0xff] %vm170, %v3176
  %3241 = vst.msk [vmem:[%s10 + $0xd8] sm:$0xff] %vm170, %v3177
  %3242 = vst.msk [vmem:[%s10 + $0xe0] sm:$0xff] %vm170, %v3178
  %3243 = vst.msk [vmem:[%s10 + $0xe8] sm:$0xff] %vm170, %v3179
  %3244 = vst.msk [vmem:[%s10 + $0xf0] sm:$0xff] %vm170, %v3180
  %3245 = vst.msk [vmem:[%s10 + $0xf8] sm:$0xff] %vm170, %v3181
  %3246 = vst.msk [vmem:[%s10 + $0x100] sm:$0xff] %vm170, %v3182
  %3247 = vst.msk [vmem:[%s10 + $0x108] sm:$0xff] %vm170, %v3183
  %3248 = vst.msk [vmem:[%s10 + $0x110] sm:$0xff] %vm170, %v3184
  %3249 = vst.msk [vmem:[%s10 + $0x118] sm:$0xff] %vm170, %v3185
  %3250 = vst.msk [vmem:[%s10 + $0x120] sm:$0xff] %vm170, %v3186
  %3251 = vst.msk [vmem:[%s10 + $0x128] sm:$0xff] %vm170, %v3187
  %3252 = vst.msk [vmem:[%s10 + $0x130] sm:$0xff] %vm170, %v3188
  %3253 = vst.msk [vmem:[%s10 + $0x138] sm:$0xff] %vm170, %v3189
  %3254 = vst.msk [vmem:[%s10 + $0x140] sm:$0xff] %vm170, %v3190
  %3255 = vst.msk [vmem:[%s10 + $0x148] sm:$0xff] %vm170, %v3191
  %3256 = vst.msk [vmem:[%s10 + $0x150] sm:$0xff] %vm170, %v3192
  %3257 = vst.msk [vmem:[%s10 + $0x158] sm:$0xff] %vm170, %v3193
  %3258 = vst.msk [vmem:[%s10 + $0x160] sm:$0xff] %vm170, %v3194
  %3259 = vst.msk [vmem:[%s10 + $0x168] sm:$0xff] %vm170, %v3195
  %3260 = vst.msk [vmem:[%s10 + $0x170] sm:$0xff] %vm170, %v3196
  %3261 = vst.msk [vmem:[%s10 + $0x178] sm:$0xff] %vm170, %v3197
  %3262 = vst.msk [vmem:[%s10 + $0x180] sm:$0xff] %vm170, %v3198
  %3263 = vst.msk [vmem:[%s10 + $0x188] sm:$0xff] %vm170, %v3199
  %3264 = vst.msk [vmem:[%s10 + $0x190] sm:$0xff] %vm170, %v3200
  %3265 = vst.msk [vmem:[%s10 + $0x198] sm:$0xff] %vm170, %v3201
  %3266 = vst.msk [vmem:[%s10 + $0x1a0] sm:$0xff] %vm170, %v3202
  %3267 = vst.msk [vmem:[%s10 + $0x1a8] sm:$0xff] %vm170, %v3203
  %3268 = vst.msk [vmem:[%s10 + $0x1b0] sm:$0xff] %vm170, %v3204
  %3269 = vst.msk [vmem:[%s10 + $0x1b8] sm:$0xff] %vm170, %v3205
  %3270 = vst.msk [vmem:[%s10 + $0x1c0] sm:$0xff] %vm170, %v3206
  %3271 = vst.msk [vmem:[%s10 + $0x1c8] sm:$0xff] %vm170, %v3207
  %3272 = vst.msk [vmem:[%s10 + $0x1d0] sm:$0xff] %vm170, %v3208
  %3273 = vst.msk [vmem:[%s10 + $0x1d8] sm:$0xff] %vm170, %v3209
  %3274 = vst.msk [vmem:[%s10 + $0x1e0] sm:$0xff] %vm170, %v3210
  %3275 = vst.msk [vmem:[%s10 + $0x1e8] sm:$0xff] %vm170, %v3211
  %3276 = vst.msk [vmem:[%s10 + $0x1f0] sm:$0xff] %vm170, %v3212
  %3277 = vst.msk [vmem:[%s10 + $0x1f8] sm:$0xff] %vm170, %v3213
  // Predicated region
  $region38: #{tpu_custom_call.1} parent=0 // pred_check
    _
  $region39: #{tpu_custom_call.1} parent=0 // pred_check_branch
    %3279 = sbr.rel (0) target = $region41
  $region40: #{tpu_custom_call.1} parent=0 // pred_region
    _
  $region41: #{tpu_custom_call.1} parent=0 // pred_fallthru
    _
  // Predicated region
  $region42: #{tpu_custom_call.1} parent=0 // pred_check
    _
  $region43: #{tpu_custom_call.1} parent=0 // pred_check_branch
    %3281 = sbr.rel (0) target = $region45
  $region44: #{tpu_custom_call.1} parent=0 // pred_region
    _
  $region45: #{tpu_custom_call.1} parent=0 // pred_fallthru
    _
  // Predicated region
  $region46: #{tpu_custom_call.1} parent=0 // pred_check
    _
  $region47: #{tpu_custom_call.1} parent=0 // pred_check_branch
    %3283 = sbr.rel (0) target = $region49
  $region48: #{tpu_custom_call.1} parent=0 // pred_region
    _
  $region49: #{tpu_custom_call.1} parent=0 // pred_fallthru
    _
  // Predicated region
  $region50: #{tpu_custom_call.1} parent=0 // pred_check
    _
  $region51: #{tpu_custom_call.1} parent=0 // pred_check_branch
    %3285 = sbr.rel (0) target = $region53
  $region52: #{tpu_custom_call.1} parent=0 // pred_region
    _
  $region53: #{tpu_custom_call.1} parent=0 // pred_fallthru
    _

</llo_original>
